<compile_context>
chip_gen: v6e
topology: v6e:2x2x1
jax: 0.10.0
libtpu: 0.0.40
codegen_flags: <defaults>
</compile_context>

<pallas_src>
import math
import functools

import jax
import jax.numpy as jnp
from jax import lax
from jax.experimental import pallas as pl
from jax.experimental.pallas import tpu as pltpu


# ---------------------------------------------------------------------------
# Fused Pallas kernel: all decoder layers + final linear
# ---------------------------------------------------------------------------
def fused_decoder_kernel(x_ref,
                         wq_ref, wk_ref, wv_ref, bq_ref, bk_ref, bv_ref,
                         wo_ref, bo_ref, g1_ref, be1_ref,
                         w1_ref, b1_ref, w2_ref, b2_ref, g2_ref, be2_ref,
                         wout_ref, bout_ref,
                         o_ref,
                         acc_ref, attn_ref,
                         *, num_heads, seq_len, pad_len, batch, matmul_dtype):
    """grid = (num_layers,). Activation slab (B*Tp, D) lives in VMEM scratch."""
    l = pl.program_id(0)
    n_layers = pl.num_programs(0)
    T, Tp, B, H = seq_len, pad_len, batch, num_heads
    N, D = acc_ref.shape
    Dh = D // H
    scale = 1.0 / math.sqrt(Dh)
    cd = matmul_dtype

    @pl.when(l == 0)
    def _():
        acc_ref[...] = x_ref[...]

    x = acc_ref[...]                                            # (N, D) f32

    # additive causal mask built in-kernel (iota + compare on the VPU)
    row = lax.broadcasted_iota(jnp.int32, (Tp, Tp), 0)
    col = lax.broadcasted_iota(jnp.int32, (Tp, Tp), 1)
    mask = jnp.where((row >= col) & (col < T), 0.0, -1e30)      # pad keys masked

    # row-batched QKV projections: (B*Tp, D) @ (D, D) on the MXU
    xc = x.astype(cd)
    q = jnp.dot(xc, wq_ref[0].astype(cd), preferred_element_type=jnp.float32) + bq_ref[0]
    k = jnp.dot(xc, wk_ref[0].astype(cd), preferred_element_type=jnp.float32) + bk_ref[0]
    v = jnp.dot(xc, wv_ref[0].astype(cd), preferred_element_type=jnp.float32) + bv_ref[0]

    wo = wo_ref[0]
    # per-(batch, head) attention; static unroll (B*H is small). The heavy matmuls
    # (QKV/FF/vocab) are already row-batched; a 4-D head-batched contraction is
    # avoided here for Mosaic-lowering robustness.
    for b in range(B):
        r0, r1 = b * Tp, (b + 1) * Tp                           # 8-aligned rows
        attn_b = jnp.zeros((Tp, D), jnp.float32)
        for h in range(H):
            c0, c1 = h * Dh, (h + 1) * Dh
            qh = q[r0:r1, c0:c1] * scale                        # (Tp, Dh)
            kh = k[r0:r1, c0:c1]
            vh = v[r0:r1, c0:c1]
            # scores via dot_general contracting last dims (no explicit kh.T)
            s = lax.dot_general(qh.astype(cd), kh.astype(cd),
                                (((1,), (1,)), ((), ())),
                                preferred_element_type=jnp.float32) + mask
            m = jnp.max(s, axis=-1, keepdims=True)
            p = jnp.exp(s - m)
            denom = jnp.sum(p, axis=-1, keepdims=True)
            p = p * pl.reciprocal(denom, approx=True)           # EUP, not VALU div
            oh = jnp.dot(p.astype(cd), vh.astype(cd),
                         preferred_element_type=jnp.float32)    # (Tp, Dh)
            # concat(heads) @ Wo  ==  sum_h head_h @ Wo[head slice]
            attn_b = attn_b + jnp.dot(oh.astype(cd), wo[c0:c1, :].astype(cd),
                                      preferred_element_type=jnp.float32)
        attn_ref[r0:r1, :] = attn_b
    attn = attn_ref[...] + bo_ref[0]

    # residual + LayerNorm 1 (f32)
    x1 = x + attn
    mu = jnp.mean(x1, axis=-1, keepdims=True)
    var = jnp.mean((x1 - mu) ** 2, axis=-1, keepdims=True)
    x1 = (x1 - mu) * lax.rsqrt(var + 1e-5) * g1_ref[0] + be1_ref[0]

    # feed-forward, row-batched
    h1 = jnp.dot(x1.astype(cd), w1_ref[0].astype(cd),
                 preferred_element_type=jnp.float32) + b1_ref[0]
    h1 = jnp.maximum(h1, 0.0)
    ff = jnp.dot(h1.astype(cd), w2_ref[0].astype(cd),
                 preferred_element_type=jnp.float32) + b2_ref[0]

    # residual + LayerNorm 2 (f32)
    x2 = x1 + ff
    mu2 = jnp.mean(x2, axis=-1, keepdims=True)
    var2 = jnp.mean((x2 - mu2) ** 2, axis=-1, keepdims=True)
    y = (x2 - mu2) * lax.rsqrt(var2 + 1e-5) * g2_ref[0] + be2_ref[0]

    acc_ref[...] = y                                            # carry to next layer

    # fused, lane-dense (Vp = multiple of 128) vocab projection at the last layer
    @pl.when(l == n_layers - 1)
    def _():
        o_ref[...] = (jnp.dot(y.astype(cd), wout_ref[...].astype(cd),
                              preferred_element_type=jnp.float32) + bout_ref[...])


# ---------------------------------------------------------------------------
# Wrappers
# ---------------------------------------------------------------------------
def fused_decoder(xf, sp, w_out_p, b_out_p, *, num_heads, seq_len, pad_len, batch,
                  matmul_dtype=jnp.float32):
    N, D = xf.shape
    L = sp["wq_t"].shape[0]
    Vp = w_out_p.shape[1]

    layer_keys = ["wq_t", "wk_t", "wv_t", "bq", "bk", "bv", "wo_t", "bo",
                  "g1", "be1", "w1_t", "b1", "w2_t", "b2", "g2", "be2"]
    layer_args = [sp[k] for k in layer_keys]

    def invariant(arr):                           # grid-invariant: loaded once
        return pl.BlockSpec(arr.shape, lambda l: (0,) * arr.ndim)

    def per_layer(arr):                           # (L, a, b): layer l's slice
        return pl.BlockSpec((1,) + arr.shape[1:], lambda l: (l, 0, 0))

    in_specs = ([invariant(xf)]
                + [per_layer(a) for a in layer_args]
                + [invariant(w_out_p), invariant(b_out_p)])

    kernel = functools.partial(
        fused_decoder_kernel, num_heads=num_heads, seq_len=seq_len,
        pad_len=pad_len, batch=batch, matmul_dtype=matmul_dtype)

    return pl.pallas_call(
        kernel,
        grid=(L,),
        in_specs=in_specs,
        out_specs=pl.BlockSpec((N, Vp), lambda l: (0, 0)),
        out_shape=jax.ShapeDtypeStruct((N, Vp), jnp.float32),
        scratch_shapes=[pltpu.VMEM((N, D), jnp.float32),   # activation carry
                        pltpu.VMEM((N, D), jnp.float32)],  # attention output
        compiler_params=pltpu.CompilerParams(
            dimension_semantics=("arbitrary",),            # layer axis is a carry
        ),
    )(xf, *layer_args, w_out_p, b_out_p)


def decoder_forward(tokens, per_prot_context, params, num_heads,
                    matmul_dtype=jnp.float32):
    """tokens: (S, B) int32; per_prot_context: (B, D) f32  ->  (S+1, B, V) f32."""
    S, B = tokens.shape
    D = params["embedding"].shape[1]
    V = params["w_out_t"].shape[1]
    T = S + 1

    # glue (XLA): embedding gather + positional encoding, batch-major end-to-end
    emb = params["embedding"][tokens.T]                           # (B, S, D)
    emb = emb + params["pe"][:S][None, :, :]
    x = jnp.concatenate([per_prot_context[:, None, :], emb], axis=1)  # (B, T, D)

    # pad per-sequence length to a multiple of 8 sublanes so every batch's row
    # block in the flattened (B*Tp, D) slab is 8-aligned
    Tp = ((T + 7) // 8) * 8
    x = jnp.pad(x, ((0, 0), (0, Tp - T), (0, 0)))
    xf = x.reshape(B * Tp, D)

    # lane-dense vocab projection: pad V up to a multiple of 128 lanes
    Vp = max(128, ((V + 127) // 128) * 128)
    w_out_p = jnp.pad(params["w_out_t"], ((0, 0), (0, Vp - V)))
    b_out_p = jnp.pad(params["b_out"], ((0, 0), (0, Vp - V)))

    logits_p = fused_decoder(xf, params["stacked"], w_out_p, b_out_p,
                             num_heads=num_heads, seq_len=T, pad_len=Tp,
                             batch=B, matmul_dtype=matmul_dtype)  # (B*Tp, Vp)
    logits = logits_p.reshape(B, Tp, Vp)[:, :T, :V]               # (B, T, V)
    return jnp.transpose(logits, (1, 0, 2))                       # (T, B, V)
    # TODO(synk): dropout layers are identity (deterministic / eval-mode forward).


# ---------------------------------------------------------------------------
# Deterministic parameter init (synthetic, matches PyTorch module shapes)
# ---------------------------------------------------------------------------
def init_params(key, vocab_size, d_model, ff_hidden, num_layers, max_seq_len):
    D, F, V, L = d_model, ff_hidden, vocab_size, num_layers
    k_emb, k_lay, k_out = jax.random.split(key, 3)
    lk = jax.random.split(k_lay, 9)
    s_d = 1.0 / math.sqrt(D)
    s_f = 1.0 / math.sqrt(F)

    params = {}
    params["embedding"] = jax.random.normal(k_emb, (V, D), jnp.float32) * 0.1

    # sinusoidal positional encoding, max_len = 2 * max_seq_len (as in the module)
    max_len = max_seq_len * 2
    position = jnp.arange(max_len, dtype=jnp.float32)[:, None]
    div_term = jnp.exp(jnp.arange(0, D, 2, dtype=jnp.float32) * (-math.log(10000.0) / D))
    pe = jnp.zeros((max_len, D), jnp.float32)
    pe = pe.at[:, 0::2].set(jnp.sin(position * div_term))
    pe = pe.at[:, 1::2].set(jnp.cos(position * div_term))
    params["pe"] = pe

    # per-layer parameters stacked on a leading L axis (weights pre-transposed: x @ W_t)
    params["stacked"] = dict(
        wq_t=jax.random.normal(lk[0], (L, D, D), jnp.float32) * s_d,
        wk_t=jax.random.normal(lk[1], (L, D, D), jnp.float32) * s_d,
        wv_t=jax.random.normal(lk[2], (L, D, D), jnp.float32) * s_d,
        bq=jax.random.normal(lk[3], (L, 1, D), jnp.float32) * 0.01,
        bk=jax.random.normal(lk[4], (L, 1, D), jnp.float32) * 0.01,
        bv=jax.random.normal(lk[5], (L, 1, D), jnp.float32) * 0.01,
        wo_t=jax.random.normal(lk[6], (L, D, D), jnp.float32) * s_d,
        bo=jnp.zeros((L, 1, D), jnp.float32),
        g1=jnp.ones((L, 1, D), jnp.float32), be1=jnp.zeros((L, 1, D), jnp.float32),
        g2=jnp.ones((L, 1, D), jnp.float32), be2=jnp.zeros((L, 1, D), jnp.float32),
        w1_t=jax.random.normal(lk[7], (L, D, F), jnp.float32) * s_d,
        b1=jnp.zeros((L, 1, F), jnp.float32),
        w2_t=jax.random.normal(lk[8], (L, F, D), jnp.float32) * s_f,
        b2=jnp.zeros((L, 1, D), jnp.float32),
    )

    params["w_out_t"] = jax.random.normal(k_out, (D, V), jnp.float32) * s_d
    params["b_out"] = jnp.zeros((1, V), jnp.float32)
    return params


# ---------------------------------------------------------------------------
if __name__ == "__main__":
    vocab_size = 16
    d_model = 32
    num_heads = 4
    ff_hidden = 64
    num_layers = 2
    max_seq_len = 8
    S, B = 8, 2          # seq length (before context token), batch

    key = jax.random.PRNGKey(0)
    kp, kt, kc = jax.random.split(key, 3)
    params = init_params(kp, vocab_size, d_model, ff_hidden, num_layers, max_seq_len)

    tokens = jax.random.randint(kt, (S, B), 0, vocab_size, dtype=jnp.int32)
    per_prot_context = jax.random.normal(kc, (B, d_model), jnp.float32)

    # matmul_dtype=jnp.bfloat16 is the v6e/v7x option (2x MXU, half the weight DMA);
    # f32 default keeps v5e-friendly elementwise math and matches the reference numerics.
    out = decoder_forward(tokens, per_prot_context, params, num_heads)
    out = jax.block_until_ready(out)

    assert out.shape == (S + 1, B, vocab_size), out.shape
    assert bool(jnp.all(jnp.isfinite(out)))
    print("KERNEL_OK")
</pallas_src>

<mosaic_0001>
module attributes {stable_mosaic.version = 11 : i64} {
  func.func @fused_decoder_kernel(%arg0: i32, %arg1: memref<32x32xf32, #tpu.memory_space<vmem>>, %arg2: memref<1x32x32xf32, #tpu.memory_space<vmem>>, %arg3: memref<1x32x32xf32, #tpu.memory_space<vmem>>, %arg4: memref<1x32x32xf32, #tpu.memory_space<vmem>>, %arg5: memref<1x1x32xf32, #tpu.memory_space<vmem>>, %arg6: memref<1x1x32xf32, #tpu.memory_space<vmem>>, %arg7: memref<1x1x32xf32, #tpu.memory_space<vmem>>, %arg8: memref<1x32x32xf32, #tpu.memory_space<vmem>>, %arg9: memref<1x1x32xf32, #tpu.memory_space<vmem>>, %arg10: memref<1x1x32xf32, #tpu.memory_space<vmem>>, %arg11: memref<1x1x32xf32, #tpu.memory_space<vmem>>, %arg12: memref<1x32x64xf32, #tpu.memory_space<vmem>>, %arg13: memref<1x1x64xf32, #tpu.memory_space<vmem>>, %arg14: memref<1x64x32xf32, #tpu.memory_space<vmem>>, %arg15: memref<1x1x32xf32, #tpu.memory_space<vmem>>, %arg16: memref<1x1x32xf32, #tpu.memory_space<vmem>>, %arg17: memref<1x1x32xf32, #tpu.memory_space<vmem>>, %arg18: memref<32x128xf32, #tpu.memory_space<vmem>>, %arg19: memref<1x128xf32, #tpu.memory_space<vmem>>, %arg20: memref<32x128xf32, #tpu.memory_space<vmem>>, %arg21: memref<32x32xf32, #tpu.memory_space<vmem>>, %arg22: memref<32x32xf32, #tpu.memory_space<vmem>>) attributes {dimension_semantics = [#tpu.dimension_semantics<arbitrary>], iteration_bounds = array<i64: 2>, scalar_prefetch = 0 : i64, scratch_operands = 2 : i64, tpu.core_type = #tpu.core_type<tc>, window_params = [{pipeline_mode = #tpu.pipeline_mode<synchronous>, transform_indices = @transform_0, window_bounds = array<i64: 32, 32>}, {transform_indices = @transform_1, window_bounds = array<i64: 1, 32, 32>}, {transform_indices = @transform_2, window_bounds = array<i64: 1, 32, 32>}, {transform_indices = @transform_3, window_bounds = array<i64: 1, 32, 32>}, {transform_indices = @transform_4, window_bounds = array<i64: 1, 1, 32>}, {transform_indices = @transform_5, window_bounds = array<i64: 1, 1, 32>}, {transform_indices = @transform_6, window_bounds = array<i64: 1, 1, 32>}, {transform_indices = @transform_7, window_bounds = array<i64: 1, 32, 32>}, {transform_indices = @transform_8, window_bounds = array<i64: 1, 1, 32>}, {transform_indices = @transform_9, window_bounds = array<i64: 1, 1, 32>}, {transform_indices = @transform_10, window_bounds = array<i64: 1, 1, 32>}, {transform_indices = @transform_11, window_bounds = array<i64: 1, 32, 64>}, {transform_indices = @transform_12, window_bounds = array<i64: 1, 1, 64>}, {transform_indices = @transform_13, window_bounds = array<i64: 1, 64, 32>}, {transform_indices = @transform_14, window_bounds = array<i64: 1, 1, 32>}, {transform_indices = @transform_15, window_bounds = array<i64: 1, 1, 32>}, {transform_indices = @transform_16, window_bounds = array<i64: 1, 1, 32>}, {pipeline_mode = #tpu.pipeline_mode<synchronous>, transform_indices = @transform_17, window_bounds = array<i64: 32, 128>}, {pipeline_mode = #tpu.pipeline_mode<synchronous>, transform_indices = @transform_18, window_bounds = array<i64: 1, 128>}, {pipeline_mode = #tpu.pipeline_mode<synchronous>, transform_indices = @transform_19, window_bounds = array<i64: 32, 128>}]} {
    %c0_i32 = arith.constant 0 : i32
    %0 = arith.cmpi eq, %arg0, %c0_i32 : i32
    %1 = arith.extui %0 : i1 to i32
    %c0_i32_0 = arith.constant 0 : i32
    %2 = arith.cmpi ne, %1, %c0_i32_0 : i32
    scf.if %2 {
      %c0_125 = arith.constant 0 : index
      %c0_126 = arith.constant 0 : index
      %287 = vector.load %arg1[%c0_125, %c0_126] : memref<32x32xf32, #tpu.memory_space<vmem>>, vector<32x32xf32>
      %c0_127 = arith.constant 0 : index
      %c0_128 = arith.constant 0 : index
      %288 = vector.load %arg21[%c0_127, %c0_128] : memref<32x32xf32, #tpu.memory_space<vmem>>, vector<32x32xf32>
      tpu.vector_store %arg21[%c0_127, %c0_128], %287 {strides = array<i32>} : memref<32x32xf32, #tpu.memory_space<vmem>>, vector<32x32xf32>,
    } else {
    }
    %c0 = arith.constant 0 : index
    %c0_1 = arith.constant 0 : index
    %3 = vector.load %arg21[%c0, %c0_1] : memref<32x32xf32, #tpu.memory_space<vmem>>, vector<32x32xf32>
    %4 = tpu.iota {dimensions = array<i32: 0>} : vector<16x16xi32>
    %5 = tpu.iota {dimensions = array<i32: 1>} : vector<16x16xi32>
    %6 = arith.cmpi sge, %4, %5 : vector<16x16xi32>
    %c9_i32 = arith.constant 9 : i32
    %7 = vector.broadcast %c9_i32 : i32 to vector<16x16xi32>
    %8 = arith.cmpi slt, %5, %7 : vector<16x16xi32>
    %9 = arith.andi %6, %8 : vector<16x16xi1>
    %cst = arith.constant 0.000000e+00 : f32
    %cst_2 = arith.constant -1.000000e+30 : f32
    %10 = vector.broadcast %cst : f32 to vector<16x16xf32>
    %11 = vector.broadcast %cst_2 : f32 to vector<16x16xf32>
    %12 = arith.select %9, %10, %11 : vector<16x16xi1>, vector<16x16xf32>
    %c0_3 = arith.constant 0 : index
    %c0_4 = arith.constant 0 : index
    %c0_5 = arith.constant 0 : index
    %13 = vector.load %arg2[%c0_3, %c0_4, %c0_5] : memref<1x32x32xf32, #tpu.memory_space<vmem>>, vector<1x32x32xf32>
    %14 = vector.shape_cast %13 : vector<1x32x32xf32> to vector<32x32xf32>
    %cst_6 = arith.constant dense<0.000000e+00> : vector<32x32xf32>
    %15 = tpu.matmul %3, %14, %cst_6 {dimension_numbers = #tpu.dot_dimension_numbers<[1], [0], [0], [1], [0, 0, 1, 1], [], []>} : vector<32x32xf32>, vector<32x32xf32>, vector<32x32xf32> -> vector<32x32xf32>
    %c0_7 = arith.constant 0 : index
    %c0_8 = arith.constant 0 : index
    %c0_9 = arith.constant 0 : index
    %16 = vector.load %arg5[%c0_7, %c0_8, %c0_9] : memref<1x1x32xf32, #tpu.memory_space<vmem>>, vector<1x1x32xf32>
    %17 = vector.shape_cast %16 : vector<1x1x32xf32> to vector<1x32xf32>
    %18 = vector.broadcast %17 : vector<1x32xf32> to vector<32x32xf32>
    %19 = arith.addf %15, %18 : vector<32x32xf32>
    %c0_10 = arith.constant 0 : index
    %c0_11 = arith.constant 0 : index
    %c0_12 = arith.constant 0 : index
    %20 = vector.load %arg3[%c0_10, %c0_11, %c0_12] : memref<1x32x32xf32, #tpu.memory_space<vmem>>, vector<1x32x32xf32>
    %21 = vector.shape_cast %20 : vector<1x32x32xf32> to vector<32x32xf32>
    %cst_13 = arith.constant dense<0.000000e+00> : vector<32x32xf32>
    %22 = tpu.matmul %3, %21, %cst_13 {dimension_numbers = #tpu.dot_dimension_numbers<[1], [0], [0], [1], [0, 0, 1, 1], [], []>} : vector<32x32xf32>, vector<32x32xf32>, vector<32x32xf32> -> vector<32x32xf32>
    %c0_14 = arith.constant 0 : index
    %c0_15 = arith.constant 0 : index
    %c0_16 = arith.constant 0 : index
    %23 = vector.load %arg6[%c0_14, %c0_15, %c0_16] : memref<1x1x32xf32, #tpu.memory_space<vmem>>, vector<1x1x32xf32>
    %24 = vector.shape_cast %23 : vector<1x1x32xf32> to vector<1x32xf32>
    %25 = vector.broadcast %24 : vector<1x32xf32> to vector<32x32xf32>
    %26 = arith.addf %22, %25 : vector<32x32xf32>
    %c0_17 = arith.constant 0 : index
    %c0_18 = arith.constant 0 : index
    %c0_19 = arith.constant 0 : index
    %27 = vector.load %arg4[%c0_17, %c0_18, %c0_19] : memref<1x32x32xf32, #tpu.memory_space<vmem>>, vector<1x32x32xf32>
    %28 = vector.shape_cast %27 : vector<1x32x32xf32> to vector<32x32xf32>
    %cst_20 = arith.constant dense<0.000000e+00> : vector<32x32xf32>
    %29 = tpu.matmul %3, %28, %cst_20 {dimension_numbers = #tpu.dot_dimension_numbers<[1], [0], [0], [1], [0, 0, 1, 1], [], []>} : vector<32x32xf32>, vector<32x32xf32>, vector<32x32xf32> -> vector<32x32xf32>
    %c0_21 = arith.constant 0 : index
    %c0_22 = arith.constant 0 : index
    %c0_23 = arith.constant 0 : index
    %30 = vector.load %arg7[%c0_21, %c0_22, %c0_23] : memref<1x1x32xf32, #tpu.memory_space<vmem>>, vector<1x1x32xf32>
    %31 = vector.shape_cast %30 : vector<1x1x32xf32> to vector<1x32xf32>
    %32 = vector.broadcast %31 : vector<1x32xf32> to vector<32x32xf32>
    %33 = arith.addf %29, %32 : vector<32x32xf32>
    %c0_24 = arith.constant 0 : index
    %c0_25 = arith.constant 0 : index
    %c0_26 = arith.constant 0 : index
    %34 = vector.load %arg8[%c0_24, %c0_25, %c0_26] : memref<1x32x32xf32, #tpu.memory_space<vmem>>, vector<1x32x32xf32>
    %35 = vector.shape_cast %34 : vector<1x32x32xf32> to vector<32x32xf32>
    %cst_27 = arith.constant 0.000000e+00 : f32
    %36 = vector.broadcast %cst_27 : f32 to vector<16x32xf32>
    %37 = vector.extract_strided_slice %19 {offsets = [0, 0], sizes = [16, 8], strides = [1, 1]} : vector<32x32xf32> to vector<16x8xf32>
    %cst_28 = arith.constant 0.353553385 : f32
    %38 = vector.broadcast %cst_28 : f32 to vector<16x8xf32>
    %39 = arith.mulf %37, %38 : vector<16x8xf32>
    %40 = vector.extract_strided_slice %26 {offsets = [0, 0], sizes = [16, 8], strides = [1, 1]} : vector<32x32xf32> to vector<16x8xf32>
    %41 = vector.extract_strided_slice %33 {offsets = [0, 0], sizes = [16, 8], strides = [1, 1]} : vector<32x32xf32> to vector<16x8xf32>
    %cst_29 = arith.constant dense<0.000000e+00> : vector<16x16xf32>
    %42 = tpu.matmul %39, %40, %cst_29 {dimension_numbers = #tpu.dot_dimension_numbers<[1], [1], [0], [0], [0, 0, 1, 0], [], []>} : vector<16x8xf32>, vector<16x8xf32>, vector<16x16xf32> -> vector<16x16xf32>
    %43 = arith.addf %42, %12 : vector<16x16xf32>
    %cst_30 = arith.constant dense<0xFF800000> : vector<16xf32>
    %44 = vector.multi_reduction <maximumf>, %43, %cst_30 [1] : vector<16x16xf32> to vector<16xf32>
    %45 = vector.shape_cast %44 : vector<16xf32> to vector<16x1xf32>
    %46 = vector.broadcast %45 : vector<16x1xf32> to vector<16x16xf32>
    %47 = arith.subf %43, %46 : vector<16x16xf32>
    %48 = math.exp %47 : vector<16x16xf32>
    %cst_31 = arith.constant dense<0.000000e+00> : vector<16xf32>
    %49 = vector.multi_reduction <add>, %48, %cst_31 [1] : vector<16x16xf32> to vector<16xf32>
    %50 = vector.shape_cast %49 : vector<16xf32> to vector<16x1xf32>
    %51 = tpu.reciprocal %50 {approx = true} : vector<16x1xf32> -> vector<16x1xf32>
    %52 = vector.broadcast %51 : vector<16x1xf32> to vector<16x16xf32>
    %53 = arith.mulf %48, %52 : vector<16x16xf32>
    %cst_32 = arith.constant dense<0.000000e+00> : vector<16x8xf32>
    %54 = tpu.matmul %53, %41, %cst_32 {dimension_numbers = #tpu.dot_dimension_numbers<[1], [0], [0], [1], [0, 0, 1, 1], [], []>} : vector<16x16xf32>, vector<16x8xf32>, vector<16x8xf32> -> vector<16x8xf32>
    %55 = vector.extract_strided_slice %35 {offsets = [0, 0], sizes = [8, 32], strides = [1, 1]} : vector<32x32xf32> to vector<8x32xf32>
    %cst_33 = arith.constant dense<0.000000e+00> : vector<16x32xf32>
    %56 = tpu.matmul %54, %55, %cst_33 {dimension_numbers = #tpu.dot_dimension_numbers<[1], [0], [0], [1], [0, 0, 1, 1], [], []>} : vector<16x8xf32>, vector<8x32xf32>, vector<16x32xf32> -> vector<16x32xf32>
    %57 = arith.addf %36, %56 : vector<16x32xf32>
    %58 = vector.extract_strided_slice %19 {offsets = [0, 8], sizes = [16, 8], strides = [1, 1]} : vector<32x32xf32> to vector<16x8xf32>
    %cst_34 = arith.constant 0.353553385 : f32
    %59 = vector.broadcast %cst_34 : f32 to vector<16x8xf32>
    %60 = arith.mulf %58, %59 : vector<16x8xf32>
    %61 = vector.extract_strided_slice %26 {offsets = [0, 8], sizes = [16, 8], strides = [1, 1]} : vector<32x32xf32> to vector<16x8xf32>
    %62 = vector.extract_strided_slice %33 {offsets = [0, 8], sizes = [16, 8], strides = [1, 1]} : vector<32x32xf32> to vector<16x8xf32>
    %cst_35 = arith.constant dense<0.000000e+00> : vector<16x16xf32>
    %63 = tpu.matmul %60, %61, %cst_35 {dimension_numbers = #tpu.dot_dimension_numbers<[1], [1], [0], [0], [0, 0, 1, 0], [], []>} : vector<16x8xf32>, vector<16x8xf32>, vector<16x16xf32> -> vector<16x16xf32>
    %64 = arith.addf %63, %12 : vector<16x16xf32>
    %cst_36 = arith.constant dense<0xFF800000> : vector<16xf32>
    %65 = vector.multi_reduction <maximumf>, %64, %cst_36 [1] : vector<16x16xf32> to vector<16xf32>
    %66 = vector.shape_cast %65 : vector<16xf32> to vector<16x1xf32>
    %67 = vector.broadcast %66 : vector<16x1xf32> to vector<16x16xf32>
    %68 = arith.subf %64, %67 : vector<16x16xf32>
    %69 = math.exp %68 : vector<16x16xf32>
    %cst_37 = arith.constant dense<0.000000e+00> : vector<16xf32>
    %70 = vector.multi_reduction <add>, %69, %cst_37 [1] : vector<16x16xf32> to vector<16xf32>
    %71 = vector.shape_cast %70 : vector<16xf32> to vector<16x1xf32>
    %72 = tpu.reciprocal %71 {approx = true} : vector<16x1xf32> -> vector<16x1xf32>
    %73 = vector.broadcast %72 : vector<16x1xf32> to vector<16x16xf32>
    %74 = arith.mulf %69, %73 : vector<16x16xf32>
    %cst_38 = arith.constant dense<0.000000e+00> : vector<16x8xf32>
    %75 = tpu.matmul %74, %62, %cst_38 {dimension_numbers = #tpu.dot_dimension_numbers<[1], [0], [0], [1], [0, 0, 1, 1], [], []>} : vector<16x16xf32>, vector<16x8xf32>, vector<16x8xf32> -> vector<16x8xf32>
    %76 = vector.extract_strided_slice %35 {offsets = [8, 0], sizes = [8, 32], strides = [1, 1]} : vector<32x32xf32> to vector<8x32xf32>
    %cst_39 = arith.constant dense<0.000000e+00> : vector<16x32xf32>
    %77 = tpu.matmul %75, %76, %cst_39 {dimension_numbers = #tpu.dot_dimension_numbers<[1], [0], [0], [1], [0, 0, 1, 1], [], []>} : vector<16x8xf32>, vector<8x32xf32>, vector<16x32xf32> -> vector<16x32xf32>
    %78 = arith.addf %57, %77 : vector<16x32xf32>
    %79 = vector.extract_strided_slice %19 {offsets = [0, 16], sizes = [16, 8], strides = [1, 1]} : vector<32x32xf32> to vector<16x8xf32>
    %cst_40 = arith.constant 0.353553385 : f32
    %80 = vector.broadcast %cst_40 : f32 to vector<16x8xf32>
    %81 = arith.mulf %79, %80 : vector<16x8xf32>
    %82 = vector.extract_strided_slice %26 {offsets = [0, 16], sizes = [16, 8], strides = [1, 1]} : vector<32x32xf32> to vector<16x8xf32>
    %83 = vector.extract_strided_slice %33 {offsets = [0, 16], sizes = [16, 8], strides = [1, 1]} : vector<32x32xf32> to vector<16x8xf32>
    %cst_41 = arith.constant dense<0.000000e+00> : vector<16x16xf32>
    %84 = tpu.matmul %81, %82, %cst_41 {dimension_numbers = #tpu.dot_dimension_numbers<[1], [1], [0], [0], [0, 0, 1, 0], [], []>} : vector<16x8xf32>, vector<16x8xf32>, vector<16x16xf32> -> vector<16x16xf32>
    %85 = arith.addf %84, %12 : vector<16x16xf32>
    %cst_42 = arith.constant dense<0xFF800000> : vector<16xf32>
    %86 = vector.multi_reduction <maximumf>, %85, %cst_42 [1] : vector<16x16xf32> to vector<16xf32>
    %87 = vector.shape_cast %86 : vector<16xf32> to vector<16x1xf32>
    %88 = vector.broadcast %87 : vector<16x1xf32> to vector<16x16xf32>
    %89 = arith.subf %85, %88 : vector<16x16xf32>
    %90 = math.exp %89 : vector<16x16xf32>
    %cst_43 = arith.constant dense<0.000000e+00> : vector<16xf32>
    %91 = vector.multi_reduction <add>, %90, %cst_43 [1] : vector<16x16xf32> to vector<16xf32>
    %92 = vector.shape_cast %91 : vector<16xf32> to vector<16x1xf32>
    %93 = tpu.reciprocal %92 {approx = true} : vector<16x1xf32> -> vector<16x1xf32>
    %94 = vector.broadcast %93 : vector<16x1xf32> to vector<16x16xf32>
    %95 = arith.mulf %90, %94 : vector<16x16xf32>
    %cst_44 = arith.constant dense<0.000000e+00> : vector<16x8xf32>
    %96 = tpu.matmul %95, %83, %cst_44 {dimension_numbers = #tpu.dot_dimension_numbers<[1], [0], [0], [1], [0, 0, 1, 1], [], []>} : vector<16x16xf32>, vector<16x8xf32>, vector<16x8xf32> -> vector<16x8xf32>
    %97 = vector.extract_strided_slice %35 {offsets = [16, 0], sizes = [8, 32], strides = [1, 1]} : vector<32x32xf32> to vector<8x32xf32>
    %cst_45 = arith.constant dense<0.000000e+00> : vector<16x32xf32>
    %98 = tpu.matmul %96, %97, %cst_45 {dimension_numbers = #tpu.dot_dimension_numbers<[1], [0], [0], [1], [0, 0, 1, 1], [], []>} : vector<16x8xf32>, vector<8x32xf32>, vector<16x32xf32> -> vector<16x32xf32>
    %99 = arith.addf %78, %98 : vector<16x32xf32>
    %100 = vector.extract_strided_slice %19 {offsets = [0, 24], sizes = [16, 8], strides = [1, 1]} : vector<32x32xf32> to vector<16x8xf32>
    %cst_46 = arith.constant 0.353553385 : f32
    %101 = vector.broadcast %cst_46 : f32 to vector<16x8xf32>
    %102 = arith.mulf %100, %101 : vector<16x8xf32>
    %103 = vector.extract_strided_slice %26 {offsets = [0, 24], sizes = [16, 8], strides = [1, 1]} : vector<32x32xf32> to vector<16x8xf32>
    %104 = vector.extract_strided_slice %33 {offsets = [0, 24], sizes = [16, 8], strides = [1, 1]} : vector<32x32xf32> to vector<16x8xf32>
    %cst_47 = arith.constant dense<0.000000e+00> : vector<16x16xf32>
    %105 = tpu.matmul %102, %103, %cst_47 {dimension_numbers = #tpu.dot_dimension_numbers<[1], [1], [0], [0], [0, 0, 1, 0], [], []>} : vector<16x8xf32>, vector<16x8xf32>, vector<16x16xf32> -> vector<16x16xf32>
    %106 = arith.addf %105, %12 : vector<16x16xf32>
    %cst_48 = arith.constant dense<0xFF800000> : vector<16xf32>
    %107 = vector.multi_reduction <maximumf>, %106, %cst_48 [1] : vector<16x16xf32> to vector<16xf32>
    %108 = vector.shape_cast %107 : vector<16xf32> to vector<16x1xf32>
    %109 = vector.broadcast %108 : vector<16x1xf32> to vector<16x16xf32>
    %110 = arith.subf %106, %109 : vector<16x16xf32>
    %111 = math.exp %110 : vector<16x16xf32>
    %cst_49 = arith.constant dense<0.000000e+00> : vector<16xf32>
    %112 = vector.multi_reduction <add>, %111, %cst_49 [1] : vector<16x16xf32> to vector<16xf32>
    %113 = vector.shape_cast %112 : vector<16xf32> to vector<16x1xf32>
    %114 = tpu.reciprocal %113 {approx = true} : vector<16x1xf32> -> vector<16x1xf32>
    %115 = vector.broadcast %114 : vector<16x1xf32> to vector<16x16xf32>
    %116 = arith.mulf %111, %115 : vector<16x16xf32>
    %cst_50 = arith.constant dense<0.000000e+00> : vector<16x8xf32>
    %117 = tpu.matmul %116, %104, %cst_50 {dimension_numbers = #tpu.dot_dimension_numbers<[1], [0], [0], [1], [0, 0, 1, 1], [], []>} : vector<16x16xf32>, vector<16x8xf32>, vector<16x8xf32> -> vector<16x8xf32>
    %118 = vector.extract_strided_slice %35 {offsets = [24, 0], sizes = [8, 32], strides = [1, 1]} : vector<32x32xf32> to vector<8x32xf32>
    %cst_51 = arith.constant dense<0.000000e+00> : vector<16x32xf32>
    %119 = tpu.matmul %117, %118, %cst_51 {dimension_numbers = #tpu.dot_dimension_numbers<[1], [0], [0], [1], [0, 0, 1, 1], [], []>} : vector<16x8xf32>, vector<8x32xf32>, vector<16x32xf32> -> vector<16x32xf32>
    %120 = arith.addf %99, %119 : vector<16x32xf32>
    %c0_52 = arith.constant 0 : index
    %c0_53 = arith.constant 0 : index
    %121 = vector.load %arg22[%c0_52, %c0_53] : memref<32x32xf32, #tpu.memory_space<vmem>>, vector<16x32xf32>
    tpu.vector_store %arg22[%c0_52, %c0_53], %120 {strides = array<i32>} : memref<32x32xf32, #tpu.memory_space<vmem>>, vector<16x32xf32>,
    %cst_54 = arith.constant 0.000000e+00 : f32
    %122 = vector.broadcast %cst_54 : f32 to vector<16x32xf32>
    %123 = vector.extract_strided_slice %19 {offsets = [16, 0], sizes = [16, 8], strides = [1, 1]} : vector<32x32xf32> to vector<16x8xf32>
    %cst_55 = arith.constant 0.353553385 : f32
    %124 = vector.broadcast %cst_55 : f32 to vector<16x8xf32>
    %125 = arith.mulf %123, %124 : vector<16x8xf32>
    %126 = vector.extract_strided_slice %26 {offsets = [16, 0], sizes = [16, 8], strides = [1, 1]} : vector<32x32xf32> to vector<16x8xf32>
    %127 = vector.extract_strided_slice %33 {offsets = [16, 0], sizes = [16, 8], strides = [1, 1]} : vector<32x32xf32> to vector<16x8xf32>
    %cst_56 = arith.constant dense<0.000000e+00> : vector<16x16xf32>
    %128 = tpu.matmul %125, %126, %cst_56 {dimension_numbers = #tpu.dot_dimension_numbers<[1], [1], [0], [0], [0, 0, 1, 0], [], []>} : vector<16x8xf32>, vector<16x8xf32>, vector<16x16xf32> -> vector<16x16xf32>
    %129 = arith.addf %128, %12 : vector<16x16xf32>
    %cst_57 = arith.constant dense<0xFF800000> : vector<16xf32>
    %130 = vector.multi_reduction <maximumf>, %129, %cst_57 [1] : vector<16x16xf32> to vector<16xf32>
    %131 = vector.shape_cast %130 : vector<16xf32> to vector<16x1xf32>
    %132 = vector.broadcast %131 : vector<16x1xf32> to vector<16x16xf32>
    %133 = arith.subf %129, %132 : vector<16x16xf32>
    %134 = math.exp %133 : vector<16x16xf32>
    %cst_58 = arith.constant dense<0.000000e+00> : vector<16xf32>
    %135 = vector.multi_reduction <add>, %134, %cst_58 [1] : vector<16x16xf32> to vector<16xf32>
    %136 = vector.shape_cast %135 : vector<16xf32> to vector<16x1xf32>
    %137 = tpu.reciprocal %136 {approx = true} : vector<16x1xf32> -> vector<16x1xf32>
    %138 = vector.broadcast %137 : vector<16x1xf32> to vector<16x16xf32>
    %139 = arith.mulf %134, %138 : vector<16x16xf32>
    %cst_59 = arith.constant dense<0.000000e+00> : vector<16x8xf32>
    %140 = tpu.matmul %139, %127, %cst_59 {dimension_numbers = #tpu.dot_dimension_numbers<[1], [0], [0], [1], [0, 0, 1, 1], [], []>} : vector<16x16xf32>, vector<16x8xf32>, vector<16x8xf32> -> vector<16x8xf32>
    %141 = vector.extract_strided_slice %35 {offsets = [0, 0], sizes = [8, 32], strides = [1, 1]} : vector<32x32xf32> to vector<8x32xf32>
    %cst_60 = arith.constant dense<0.000000e+00> : vector<16x32xf32>
    %142 = tpu.matmul %140, %141, %cst_60 {dimension_numbers = #tpu.dot_dimension_numbers<[1], [0], [0], [1], [0, 0, 1, 1], [], []>} : vector<16x8xf32>, vector<8x32xf32>, vector<16x32xf32> -> vector<16x32xf32>
    %143 = arith.addf %122, %142 : vector<16x32xf32>
    %144 = vector.extract_strided_slice %19 {offsets = [16, 8], sizes = [16, 8], strides = [1, 1]} : vector<32x32xf32> to vector<16x8xf32>
    %cst_61 = arith.constant 0.353553385 : f32
    %145 = vector.broadcast %cst_61 : f32 to vector<16x8xf32>
    %146 = arith.mulf %144, %145 : vector<16x8xf32>
    %147 = vector.extract_strided_slice %26 {offsets = [16, 8], sizes = [16, 8], strides = [1, 1]} : vector<32x32xf32> to vector<16x8xf32>
    %148 = vector.extract_strided_slice %33 {offsets = [16, 8], sizes = [16, 8], strides = [1, 1]} : vector<32x32xf32> to vector<16x8xf32>
    %cst_62 = arith.constant dense<0.000000e+00> : vector<16x16xf32>
    %149 = tpu.matmul %146, %147, %cst_62 {dimension_numbers = #tpu.dot_dimension_numbers<[1], [1], [0], [0], [0, 0, 1, 0], [], []>} : vector<16x8xf32>, vector<16x8xf32>, vector<16x16xf32> -> vector<16x16xf32>
    %150 = arith.addf %149, %12 : vector<16x16xf32>
    %cst_63 = arith.constant dense<0xFF800000> : vector<16xf32>
    %151 = vector.multi_reduction <maximumf>, %150, %cst_63 [1] : vector<16x16xf32> to vector<16xf32>
    %152 = vector.shape_cast %151 : vector<16xf32> to vector<16x1xf32>
    %153 = vector.broadcast %152 : vector<16x1xf32> to vector<16x16xf32>
    %154 = arith.subf %150, %153 : vector<16x16xf32>
    %155 = math.exp %154 : vector<16x16xf32>
    %cst_64 = arith.constant dense<0.000000e+00> : vector<16xf32>
    %156 = vector.multi_reduction <add>, %155, %cst_64 [1] : vector<16x16xf32> to vector<16xf32>
    %157 = vector.shape_cast %156 : vector<16xf32> to vector<16x1xf32>
    %158 = tpu.reciprocal %157 {approx = true} : vector<16x1xf32> -> vector<16x1xf32>
    %159 = vector.broadcast %158 : vector<16x1xf32> to vector<16x16xf32>
    %160 = arith.mulf %155, %159 : vector<16x16xf32>
    %cst_65 = arith.constant dense<0.000000e+00> : vector<16x8xf32>
    %161 = tpu.matmul %160, %148, %cst_65 {dimension_numbers = #tpu.dot_dimension_numbers<[1], [0], [0], [1], [0, 0, 1, 1], [], []>} : vector<16x16xf32>, vector<16x8xf32>, vector<16x8xf32> -> vector<16x8xf32>
    %162 = vector.extract_strided_slice %35 {offsets = [8, 0], sizes = [8, 32], strides = [1, 1]} : vector<32x32xf32> to vector<8x32xf32>
    %cst_66 = arith.constant dense<0.000000e+00> : vector<16x32xf32>
    %163 = tpu.matmul %161, %162, %cst_66 {dimension_numbers = #tpu.dot_dimension_numbers<[1], [0], [0], [1], [0, 0, 1, 1], [], []>} : vector<16x8xf32>, vector<8x32xf32>, vector<16x32xf32> -> vector<16x32xf32>
    %164 = arith.addf %143, %163 : vector<16x32xf32>
    %165 = vector.extract_strided_slice %19 {offsets = [16, 16], sizes = [16, 8], strides = [1, 1]} : vector<32x32xf32> to vector<16x8xf32>
    %cst_67 = arith.constant 0.353553385 : f32
    %166 = vector.broadcast %cst_67 : f32 to vector<16x8xf32>
    %167 = arith.mulf %165, %166 : vector<16x8xf32>
    %168 = vector.extract_strided_slice %26 {offsets = [16, 16], sizes = [16, 8], strides = [1, 1]} : vector<32x32xf32> to vector<16x8xf32>
    %169 = vector.extract_strided_slice %33 {offsets = [16, 16], sizes = [16, 8], strides = [1, 1]} : vector<32x32xf32> to vector<16x8xf32>
    %cst_68 = arith.constant dense<0.000000e+00> : vector<16x16xf32>
    %170 = tpu.matmul %167, %168, %cst_68 {dimension_numbers = #tpu.dot_dimension_numbers<[1], [1], [0], [0], [0, 0, 1, 0], [], []>} : vector<16x8xf32>, vector<16x8xf32>, vector<16x16xf32> -> vector<16x16xf32>
    %171 = arith.addf %170, %12 : vector<16x16xf32>
    %cst_69 = arith.constant dense<0xFF800000> : vector<16xf32>
    %172 = vector.multi_reduction <maximumf>, %171, %cst_69 [1] : vector<16x16xf32> to vector<16xf32>
    %173 = vector.shape_cast %172 : vector<16xf32> to vector<16x1xf32>
    %174 = vector.broadcast %173 : vector<16x1xf32> to vector<16x16xf32>
    %175 = arith.subf %171, %174 : vector<16x16xf32>
    %176 = math.exp %175 : vector<16x16xf32>
    %cst_70 = arith.constant dense<0.000000e+00> : vector<16xf32>
    %177 = vector.multi_reduction <add>, %176, %cst_70 [1] : vector<16x16xf32> to vector<16xf32>
    %178 = vector.shape_cast %177 : vector<16xf32> to vector<16x1xf32>
    %179 = tpu.reciprocal %178 {approx = true} : vector<16x1xf32> -> vector<16x1xf32>
    %180 = vector.broadcast %179 : vector<16x1xf32> to vector<16x16xf32>
    %181 = arith.mulf %176, %180 : vector<16x16xf32>
    %cst_71 = arith.constant dense<0.000000e+00> : vector<16x8xf32>
    %182 = tpu.matmul %181, %169, %cst_71 {dimension_numbers = #tpu.dot_dimension_numbers<[1], [0], [0], [1], [0, 0, 1, 1], [], []>} : vector<16x16xf32>, vector<16x8xf32>, vector<16x8xf32> -> vector<16x8xf32>
    %183 = vector.extract_strided_slice %35 {offsets = [16, 0], sizes = [8, 32], strides = [1, 1]} : vector<32x32xf32> to vector<8x32xf32>
    %cst_72 = arith.constant dense<0.000000e+00> : vector<16x32xf32>
    %184 = tpu.matmul %182, %183, %cst_72 {dimension_numbers = #tpu.dot_dimension_numbers<[1], [0], [0], [1], [0, 0, 1, 1], [], []>} : vector<16x8xf32>, vector<8x32xf32>, vector<16x32xf32> -> vector<16x32xf32>
    %185 = arith.addf %164, %184 : vector<16x32xf32>
    %186 = vector.extract_strided_slice %19 {offsets = [16, 24], sizes = [16, 8], strides = [1, 1]} : vector<32x32xf32> to vector<16x8xf32>
    %cst_73 = arith.constant 0.353553385 : f32
    %187 = vector.broadcast %cst_73 : f32 to vector<16x8xf32>
    %188 = arith.mulf %186, %187 : vector<16x8xf32>
    %189 = vector.extract_strided_slice %26 {offsets = [16, 24], sizes = [16, 8], strides = [1, 1]} : vector<32x32xf32> to vector<16x8xf32>
    %190 = vector.extract_strided_slice %33 {offsets = [16, 24], sizes = [16, 8], strides = [1, 1]} : vector<32x32xf32> to vector<16x8xf32>
    %cst_74 = arith.constant dense<0.000000e+00> : vector<16x16xf32>
    %191 = tpu.matmul %188, %189, %cst_74 {dimension_numbers = #tpu.dot_dimension_numbers<[1], [1], [0], [0], [0, 0, 1, 0], [], []>} : vector<16x8xf32>, vector<16x8xf32>, vector<16x16xf32> -> vector<16x16xf32>
    %192 = arith.addf %191, %12 : vector<16x16xf32>
    %cst_75 = arith.constant dense<0xFF800000> : vector<16xf32>
    %193 = vector.multi_reduction <maximumf>, %192, %cst_75 [1] : vector<16x16xf32> to vector<16xf32>
    %194 = vector.shape_cast %193 : vector<16xf32> to vector<16x1xf32>
    %195 = vector.broadcast %194 : vector<16x1xf32> to vector<16x16xf32>
    %196 = arith.subf %192, %195 : vector<16x16xf32>
    %197 = math.exp %196 : vector<16x16xf32>
    %cst_76 = arith.constant dense<0.000000e+00> : vector<16xf32>
    %198 = vector.multi_reduction <add>, %197, %cst_76 [1] : vector<16x16xf32> to vector<16xf32>
    %199 = vector.shape_cast %198 : vector<16xf32> to vector<16x1xf32>
    %200 = tpu.reciprocal %199 {approx = true} : vector<16x1xf32> -> vector<16x1xf32>
    %201 = vector.broadcast %200 : vector<16x1xf32> to vector<16x16xf32>
    %202 = arith.mulf %197, %201 : vector<16x16xf32>
    %cst_77 = arith.constant dense<0.000000e+00> : vector<16x8xf32>
    %203 = tpu.matmul %202, %190, %cst_77 {dimension_numbers = #tpu.dot_dimension_numbers<[1], [0], [0], [1], [0, 0, 1, 1], [], []>} : vector<16x16xf32>, vector<16x8xf32>, vector<16x8xf32> -> vector<16x8xf32>
    %204 = vector.extract_strided_slice %35 {offsets = [24, 0], sizes = [8, 32], strides = [1, 1]} : vector<32x32xf32> to vector<8x32xf32>
    %cst_78 = arith.constant dense<0.000000e+00> : vector<16x32xf32>
    %205 = tpu.matmul %203, %204, %cst_78 {dimension_numbers = #tpu.dot_dimension_numbers<[1], [0], [0], [1], [0, 0, 1, 1], [], []>} : vector<16x8xf32>, vector<8x32xf32>, vector<16x32xf32> -> vector<16x32xf32>
    %206 = arith.addf %185, %205 : vector<16x32xf32>
    %c16 = arith.constant 16 : index
    %c0_79 = arith.constant 0 : index
    %207 = vector.load %arg22[%c16, %c0_79] : memref<32x32xf32, #tpu.memory_space<vmem>>, vector<16x32xf32>
    tpu.vector_store %arg22[%c16, %c0_79], %206 {strides = array<i32>} : memref<32x32xf32, #tpu.memory_space<vmem>>, vector<16x32xf32>,
    %c0_80 = arith.constant 0 : index
    %c0_81 = arith.constant 0 : index
    %208 = vector.load %arg22[%c0_80, %c0_81] : memref<32x32xf32, #tpu.memory_space<vmem>>, vector<32x32xf32>
    %c0_82 = arith.constant 0 : index
    %c0_83 = arith.constant 0 : index
    %c0_84 = arith.constant 0 : index
    %209 = vector.load %arg9[%c0_82, %c0_83, %c0_84] : memref<1x1x32xf32, #tpu.memory_space<vmem>>, vector<1x1x32xf32>
    %210 = vector.shape_cast %209 : vector<1x1x32xf32> to vector<1x32xf32>
    %211 = vector.broadcast %210 : vector<1x32xf32> to vector<32x32xf32>
    %212 = arith.addf %208, %211 : vector<32x32xf32>
    %213 = arith.addf %3, %212 : vector<32x32xf32>
    %cst_85 = arith.constant dense<0.000000e+00> : vector<32xf32>
    %214 = vector.multi_reduction <add>, %213, %cst_85 [1] : vector<32x32xf32> to vector<32xf32>
    %215 = vector.shape_cast %214 : vector<32xf32> to vector<32x1xf32>
    %cst_86 = arith.constant 3.200000e+01 : f32
    %216 = vector.broadcast %cst_86 : f32 to vector<32x1xf32>
    %217 = arith.divf %215, %216 : vector<32x1xf32>
    %218 = vector.broadcast %217 : vector<32x1xf32> to vector<32x32xf32>
    %219 = arith.subf %213, %218 : vector<32x32xf32>
    %220 = arith.mulf %219, %219 : vector<32x32xf32>
    %cst_87 = arith.constant dense<0.000000e+00> : vector<32xf32>
    %221 = vector.multi_reduction <add>, %220, %cst_87 [1] : vector<32x32xf32> to vector<32xf32>
    %222 = vector.shape_cast %221 : vector<32xf32> to vector<32x1xf32>
    %cst_88 = arith.constant 3.200000e+01 : f32
    %223 = vector.broadcast %cst_88 : f32 to vector<32x1xf32>
    %224 = arith.divf %222, %223 : vector<32x1xf32>
    %225 = vector.broadcast %217 : vector<32x1xf32> to vector<32x32xf32>
    %226 = arith.subf %213, %225 : vector<32x32xf32>
    %cst_89 = arith.constant 9.99999974E-6 : f32
    %227 = vector.broadcast %cst_89 : f32 to vector<32x1xf32>
    %228 = arith.addf %224, %227 : vector<32x1xf32>
    %229 = math.rsqrt %228 : vector<32x1xf32>
    %230 = vector.broadcast %229 : vector<32x1xf32> to vector<32x32xf32>
    %231 = arith.mulf %226, %230 : vector<32x32xf32>
    %c0_90 = arith.constant 0 : index
    %c0_91 = arith.constant 0 : index
    %c0_92 = arith.constant 0 : index
    %232 = vector.load %arg10[%c0_90, %c0_91, %c0_92] : memref<1x1x32xf32, #tpu.memory_space<vmem>>, vector<1x1x32xf32>
    %233 = vector.shape_cast %232 : vector<1x1x32xf32> to vector<1x32xf32>
    %234 = vector.broadcast %233 : vector<1x32xf32> to vector<32x32xf32>
    %235 = arith.mulf %231, %234 : vector<32x32xf32>
    %c0_93 = arith.constant 0 : index
    %c0_94 = arith.constant 0 : index
    %c0_95 = arith.constant 0 : index
    %236 = vector.load %arg11[%c0_93, %c0_94, %c0_95] : memref<1x1x32xf32, #tpu.memory_space<vmem>>, vector<1x1x32xf32>
    %237 = vector.shape_cast %236 : vector<1x1x32xf32> to vector<1x32xf32>
    %238 = vector.broadcast %237 : vector<1x32xf32> to vector<32x32xf32>
    %239 = arith.addf %235, %238 : vector<32x32xf32>
    %c0_96 = arith.constant 0 : index
    %c0_97 = arith.constant 0 : index
    %c0_98 = arith.constant 0 : index
    %240 = vector.load %arg12[%c0_96, %c0_97, %c0_98] : memref<1x32x64xf32, #tpu.memory_space<vmem>>, vector<1x32x64xf32>
    %241 = vector.shape_cast %240 : vector<1x32x64xf32> to vector<32x64xf32>
    %cst_99 = arith.constant dense<0.000000e+00> : vector<32x64xf32>
    %242 = tpu.matmul %239, %241, %cst_99 {dimension_numbers = #tpu.dot_dimension_numbers<[1], [0], [0], [1], [0, 0, 1, 1], [], []>} : vector<32x32xf32>, vector<32x64xf32>, vector<32x64xf32> -> vector<32x64xf32>
    %c0_100 = arith.constant 0 : index
    %c0_101 = arith.constant 0 : index
    %c0_102 = arith.constant 0 : index
    %243 = vector.load %arg13[%c0_100, %c0_101, %c0_102] : memref<1x1x64xf32, #tpu.memory_space<vmem>>, vector<1x1x64xf32>
    %244 = vector.shape_cast %243 : vector<1x1x64xf32> to vector<1x64xf32>
    %245 = vector.broadcast %244 : vector<1x64xf32> to vector<32x64xf32>
    %246 = arith.addf %242, %245 : vector<32x64xf32>
    %cst_103 = arith.constant 0.000000e+00 : f32
    %247 = vector.broadcast %cst_103 : f32 to vector<32x64xf32>
    %248 = arith.maximumf %246, %247 : vector<32x64xf32>
    %c0_104 = arith.constant 0 : index
    %c0_105 = arith.constant 0 : index
    %c0_106 = arith.constant 0 : index
    %249 = vector.load %arg14[%c0_104, %c0_105, %c0_106] : memref<1x64x32xf32, #tpu.memory_space<vmem>>, vector<1x64x32xf32>
    %250 = vector.shape_cast %249 : vector<1x64x32xf32> to vector<64x32xf32>
    %cst_107 = arith.constant dense<0.000000e+00> : vector<32x32xf32>
    %251 = tpu.matmul %248, %250, %cst_107 {dimension_numbers = #tpu.dot_dimension_numbers<[1], [0], [0], [1], [0, 0, 1, 1], [], []>} : vector<32x64xf32>, vector<64x32xf32>, vector<32x32xf32> -> vector<32x32xf32>
    %c0_108 = arith.constant 0 : index
    %c0_109 = arith.constant 0 : index
    %c0_110 = arith.constant 0 : index
    %252 = vector.load %arg15[%c0_108, %c0_109, %c0_110] : memref<1x1x32xf32, #tpu.memory_space<vmem>>, vector<1x1x32xf32>
    %253 = vector.shape_cast %252 : vector<1x1x32xf32> to vector<1x32xf32>
    %254 = vector.broadcast %253 : vector<1x32xf32> to vector<32x32xf32>
    %255 = arith.addf %251, %254 : vector<32x32xf32>
    %256 = arith.addf %239, %255 : vector<32x32xf32>
    %cst_111 = arith.constant dense<0.000000e+00> : vector<32xf32>
    %257 = vector.multi_reduction <add>, %256, %cst_111 [1] : vector<32x32xf32> to vector<32xf32>
    %258 = vector.shape_cast %257 : vector<32xf32> to vector<32x1xf32>
    %cst_112 = arith.constant 3.200000e+01 : f32
    %259 = vector.broadcast %cst_112 : f32 to vector<32x1xf32>
    %260 = arith.divf %258, %259 : vector<32x1xf32>
    %261 = vector.broadcast %260 : vector<32x1xf32> to vector<32x32xf32>
    %262 = arith.subf %256, %261 : vector<32x32xf32>
    %263 = arith.mulf %262, %262 : vector<32x32xf32>
    %cst_113 = arith.constant dense<0.000000e+00> : vector<32xf32>
    %264 = vector.multi_reduction <add>, %263, %cst_113 [1] : vector<32x32xf32> to vector<32xf32>
    %265 = vector.shape_cast %264 : vector<32xf32> to vector<32x1xf32>
    %cst_114 = arith.constant 3.200000e+01 : f32
    %266 = vector.broadcast %cst_114 : f32 to vector<32x1xf32>
    %267 = arith.divf %265, %266 : vector<32x1xf32>
    %268 = vector.broadcast %260 : vector<32x1xf32> to vector<32x32xf32>
    %269 = arith.subf %256, %268 : vector<32x32xf32>
    %cst_115 = arith.constant 9.99999974E-6 : f32
    %270 = vector.broadcast %cst_115 : f32 to vector<32x1xf32>
    %271 = arith.addf %267, %270 : vector<32x1xf32>
    %272 = math.rsqrt %271 : vector<32x1xf32>
    %273 = vector.broadcast %272 : vector<32x1xf32> to vector<32x32xf32>
    %274 = arith.mulf %269, %273 : vector<32x32xf32>
    %c0_116 = arith.constant 0 : index
    %c0_117 = arith.constant 0 : index
    %c0_118 = arith.constant 0 : index
    %275 = vector.load %arg16[%c0_116, %c0_117, %c0_118] : memref<1x1x32xf32, #tpu.memory_space<vmem>>, vector<1x1x32xf32>
    %276 = vector.shape_cast %275 : vector<1x1x32xf32> to vector<1x32xf32>
    %277 = vector.broadcast %276 : vector<1x32xf32> to vector<32x32xf32>
    %278 = arith.mulf %274, %277 : vector<32x32xf32>
    %c0_119 = arith.constant 0 : index
    %c0_120 = arith.constant 0 : index
    %c0_121 = arith.constant 0 : index
    %279 = vector.load %arg17[%c0_119, %c0_120, %c0_121] : memref<1x1x32xf32, #tpu.memory_space<vmem>>, vector<1x1x32xf32>
    %280 = vector.shape_cast %279 : vector<1x1x32xf32> to vector<1x32xf32>
    %281 = vector.broadcast %280 : vector<1x32xf32> to vector<32x32xf32>
    %282 = arith.addf %278, %281 : vector<32x32xf32>
    %c0_122 = arith.constant 0 : index
    %c0_123 = arith.constant 0 : index
    %283 = vector.load %arg21[%c0_122, %c0_123] : memref<32x32xf32, #tpu.memory_space<vmem>>, vector<32x32xf32>
    tpu.vector_store %arg21[%c0_122, %c0_123], %282 {strides = array<i32>} : memref<32x32xf32, #tpu.memory_space<vmem>>, vector<32x32xf32>,
    %c1_i32 = arith.constant 1 : i32
    %284 = arith.cmpi eq, %arg0, %c1_i32 : i32
    %285 = arith.extui %284 : i1 to i32
    %c0_i32_124 = arith.constant 0 : i32
    %286 = arith.cmpi ne, %285, %c0_i32_124 : i32
    scf.if %286 {
      %c0_125 = arith.constant 0 : index
      %c0_126 = arith.constant 0 : index
      %287 = vector.load %arg18[%c0_125, %c0_126] : memref<32x128xf32, #tpu.memory_space<vmem>>, vector<32x128xf32>
      %cst_127 = arith.constant dense<0.000000e+00> : vector<32x128xf32>
      %288 = tpu.matmul %282, %287, %cst_127 {dimension_numbers = #tpu.dot_dimension_numbers<[1], [0], [0], [1], [0, 0, 1, 1], [], []>} : vector<32x32xf32>, vector<32x128xf32>, vector<32x128xf32> -> vector<32x128xf32>
      %c0_128 = arith.constant 0 : index
      %c0_129 = arith.constant 0 : index
      %289 = vector.load %arg19[%c0_128, %c0_129] : memref<1x128xf32, #tpu.memory_space<vmem>>, vector<1x128xf32>
      %290 = vector.broadcast %289 : vector<1x128xf32> to vector<32x128xf32>
      %291 = arith.addf %288, %290 : vector<32x128xf32>
      %c0_130 = arith.constant 0 : index
      %c0_131 = arith.constant 0 : index
      %292 = vector.load %arg20[%c0_130, %c0_131] : memref<32x128xf32, #tpu.memory_space<vmem>>, vector<32x128xf32>
      tpu.vector_store %arg20[%c0_130, %c0_131], %291 {strides = array<i32>} : memref<32x128xf32, #tpu.memory_space<vmem>>, vector<32x128xf32>,
    } else {
    }
    return
  }
  func.func @transform_0(%arg0: i32) -> (i32, i32) {
    %c0_i32 = arith.constant 0 : i32
    %c0_i32_0 = arith.constant 0 : i32
    %c0_i32_1 = arith.constant 0 : i32
    return %c0_i32, %c0_i32_0 : i32, i32
  }
  func.func @transform_1(%arg0: i32) -> (i32, i32, i32) {
    %c0_i32 = arith.constant 0 : i32
    %c0_i32_0 = arith.constant 0 : i32
    %c0_i32_1 = arith.constant 0 : i32
    return %arg0, %c0_i32, %c0_i32_0 : i32, i32, i32
  }
  func.func @transform_2(%arg0: i32) -> (i32, i32, i32) {
    %c0_i32 = arith.constant 0 : i32
    %c0_i32_0 = arith.constant 0 : i32
    %c0_i32_1 = arith.constant 0 : i32
    return %arg0, %c0_i32, %c0_i32_0 : i32, i32, i32
  }
  func.func @transform_3(%arg0: i32) -> (i32, i32, i32) {
    %c0_i32 = arith.constant 0 : i32
    %c0_i32_0 = arith.constant 0 : i32
    %c0_i32_1 = arith.constant 0 : i32
    return %arg0, %c0_i32, %c0_i32_0 : i32, i32, i32
  }
  func.func @transform_4(%arg0: i32) -> (i32, i32, i32) {
    %c0_i32 = arith.constant 0 : i32
    %c0_i32_0 = arith.constant 0 : i32
    %c0_i32_1 = arith.constant 0 : i32
    return %arg0, %c0_i32, %c0_i32_0 : i32, i32, i32
  }
  func.func @transform_5(%arg0: i32) -> (i32, i32, i32) {
    %c0_i32 = arith.constant 0 : i32
    %c0_i32_0 = arith.constant 0 : i32
    %c0_i32_1 = arith.constant 0 : i32
    return %arg0, %c0_i32, %c0_i32_0 : i32, i32, i32
  }
  func.func @transform_6(%arg0: i32) -> (i32, i32, i32) {
    %c0_i32 = arith.constant 0 : i32
    %c0_i32_0 = arith.constant 0 : i32
    %c0_i32_1 = arith.constant 0 : i32
    return %arg0, %c0_i32, %c0_i32_0 : i32, i32, i32
  }
  func.func @transform_7(%arg0: i32) -> (i32, i32, i32) {
    %c0_i32 = arith.constant 0 : i32
    %c0_i32_0 = arith.constant 0 : i32
    %c0_i32_1 = arith.constant 0 : i32
    return %arg0, %c0_i32, %c0_i32_0 : i32, i32, i32
  }
  func.func @transform_8(%arg0: i32) -> (i32, i32, i32) {
    %c0_i32 = arith.constant 0 : i32
    %c0_i32_0 = arith.constant 0 : i32
    %c0_i32_1 = arith.constant 0 : i32
    return %arg0, %c0_i32, %c0_i32_0 : i32, i32, i32
  }
  func.func @transform_9(%arg0: i32) -> (i32, i32, i32) {
    %c0_i32 = arith.constant 0 : i32
    %c0_i32_0 = arith.constant 0 : i32
    %c0_i32_1 = arith.constant 0 : i32
    return %arg0, %c0_i32, %c0_i32_0 : i32, i32, i32
  }
  func.func @transform_10(%arg0: i32) -> (i32, i32, i32) {
    %c0_i32 = arith.constant 0 : i32
    %c0_i32_0 = arith.constant 0 : i32
    %c0_i32_1 = arith.constant 0 : i32
    return %arg0, %c0_i32, %c0_i32_0 : i32, i32, i32
  }
  func.func @transform_11(%arg0: i32) -> (i32, i32, i32) {
    %c0_i32 = arith.constant 0 : i32
    %c0_i32_0 = arith.constant 0 : i32
    %c0_i32_1 = arith.constant 0 : i32
    return %arg0, %c0_i32, %c0_i32_0 : i32, i32, i32
  }
  func.func @transform_12(%arg0: i32) -> (i32, i32, i32) {
    %c0_i32 = arith.constant 0 : i32
    %c0_i32_0 = arith.constant 0 : i32
    %c0_i32_1 = arith.constant 0 : i32
    return %arg0, %c0_i32, %c0_i32_0 : i32, i32, i32
  }
  func.func @transform_13(%arg0: i32) -> (i32, i32, i32) {
    %c0_i32 = arith.constant 0 : i32
    %c0_i32_0 = arith.constant 0 : i32
    %c0_i32_1 = arith.constant 0 : i32
    return %arg0, %c0_i32, %c0_i32_0 : i32, i32, i32
  }
  func.func @transform_14(%arg0: i32) -> (i32, i32, i32) {
    %c0_i32 = arith.constant 0 : i32
    %c0_i32_0 = arith.constant 0 : i32
    %c0_i32_1 = arith.constant 0 : i32
    return %arg0, %c0_i32, %c0_i32_0 : i32, i32, i32
  }
  func.func @transform_15(%arg0: i32) -> (i32, i32, i32) {
    %c0_i32 = arith.constant 0 : i32
    %c0_i32_0 = arith.constant 0 : i32
    %c0_i32_1 = arith.constant 0 : i32
    return %arg0, %c0_i32, %c0_i32_0 : i32, i32, i32
  }
  func.func @transform_16(%arg0: i32) -> (i32, i32, i32) {
    %c0_i32 = arith.constant 0 : i32
    %c0_i32_0 = arith.constant 0 : i32
    %c0_i32_1 = arith.constant 0 : i32
    return %arg0, %c0_i32, %c0_i32_0 : i32, i32, i32
  }
  func.func @transform_17(%arg0: i32) -> (i32, i32) {
    %c0_i32 = arith.constant 0 : i32
    %c0_i32_0 = arith.constant 0 : i32
    %c0_i32_1 = arith.constant 0 : i32
    return %c0_i32, %c0_i32_0 : i32, i32
  }
  func.func @transform_18(%arg0: i32) -> (i32, i32) {
    %c0_i32 = arith.constant 0 : i32
    %c0_i32_0 = arith.constant 0 : i32
    %c0_i32_1 = arith.constant 0 : i32
    return %c0_i32, %c0_i32_0 : i32, i32
  }
  func.func @transform_19(%arg0: i32) -> (i32, i32) {
    %c0_i32 = arith.constant 0 : i32
    %c0_i32_0 = arith.constant 0 : i32
    %c0_i32_1 = arith.constant 0 : i32
    return %c0_i32, %c0_i32_0 : i32, i32
  }
}

</mosaic_0001>

<llo_original>
// kernel: tpu_custom_call.1
$region0: #{tpu_custom_call.1}
  #allocation0 [shape = 'u32[]', space=smem, size = 0x4, offset = 0x4, fixed_abs, tag = 'smem constant byte address 0x4 - core index']
  #allocation1 [shape = 'u32[144,128]{1,0:T(1,128)}', space=vmem, size = 0x12000, scoped, tag = 'internal scratch']
  #allocation2 [shape = 'f32[32,32]{1,0:T(8,128)}', space=vmem, size = 0x4000, scoped, tag = 'scratch operand']
  #allocation3 [shape = 'f32[32,32]{1,0:T(8,128)}', space=vmem, size = 0x4000, scoped, tag = 'scratch operand']
  %s0 = inlined_call_operand.hbm [shape: f32[32,32], index: 0, kind: input, shape index: {}]
  %s1 = inlined_call_operand.vmem [shape: f32[2,32,32], index: 1, kind: input, shape index: {}]
  %s2 = inlined_call_operand.vmem [shape: f32[2,32,32], index: 2, kind: input, shape index: {}]
  %s3 = inlined_call_operand.vmem [shape: f32[2,32,32], index: 3, kind: input, shape index: {}]
  %s4 = inlined_call_operand.vmem [shape: f32[2,1,32], index: 4, kind: input, shape index: {}]
  %s5 = inlined_call_operand.vmem [shape: f32[2,1,32], index: 5, kind: input, shape index: {}]
  %s6 = inlined_call_operand.vmem [shape: f32[2,1,32], index: 6, kind: input, shape index: {}]
  %s7 = inlined_call_operand.hbm [shape: f32[2,32,32], index: 7, kind: input, shape index: {}]
  %s8 = inlined_call_operand.vmem [shape: f32[2,1,32], index: 8, kind: input, shape index: {}]
  %s9 = inlined_call_operand.vmem [shape: f32[2,1,32], index: 9, kind: input, shape index: {}]
  %s10 = inlined_call_operand.vmem [shape: f32[2,1,32], index: 10, kind: input, shape index: {}]
  %s11 = inlined_call_operand.hbm [shape: f32[2,32,64], index: 11, kind: input, shape index: {}]
  %s12 = inlined_call_operand.vmem [shape: f32[2,1,64], index: 12, kind: input, shape index: {}]
  %s13 = inlined_call_operand.vmem [shape: f32[2,64,32], index: 13, kind: input, shape index: {}]
  %s14 = inlined_call_operand.vmem [shape: f32[2,1,32], index: 14, kind: input, shape index: {}]
  %s15 = inlined_call_operand.vmem [shape: f32[2,1,32], index: 15, kind: input, shape index: {}]
  %s16 = inlined_call_operand.vmem [shape: f32[2,1,32], index: 16, kind: input, shape index: {}]
  %s17 = inlined_call_operand.hbm [shape: f32[32,128], index: 17, kind: input, shape index: {}]
  %s18 = inlined_call_operand.vmem [shape: f32[1,128], index: 18, kind: input, shape index: {}]
  %s19 = inlined_call_operand.hbm [shape: f32[32,128], index: 19, kind: output, shape index: {}]
  %s20 = sld [smem:[#allocation0]]
  $region133: #{tpu_custom_call.1} parent=0
    _
  %s22 = ssub.s32 1, %s20
  %s23 = scalar_select 0, %s22, %s20
  $region1: #{tpu_custom_call.1} parent=0
    #allocation4 [shape = 'u8[16384]{0}', space=vmem, size = 0x4000, scoped, tag = 'input window, operand 0, single buffered']
    #allocation5 [shape = 's32[2]{0}', space=sflag, size = 0x8, scoped, tag = 'scoped memory for tpu_custom_call.1']
    #allocation6 [shape = 's32[2]{0}', space=sflag, size = 0x8, scoped, tag = 'scoped memory for tpu_custom_call.1']
    #allocation7 [shape = 'u8[32768]{0}', space=vmem, size = 0x8000, scoped, tag = 'input window, operand 7']
    #allocation8 [shape = 's32[2]{0}', space=sflag, size = 0x8, scoped, tag = 'scoped memory for tpu_custom_call.1']
    #allocation9 [shape = 'u8[32768]{0}', space=vmem, size = 0x8000, scoped, tag = 'input window, operand 11']
    #allocation10 [shape = 'u8[16384]{0}', space=vmem, size = 0x4000, scoped, tag = 'input window, operand 17, single buffered']
    #allocation11 [shape = 's32[1]{0}', space=sflag, size = 0x4, scoped, tag = 'scoped memory for tpu_custom_call.1']
    #allocation12 [shape = 'u8[16384]{0}', space=vmem, size = 0x4000, scoped, tag = 'output window, operand 0, single buffered']
    %24 = vsyncpa [#allocation5], 0
    %25 = vsyncpa [#allocation8], 0
    %s26 = scalar_lea.sflag [#allocation8], 1
    %27 = vsyncpa %s26, 0
    %28 = vsyncpa [#allocation11], 0
    %29 = vsyncpa [#allocation6], 0
    loop: start=0, step=1, limit=4
    $region2: #{tpu_custom_call.1} parent=1 // loop_pre_header
      _
    $region3: #{tpu_custom_call.1} parent=1 // loop_header
      %s31 = sphi 0, %s35
      %p32 = scmp.ge.s32.totalorder %s31, 4
      %s39 = sphi 0, %s39
      %s41 = sphi 0, %s39
      %s42 = sphi 0, %s41
      %s56 = sphi 0, %s42
      %s62 = sphi 0, %s64
      %s65 = sphi 0, %s62
      %s66 = sphi 0, %s65
      %s82 = sphi 0, %s66
      %s88 = sphi 0, %s90
      %s91 = sphi 0, %s88
      %s92 = sphi 0, %s91
      %s108 = sphi 0, %s92
      %s114 = sphi 0, %s116
      %s117 = sphi 0, %s114
      %s118 = sphi 0, %s117
      %s134 = sphi 0, %s118
      %s140 = sphi 0, %s142
      %s143 = sphi 0, %s140
      %s144 = sphi 0, %s143
      %s160 = sphi 0, %s144
      %s166 = sphi 0, %s168
      %s169 = sphi 0, %s166
      %s170 = sphi 0, %s169
      %s186 = sphi 0, %s170
      %s192 = sphi 0, %s194
      %s195 = sphi 0, %s192
      %s196 = sphi 0, %s195
      %s212 = sphi 0, %s196
      %s218 = sphi 0, %s220
      %s221 = sphi 0, %s218
      %s222 = sphi 0, %s221
      %s238 = sphi 0, %s222
      %s244 = sphi 0, %s246
      %s247 = sphi 0, %s244
      %s248 = sphi 0, %s247
      %s264 = sphi 0, %s248
      %s270 = sphi 0, %s272
      %s273 = sphi 0, %s270
      %s274 = sphi 0, %s273
      %s290 = sphi 0, %s274
      %s296 = sphi 0, %s298
      %s299 = sphi 0, %s296
      %s300 = sphi 0, %s299
      %s316 = sphi 0, %s300
      %s322 = sphi 0, %s324
      %s325 = sphi 0, %s322
      %s326 = sphi 0, %s325
      %s342 = sphi 0, %s326
      %s348 = sphi 0, %s350
      %s351 = sphi 0, %s348
      %s352 = sphi 0, %s351
      %s368 = sphi 0, %s352
      %s374 = sphi 0, %s376
      %s377 = sphi 0, %s374
      %s378 = sphi 0, %s377
      %s394 = sphi 0, %s378
      %s400 = sphi 0, %s402
      %s403 = sphi 0, %s400
      %s404 = sphi 0, %s403
      %s420 = sphi 0, %s404
      %s426 = sphi 0, %s428
      %s429 = sphi 0, %s426
      %s430 = sphi 0, %s429
      %s446 = sphi 0, %s430
      %s452 = sphi 0, %s454
      %s455 = sphi 0, %s452
      %s456 = sphi 0, %s455
      %s472 = sphi 0, %s456
      %s476 = sphi 0, %s476
      %s478 = sphi 0, %s476
      %s479 = sphi 0, %s478
      %s493 = sphi 0, %s479
      %s497 = sphi 0, %s497
      %s499 = sphi 0, %s497
      %s500 = sphi 0, %s499
      %s514 = sphi 0, %s500
      %s518 = sphi 0, %s518
      %s520 = sphi 0, %s518
      %s521 = sphi 0, %s520
      %s535 = sphi 0, %s521
    $region4: #{tpu_custom_call.1} parent=1 // loop_header_branch
      %34 = sbr.rel (%p32) target = $region8
    $region5: #{tpu_custom_call.1} parent=1 // loop_body
      %s36 = ssub.s32 %s31, 1
      %s37 = ssub.s32 %s31, 2
      %s38 = sadd.s32 %s31, 1
      %s40 = sadd.s32 %s39, 1
      %p43 = scmp.eq.s32.totalorder %s31, 1
      %p44 = scmp.ne.s32.totalorder %s39, %s41
      %p45 = scmp.eq.s32.totalorder %s31, 0
      %p46 = por %p44, %p45
      %p47 = scmp.ne.s32.totalorder %s39, %s41
      %p48 = scmp.eq.s32.totalorder %s36, 1
      %p49 = por %p47, %p48
      %p50 = scmp.ne.s32.totalorder %s41, %s42
      %p51 = scmp.eq.s32.totalorder %s36, 0
      %p52 = por %p50, %p51
      %p53 = scmp.ne.s32.totalorder %s41, %s42
      %p54 = scmp.eq.s32.totalorder %s37, 1
      %p55 = por %p53, %p54
      %p57 = scmp.ne.s32.totalorder %s42, %s56
      %p58 = scmp.eq.s32.totalorder %s37, 0
      %p59 = por %p57, %p58
      %s60 = ssub.s32 %s31, %s38
      %p61 = scmp.eq.s32.totalorder %s60, 0
      %s63 = sadd.s32 %s62, 1
      %s64 = scalar_select %p61, %s62, %s63
      %p67 = pneg %p61
      %p68 = scmp.eq.s32.totalorder %s31, 1
      %p69 = por %p67, %p68
      %p70 = scmp.ne.s32.totalorder %s62, %s65
      %p71 = scmp.eq.s32.totalorder %s31, 0
      %p72 = por %p70, %p71
      %p73 = scmp.ne.s32.totalorder %s62, %s65
      %p74 = scmp.eq.s32.totalorder %s36, 1
      %p75 = por %p73, %p74
      %p76 = scmp.ne.s32.totalorder %s65, %s66
      %p77 = scmp.eq.s32.totalorder %s36, 0
      %p78 = por %p76, %p77
      %p79 = scmp.ne.s32.totalorder %s65, %s66
      %p80 = scmp.eq.s32.totalorder %s37, 1
      %p81 = por %p79, %p80
      %p83 = scmp.ne.s32.totalorder %s66, %s82
      %p84 = scmp.eq.s32.totalorder %s37, 0
      %p85 = por %p83, %p84
      %s86 = ssub.s32 %s31, %s38
      %p87 = scmp.eq.s32.totalorder %s86, 0
      %s89 = sadd.s32 %s88, 1
      %s90 = scalar_select %p87, %s88, %s89
      %p93 = pneg %p87
      %p94 = scmp.eq.s32.totalorder %s31, 1
      %p95 = por %p93, %p94
      %p96 = scmp.ne.s32.totalorder %s88, %s91
      %p97 = scmp.eq.s32.totalorder %s31, 0
      %p98 = por %p96, %p97
      %p99 = scmp.ne.s32.totalorder %s88, %s91
      %p100 = scmp.eq.s32.totalorder %s36, 1
      %p101 = por %p99, %p100
      %p102 = scmp.ne.s32.totalorder %s91, %s92
      %p103 = scmp.eq.s32.totalorder %s36, 0
      %p104 = por %p102, %p103
      %p105 = scmp.ne.s32.totalorder %s91, %s92
      %p106 = scmp.eq.s32.totalorder %s37, 1
      %p107 = por %p105, %p106
      %p109 = scmp.ne.s32.totalorder %s92, %s108
      %p110 = scmp.eq.s32.totalorder %s37, 0
      %p111 = por %p109, %p110
      %s112 = ssub.s32 %s31, %s38
      %p113 = scmp.eq.s32.totalorder %s112, 0
      %s115 = sadd.s32 %s114, 1
      %s116 = scalar_select %p113, %s114, %s115
      %p119 = pneg %p113
      %p120 = scmp.eq.s32.totalorder %s31, 1
      %p121 = por %p119, %p120
      %p122 = scmp.ne.s32.totalorder %s114, %s117
      %p123 = scmp.eq.s32.totalorder %s31, 0
      %p124 = por %p122, %p123
      %p125 = scmp.ne.s32.totalorder %s114, %s117
      %p126 = scmp.eq.s32.totalorder %s36, 1
      %p127 = por %p125, %p126
      %p128 = scmp.ne.s32.totalorder %s117, %s118
      %p129 = scmp.eq.s32.totalorder %s36, 0
      %p130 = por %p128, %p129
      %p131 = scmp.ne.s32.totalorder %s117, %s118
      %p132 = scmp.eq.s32.totalorder %s37, 1
      %p133 = por %p131, %p132
      %p135 = scmp.ne.s32.totalorder %s118, %s134
      %p136 = scmp.eq.s32.totalorder %s37, 0
      %p137 = por %p135, %p136
      %s138 = ssub.s32 %s31, %s38
      %p139 = scmp.eq.s32.totalorder %s138, 0
      %s141 = sadd.s32 %s140, 1
      %s142 = scalar_select %p139, %s140, %s141
      %p145 = pneg %p139
      %p146 = scmp.eq.s32.totalorder %s31, 1
      %p147 = por %p145, %p146
      %p148 = scmp.ne.s32.totalorder %s140, %s143
      %p149 = scmp.eq.s32.totalorder %s31, 0
      %p150 = por %p148, %p149
      %p151 = scmp.ne.s32.totalorder %s140, %s143
      %p152 = scmp.eq.s32.totalorder %s36, 1
      %p153 = por %p151, %p152
      %p154 = scmp.ne.s32.totalorder %s143, %s144
      %p155 = scmp.eq.s32.totalorder %s36, 0
      %p156 = por %p154, %p155
      %p157 = scmp.ne.s32.totalorder %s143, %s144
      %p158 = scmp.eq.s32.totalorder %s37, 1
      %p159 = por %p157, %p158
      %p161 = scmp.ne.s32.totalorder %s144, %s160
      %p162 = scmp.eq.s32.totalorder %s37, 0
      %p163 = por %p161, %p162
      %s164 = ssub.s32 %s31, %s38
      %p165 = scmp.eq.s32.totalorder %s164, 0
      %s167 = sadd.s32 %s166, 1
      %s168 = scalar_select %p165, %s166, %s167
      %p171 = pneg %p165
      %p172 = scmp.eq.s32.totalorder %s31, 1
      %p173 = por %p171, %p172
      %p174 = scmp.ne.s32.totalorder %s166, %s169
      %p175 = scmp.eq.s32.totalorder %s31, 0
      %p176 = por %p174, %p175
      %p177 = scmp.ne.s32.totalorder %s166, %s169
      %p178 = scmp.eq.s32.totalorder %s36, 1
      %p179 = por %p177, %p178
      %p180 = scmp.ne.s32.totalorder %s169, %s170
      %p181 = scmp.eq.s32.totalorder %s36, 0
      %p182 = por %p180, %p181
      %p183 = scmp.ne.s32.totalorder %s169, %s170
      %p184 = scmp.eq.s32.totalorder %s37, 1
      %p185 = por %p183, %p184
      %p187 = scmp.ne.s32.totalorder %s170, %s186
      %p188 = scmp.eq.s32.totalorder %s37, 0
      %p189 = por %p187, %p188
      %s190 = ssub.s32 %s31, %s38
      %p191 = scmp.eq.s32.totalorder %s190, 0
      %s193 = sadd.s32 %s192, 1
      %s194 = scalar_select %p191, %s192, %s193
      %p197 = pneg %p191
      %p198 = scmp.eq.s32.totalorder %s31, 1
      %p199 = por %p197, %p198
      %p200 = scmp.ne.s32.totalorder %s192, %s195
      %p201 = scmp.eq.s32.totalorder %s31, 0
      %p202 = por %p200, %p201
      %p203 = scmp.ne.s32.totalorder %s192, %s195
      %p204 = scmp.eq.s32.totalorder %s36, 1
      %p205 = por %p203, %p204
      %p206 = scmp.ne.s32.totalorder %s195, %s196
      %p207 = scmp.eq.s32.totalorder %s36, 0
      %p208 = por %p206, %p207
      %p209 = scmp.ne.s32.totalorder %s195, %s196
      %p210 = scmp.eq.s32.totalorder %s37, 1
      %p211 = por %p209, %p210
      %p213 = scmp.ne.s32.totalorder %s196, %s212
      %p214 = scmp.eq.s32.totalorder %s37, 0
      %p215 = por %p213, %p214
      %s216 = ssub.s32 %s31, %s38
      %p217 = scmp.eq.s32.totalorder %s216, 0
      %s219 = sadd.s32 %s218, 1
      %s220 = scalar_select %p217, %s218, %s219
      %p223 = pneg %p217
      %p224 = scmp.eq.s32.totalorder %s31, 1
      %p225 = por %p223, %p224
      %p226 = scmp.ne.s32.totalorder %s218, %s221
      %p227 = scmp.eq.s32.totalorder %s31, 0
      %p228 = por %p226, %p227
      %p229 = scmp.ne.s32.totalorder %s218, %s221
      %p230 = scmp.eq.s32.totalorder %s36, 1
      %p231 = por %p229, %p230
      %p232 = scmp.ne.s32.totalorder %s221, %s222
      %p233 = scmp.eq.s32.totalorder %s36, 0
      %p234 = por %p232, %p233
      %p235 = scmp.ne.s32.totalorder %s221, %s222
      %p236 = scmp.eq.s32.totalorder %s37, 1
      %p237 = por %p235, %p236
      %p239 = scmp.ne.s32.totalorder %s222, %s238
      %p240 = scmp.eq.s32.totalorder %s37, 0
      %p241 = por %p239, %p240
      %s242 = ssub.s32 %s31, %s38
      %p243 = scmp.eq.s32.totalorder %s242, 0
      %s245 = sadd.s32 %s244, 1
      %s246 = scalar_select %p243, %s244, %s245
      %p249 = pneg %p243
      %p250 = scmp.eq.s32.totalorder %s31, 1
      %p251 = por %p249, %p250
      %p252 = scmp.ne.s32.totalorder %s244, %s247
      %p253 = scmp.eq.s32.totalorder %s31, 0
      %p254 = por %p252, %p253
      %p255 = scmp.ne.s32.totalorder %s244, %s247
      %p256 = scmp.eq.s32.totalorder %s36, 1
      %p257 = por %p255, %p256
      %p258 = scmp.ne.s32.totalorder %s247, %s248
      %p259 = scmp.eq.s32.totalorder %s36, 0
      %p260 = por %p258, %p259
      %p261 = scmp.ne.s32.totalorder %s247, %s248
      %p262 = scmp.eq.s32.totalorder %s37, 1
      %p263 = por %p261, %p262
      %p265 = scmp.ne.s32.totalorder %s248, %s264
      %p266 = scmp.eq.s32.totalorder %s37, 0
      %p267 = por %p265, %p266
      %s268 = ssub.s32 %s31, %s38
      %p269 = scmp.eq.s32.totalorder %s268, 0
      %s271 = sadd.s32 %s270, 1
      %s272 = scalar_select %p269, %s270, %s271
      %p275 = pneg %p269
      %p276 = scmp.eq.s32.totalorder %s31, 1
      %p277 = por %p275, %p276
      %p278 = scmp.ne.s32.totalorder %s270, %s273
      %p279 = scmp.eq.s32.totalorder %s31, 0
      %p280 = por %p278, %p279
      %p281 = scmp.ne.s32.totalorder %s270, %s273
      %p282 = scmp.eq.s32.totalorder %s36, 1
      %p283 = por %p281, %p282
      %p284 = scmp.ne.s32.totalorder %s273, %s274
      %p285 = scmp.eq.s32.totalorder %s36, 0
      %p286 = por %p284, %p285
      %p287 = scmp.ne.s32.totalorder %s273, %s274
      %p288 = scmp.eq.s32.totalorder %s37, 1
      %p289 = por %p287, %p288
      %p291 = scmp.ne.s32.totalorder %s274, %s290
      %p292 = scmp.eq.s32.totalorder %s37, 0
      %p293 = por %p291, %p292
      %s294 = ssub.s32 %s31, %s38
      %p295 = scmp.eq.s32.totalorder %s294, 0
      %s297 = sadd.s32 %s296, 1
      %s298 = scalar_select %p295, %s296, %s297
      %p301 = pneg %p295
      %p302 = scmp.eq.s32.totalorder %s31, 1
      %p303 = por %p301, %p302
      %p304 = scmp.ne.s32.totalorder %s296, %s299
      %p305 = scmp.eq.s32.totalorder %s31, 0
      %p306 = por %p304, %p305
      %p307 = scmp.ne.s32.totalorder %s296, %s299
      %p308 = scmp.eq.s32.totalorder %s36, 1
      %p309 = por %p307, %p308
      %p310 = scmp.ne.s32.totalorder %s299, %s300
      %p311 = scmp.eq.s32.totalorder %s36, 0
      %p312 = por %p310, %p311
      %p313 = scmp.ne.s32.totalorder %s299, %s300
      %p314 = scmp.eq.s32.totalorder %s37, 1
      %p315 = por %p313, %p314
      %p317 = scmp.ne.s32.totalorder %s300, %s316
      %p318 = scmp.eq.s32.totalorder %s37, 0
      %p319 = por %p317, %p318
      %s320 = ssub.s32 %s31, %s38
      %p321 = scmp.eq.s32.totalorder %s320, 0
      %s323 = sadd.s32 %s322, 1
      %s324 = scalar_select %p321, %s322, %s323
      %p327 = pneg %p321
      %p328 = scmp.eq.s32.totalorder %s31, 1
      %p329 = por %p327, %p328
      %p330 = scmp.ne.s32.totalorder %s322, %s325
      %p331 = scmp.eq.s32.totalorder %s31, 0
      %p332 = por %p330, %p331
      %p333 = scmp.ne.s32.totalorder %s322, %s325
      %p334 = scmp.eq.s32.totalorder %s36, 1
      %p335 = por %p333, %p334
      %p336 = scmp.ne.s32.totalorder %s325, %s326
      %p337 = scmp.eq.s32.totalorder %s36, 0
      %p338 = por %p336, %p337
      %p339 = scmp.ne.s32.totalorder %s325, %s326
      %p340 = scmp.eq.s32.totalorder %s37, 1
      %p341 = por %p339, %p340
      %p343 = scmp.ne.s32.totalorder %s326, %s342
      %p344 = scmp.eq.s32.totalorder %s37, 0
      %p345 = por %p343, %p344
      %s346 = ssub.s32 %s31, %s38
      %p347 = scmp.eq.s32.totalorder %s346, 0
      %s349 = sadd.s32 %s348, 1
      %s350 = scalar_select %p347, %s348, %s349
      %p353 = pneg %p347
      %p354 = scmp.eq.s32.totalorder %s31, 1
      %p355 = por %p353, %p354
      %p356 = scmp.ne.s32.totalorder %s348, %s351
      %p357 = scmp.eq.s32.totalorder %s31, 0
      %p358 = por %p356, %p357
      %p359 = scmp.ne.s32.totalorder %s348, %s351
      %p360 = scmp.eq.s32.totalorder %s36, 1
      %p361 = por %p359, %p360
      %p362 = scmp.ne.s32.totalorder %s351, %s352
      %p363 = scmp.eq.s32.totalorder %s36, 0
      %p364 = por %p362, %p363
      %p365 = scmp.ne.s32.totalorder %s351, %s352
      %p366 = scmp.eq.s32.totalorder %s37, 1
      %p367 = por %p365, %p366
      %p369 = scmp.ne.s32.totalorder %s352, %s368
      %p370 = scmp.eq.s32.totalorder %s37, 0
      %p371 = por %p369, %p370
      %s372 = ssub.s32 %s31, %s38
      %p373 = scmp.eq.s32.totalorder %s372, 0
      %s375 = sadd.s32 %s374, 1
      %s376 = scalar_select %p373, %s374, %s375
      %p379 = pneg %p373
      %p380 = scmp.eq.s32.totalorder %s31, 1
      %p381 = por %p379, %p380
      %p382 = scmp.ne.s32.totalorder %s374, %s377
      %p383 = scmp.eq.s32.totalorder %s31, 0
      %p384 = por %p382, %p383
      %p385 = scmp.ne.s32.totalorder %s374, %s377
      %p386 = scmp.eq.s32.totalorder %s36, 1
      %p387 = por %p385, %p386
      %p388 = scmp.ne.s32.totalorder %s377, %s378
      %p389 = scmp.eq.s32.totalorder %s36, 0
      %p390 = por %p388, %p389
      %p391 = scmp.ne.s32.totalorder %s377, %s378
      %p392 = scmp.eq.s32.totalorder %s37, 1
      %p393 = por %p391, %p392
      %p395 = scmp.ne.s32.totalorder %s378, %s394
      %p396 = scmp.eq.s32.totalorder %s37, 0
      %p397 = por %p395, %p396
      %s398 = ssub.s32 %s31, %s38
      %p399 = scmp.eq.s32.totalorder %s398, 0
      %s401 = sadd.s32 %s400, 1
      %s402 = scalar_select %p399, %s400, %s401
      %p405 = pneg %p399
      %p406 = scmp.eq.s32.totalorder %s31, 1
      %p407 = por %p405, %p406
      %p408 = scmp.ne.s32.totalorder %s400, %s403
      %p409 = scmp.eq.s32.totalorder %s31, 0
      %p410 = por %p408, %p409
      %p411 = scmp.ne.s32.totalorder %s400, %s403
      %p412 = scmp.eq.s32.totalorder %s36, 1
      %p413 = por %p411, %p412
      %p414 = scmp.ne.s32.totalorder %s403, %s404
      %p415 = scmp.eq.s32.totalorder %s36, 0
      %p416 = por %p414, %p415
      %p417 = scmp.ne.s32.totalorder %s403, %s404
      %p418 = scmp.eq.s32.totalorder %s37, 1
      %p419 = por %p417, %p418
      %p421 = scmp.ne.s32.totalorder %s404, %s420
      %p422 = scmp.eq.s32.totalorder %s37, 0
      %p423 = por %p421, %p422
      %s424 = ssub.s32 %s31, %s38
      %p425 = scmp.eq.s32.totalorder %s424, 0
      %s427 = sadd.s32 %s426, 1
      %s428 = scalar_select %p425, %s426, %s427
      %p431 = pneg %p425
      %p432 = scmp.eq.s32.totalorder %s31, 1
      %p433 = por %p431, %p432
      %p434 = scmp.ne.s32.totalorder %s426, %s429
      %p435 = scmp.eq.s32.totalorder %s31, 0
      %p436 = por %p434, %p435
      %p437 = scmp.ne.s32.totalorder %s426, %s429
      %p438 = scmp.eq.s32.totalorder %s36, 1
      %p439 = por %p437, %p438
      %p440 = scmp.ne.s32.totalorder %s429, %s430
      %p441 = scmp.eq.s32.totalorder %s36, 0
      %p442 = por %p440, %p441
      %p443 = scmp.ne.s32.totalorder %s429, %s430
      %p444 = scmp.eq.s32.totalorder %s37, 1
      %p445 = por %p443, %p444
      %p447 = scmp.ne.s32.totalorder %s430, %s446
      %p448 = scmp.eq.s32.totalorder %s37, 0
      %p449 = por %p447, %p448
      %s450 = ssub.s32 %s31, %s38
      %p451 = scmp.eq.s32.totalorder %s450, 0
      %s453 = sadd.s32 %s452, 1
      %s454 = scalar_select %p451, %s452, %s453
      %p457 = pneg %p451
      %p458 = scmp.eq.s32.totalorder %s31, 1
      %p459 = por %p457, %p458
      %p460 = scmp.ne.s32.totalorder %s452, %s455
      %p461 = scmp.eq.s32.totalorder %s31, 0
      %p462 = por %p460, %p461
      %p463 = scmp.ne.s32.totalorder %s452, %s455
      %p464 = scmp.eq.s32.totalorder %s36, 1
      %p465 = por %p463, %p464
      %p466 = scmp.ne.s32.totalorder %s455, %s456
      %p467 = scmp.eq.s32.totalorder %s36, 0
      %p468 = por %p466, %p467
      %p469 = scmp.ne.s32.totalorder %s455, %s456
      %p470 = scmp.eq.s32.totalorder %s37, 1
      %p471 = por %p469, %p470
      %p473 = scmp.ne.s32.totalorder %s456, %s472
      %p474 = scmp.eq.s32.totalorder %s37, 0
      %p475 = por %p473, %p474
      %s477 = sadd.s32 %s476, 1
      %p480 = scmp.eq.s32.totalorder %s31, 1
      %p481 = scmp.ne.s32.totalorder %s476, %s478
      %p482 = scmp.eq.s32.totalorder %s31, 0
      %p483 = por %p481, %p482
      %p484 = scmp.ne.s32.totalorder %s476, %s478
      %p485 = scmp.eq.s32.totalorder %s36, 1
      %p486 = por %p484, %p485
      %p487 = scmp.ne.s32.totalorder %s478, %s479
      %p488 = scmp.eq.s32.totalorder %s36, 0
      %p489 = por %p487, %p488
      %p490 = scmp.ne.s32.totalorder %s478, %s479
      %p491 = scmp.eq.s32.totalorder %s37, 1
      %p492 = por %p490, %p491
      %p494 = scmp.ne.s32.totalorder %s479, %s493
      %p495 = scmp.eq.s32.totalorder %s37, 0
      %p496 = por %p494, %p495
      %s498 = sadd.s32 %s497, 1
      %p501 = scmp.eq.s32.totalorder %s31, 1
      %p502 = scmp.ne.s32.totalorder %s497, %s499
      %p503 = scmp.eq.s32.totalorder %s31, 0
      %p504 = por %p502, %p503
      %p505 = scmp.ne.s32.totalorder %s497, %s499
      %p506 = scmp.eq.s32.totalorder %s36, 1
      %p507 = por %p505, %p506
      %p508 = scmp.ne.s32.totalorder %s499, %s500
      %p509 = scmp.eq.s32.totalorder %s36, 0
      %p510 = por %p508, %p509
      %p511 = scmp.ne.s32.totalorder %s499, %s500
      %p512 = scmp.eq.s32.totalorder %s37, 1
      %p513 = por %p511, %p512
      %p515 = scmp.ne.s32.totalorder %s500, %s514
      %p516 = scmp.eq.s32.totalorder %s37, 0
      %p517 = por %p515, %p516
      %s519 = sadd.s32 %s518, 1
      %p522 = scmp.eq.s32.totalorder %s31, 1
      %p523 = scmp.ne.s32.totalorder %s518, %s520
      %p524 = scmp.eq.s32.totalorder %s31, 0
      %p525 = por %p523, %p524
      %p526 = scmp.ne.s32.totalorder %s518, %s520
      %p527 = scmp.eq.s32.totalorder %s36, 1
      %p528 = por %p526, %p527
      %p529 = scmp.ne.s32.totalorder %s520, %s521
      %p530 = scmp.eq.s32.totalorder %s36, 0
      %p531 = por %p529, %p530
      %p532 = scmp.ne.s32.totalorder %s520, %s521
      %p533 = scmp.eq.s32.totalorder %s37, 1
      %p534 = por %p532, %p533
      %p536 = scmp.ne.s32.totalorder %s521, %s535
      %p537 = scmp.eq.s32.totalorder %s37, 0
      %p538 = por %p536, %p537
      %p539 = scmp.le.s32.totalorder 1, %s31
      %p540 = scmp.lt.s32.totalorder %s31, 3
      %p541 = pnand %p539, %p540
      %p542 = pneg %p541
      // Predicated region
      $region9: #{tpu_custom_call.1} parent=5 // pred_check
        _
      $region10: #{tpu_custom_call.1} parent=5 // pred_check_branch
        %544 = sbr.rel (%p541) target = $region12
      $region11: #{tpu_custom_call.1} parent=5 // pred_region
        %s545 = ssub.s32 %s31, 1
        // Predicated region
        $region13: #{tpu_custom_call.1} parent=11 // pred_check
          %p546 = pneg %p52
        $region14: #{tpu_custom_call.1} parent=11 // pred_check_branch
          %548 = sbr.rel (%p546) target = $region16
        $region15: #{tpu_custom_call.1} parent=11 // pred_region
          %s550 = ssub.s32 512, 512
          %551 = vsyncadd [#allocation5], %s550
          %s552 = sshll.u32 [#allocation4], 4
          %s553 = int_to_ptr.vmem [resolvable:$true] %s552
          %558 = dma.hbm_to_vmem [thread:$0]  %s0, 512, %s553, [#allocation5], 128, 128, 8
        $region16: #{tpu_custom_call.1} parent=11 // pred_fallthru
          _
        // Predicated region
        $region17: #{tpu_custom_call.1} parent=11 // pred_check
          %p559 = pneg %p489
        $region18: #{tpu_custom_call.1} parent=11 // pred_check_branch
          %561 = sbr.rel (%p559) target = $region20
        $region19: #{tpu_custom_call.1} parent=11 // pred_region
          %s563 = ssub.s32 512, 512
          %564 = vsyncadd [#allocation11], %s563
          %s565 = sshll.u32 [#allocation10], 4
          %s566 = int_to_ptr.vmem [resolvable:$true] %s565
          %571 = dma.hbm_to_vmem [thread:$0]  %s17, 512, %s566, [#allocation11], 128, 128, 8
        $region20: #{tpu_custom_call.1} parent=11 // pred_fallthru
          _
        // Predicated region
        $region21: #{tpu_custom_call.1} parent=11 // pred_check
          %p572 = pneg %p510
        $region22: #{tpu_custom_call.1} parent=11 // pred_check_branch
          %574 = sbr.rel (%p572) target = $region24
        $region23: #{tpu_custom_call.1} parent=11 // pred_region
          _
        $region24: #{tpu_custom_call.1} parent=11 // pred_fallthru
          _
      $region12: #{tpu_custom_call.1} parent=5 // pred_fallthru
        _
      %p575 = scmp.lt.s32.totalorder %s31, 2
      // Predicated region
      $region25: #{tpu_custom_call.1} parent=5 // pred_check
        %p576 = pneg %p575
      $region26: #{tpu_custom_call.1} parent=5 // pred_check_branch
        %578 = sbr.rel (%p576) target = $region28
      $region27: #{tpu_custom_call.1} parent=5 // pred_region
        // Predicated region
        $region29: #{tpu_custom_call.1} parent=27 // pred_check
          %p579 = pneg %p72
        $region30: #{tpu_custom_call.1} parent=27 // pred_check_branch
          %581 = sbr.rel (%p579) target = $region32
        $region31: #{tpu_custom_call.1} parent=27 // pred_region
          %p582 = scmp.lt.s32.totalorder %s31, 1
          %s583 = scalar_select %p582, %s31, 1
          %s584 = smul.addr %s583, 4
          %s585 = smul.addr %s584, 8
          %s586 = scalar_lea.vmem %s1, %s585
        $region32: #{tpu_custom_call.1} parent=27 // pred_fallthru
          _
        // Predicated region
        $region33: #{tpu_custom_call.1} parent=27 // pred_check
          %p587 = pneg %p98
        $region34: #{tpu_custom_call.1} parent=27 // pred_check_branch
          %589 = sbr.rel (%p587) target = $region36
        $region35: #{tpu_custom_call.1} parent=27 // pred_region
          %p590 = scmp.lt.s32.totalorder %s31, 1
          %s591 = scalar_select %p590, %s31, 1
          %s592 = smul.addr %s591, 4
          %s593 = smul.addr %s592, 8
          %s594 = scalar_lea.vmem %s2, %s593
        $region36: #{tpu_custom_call.1} parent=27 // pred_fallthru
          _
        // Predicated region
        $region37: #{tpu_custom_call.1} parent=27 // pred_check
          %p595 = pneg %p124
        $region38: #{tpu_custom_call.1} parent=27 // pred_check_branch
          %597 = sbr.rel (%p595) target = $region40
        $region39: #{tpu_custom_call.1} parent=27 // pred_region
          %p598 = scmp.lt.s32.totalorder %s31, 1
          %s599 = scalar_select %p598, %s31, 1
          %s600 = smul.addr %s599, 4
          %s601 = smul.addr %s600, 8
          %s602 = scalar_lea.vmem %s3, %s601
        $region40: #{tpu_custom_call.1} parent=27 // pred_fallthru
          _
        // Predicated region
        $region41: #{tpu_custom_call.1} parent=27 // pred_check
          %p603 = pneg %p150
        $region42: #{tpu_custom_call.1} parent=27 // pred_check_branch
          %605 = sbr.rel (%p603) target = $region44
        $region43: #{tpu_custom_call.1} parent=27 // pred_region
          %p606 = scmp.lt.s32.totalorder %s31, 1
          %s607 = scalar_select %p606, %s31, 1
          %s608 = scalar_lea.vmem %s4, %s607
        $region44: #{tpu_custom_call.1} parent=27 // pred_fallthru
          _
        // Predicated region
        $region45: #{tpu_custom_call.1} parent=27 // pred_check
          %p609 = pneg %p176
        $region46: #{tpu_custom_call.1} parent=27 // pred_check_branch
          %611 = sbr.rel (%p609) target = $region48
        $region47: #{tpu_custom_call.1} parent=27 // pred_region
          %p612 = scmp.lt.s32.totalorder %s31, 1
          %s613 = scalar_select %p612, %s31, 1
          %s614 = scalar_lea.vmem %s5, %s613
        $region48: #{tpu_custom_call.1} parent=27 // pred_fallthru
          _
        // Predicated region
        $region49: #{tpu_custom_call.1} parent=27 // pred_check
          %p615 = pneg %p202
        $region50: #{tpu_custom_call.1} parent=27 // pred_check_branch
          %617 = sbr.rel (%p615) target = $region52
        $region51: #{tpu_custom_call.1} parent=27 // pred_region
          %p618 = scmp.lt.s32.totalorder %s31, 1
          %s619 = scalar_select %p618, %s31, 1
          %s620 = scalar_lea.vmem %s6, %s619
        $region52: #{tpu_custom_call.1} parent=27 // pred_fallthru
          _
        // Predicated region
        $region53: #{tpu_custom_call.1} parent=27 // pred_check
          %p621 = pneg %p228
        $region54: #{tpu_custom_call.1} parent=27 // pred_check_branch
          %623 = sbr.rel (%p621) target = $region56
        $region55: #{tpu_custom_call.1} parent=27 // pred_region
          %s624 = sand.u32 %s31, 1
          %s625 = scalar_lea.sflag [#allocation8], %s624
          %s626 = sand.u32 %s218, 1
          %s627 = smul.addr %s626, 32
          %s628 = scalar_lea.vmem [#allocation7], %s627
          %s630 = ssub.s32 512, 512
          %631 = vsyncadd %s625, %s630
          %s632 = smul.addr %s31, 4
          %s633 = smul.addr %s632, 128
          %s634 = scalar_lea.hbm %s7, %s633
          %s635 = sshll.u32 %s628, 4
          %s636 = int_to_ptr.vmem [resolvable:$true] %s635
          %641 = dma.hbm_to_vmem [thread:$0]  %s634, 512, %s636, %s625, 128, 128, 8
        $region56: #{tpu_custom_call.1} parent=27 // pred_fallthru
          _
        // Predicated region
        $region57: #{tpu_custom_call.1} parent=27 // pred_check
          %p642 = pneg %p254
        $region58: #{tpu_custom_call.1} parent=27 // pred_check_branch
          %644 = sbr.rel (%p642) target = $region60
        $region59: #{tpu_custom_call.1} parent=27 // pred_region
          %p645 = scmp.lt.s32.totalorder %s31, 1
          %s646 = scalar_select %p645, %s31, 1
          %s647 = scalar_lea.vmem %s8, %s646
        $region60: #{tpu_custom_call.1} parent=27 // pred_fallthru
          _
        // Predicated region
        $region61: #{tpu_custom_call.1} parent=27 // pred_check
          %p648 = pneg %p280
        $region62: #{tpu_custom_call.1} parent=27 // pred_check_branch
          %650 = sbr.rel (%p648) target = $region64
        $region63: #{tpu_custom_call.1} parent=27 // pred_region
          %p651 = scmp.lt.s32.totalorder %s31, 1
          %s652 = scalar_select %p651, %s31, 1
          %s653 = scalar_lea.vmem %s9, %s652
        $region64: #{tpu_custom_call.1} parent=27 // pred_fallthru
          _
        // Predicated region
        $region65: #{tpu_custom_call.1} parent=27 // pred_check
          %p654 = pneg %p306
        $region66: #{tpu_custom_call.1} parent=27 // pred_check_branch
          %656 = sbr.rel (%p654) target = $region68
        $region67: #{tpu_custom_call.1} parent=27 // pred_region
          %p657 = scmp.lt.s32.totalorder %s31, 1
          %s658 = scalar_select %p657, %s31, 1
          %s659 = scalar_lea.vmem %s10, %s658
        $region68: #{tpu_custom_call.1} parent=27 // pred_fallthru
          _
        // Predicated region
        $region69: #{tpu_custom_call.1} parent=27 // pred_check
          %p660 = pneg %p332
        $region70: #{tpu_custom_call.1} parent=27 // pred_check_branch
          %662 = sbr.rel (%p660) target = $region72
        $region71: #{tpu_custom_call.1} parent=27 // pred_region
          %s663 = sand.u32 %s31, 1
          %s664 = scalar_lea.sflag [#allocation8], %s663
          %s665 = sand.u32 %s322, 1
          %s666 = smul.addr %s665, 32
          %s667 = scalar_lea.vmem [#allocation9], %s666
          %s669 = ssub.s32 512, 512
          %670 = vsyncadd %s664, %s669
          %s671 = smul.addr %s31, 4
          %s672 = smul.addr %s671, 128
          %s673 = scalar_lea.hbm %s11, %s672
          %s674 = sshll.u32 %s667, 4
          %s675 = int_to_ptr.vmem [resolvable:$true] %s674
          %680 = dma.hbm_to_vmem [thread:$0]  %s673, 512, %s675, %s664, 128, 128, 8
        $region72: #{tpu_custom_call.1} parent=27 // pred_fallthru
          _
        // Predicated region
        $region73: #{tpu_custom_call.1} parent=27 // pred_check
          %p681 = pneg %p358
        $region74: #{tpu_custom_call.1} parent=27 // pred_check_branch
          %683 = sbr.rel (%p681) target = $region76
        $region75: #{tpu_custom_call.1} parent=27 // pred_region
          %p684 = scmp.lt.s32.totalorder %s31, 1
          %s685 = scalar_select %p684, %s31, 1
          %s686 = scalar_lea.vmem %s12, %s685
        $region76: #{tpu_custom_call.1} parent=27 // pred_fallthru
          _
        // Predicated region
        $region77: #{tpu_custom_call.1} parent=27 // pred_check
          %p687 = pneg %p384
        $region78: #{tpu_custom_call.1} parent=27 // pred_check_branch
          %689 = sbr.rel (%p687) target = $region80
        $region79: #{tpu_custom_call.1} parent=27 // pred_region
          %p690 = scmp.lt.s32.totalorder %s31, 1
          %s691 = scalar_select %p690, %s31, 1
          %s692 = smul.addr %s691, 8
          %s693 = smul.addr %s692, 8
          %s694 = scalar_lea.vmem %s13, %s693
        $region80: #{tpu_custom_call.1} parent=27 // pred_fallthru
          _
        // Predicated region
        $region81: #{tpu_custom_call.1} parent=27 // pred_check
          %p695 = pneg %p410
        $region82: #{tpu_custom_call.1} parent=27 // pred_check_branch
          %697 = sbr.rel (%p695) target = $region84
        $region83: #{tpu_custom_call.1} parent=27 // pred_region
          %p698 = scmp.lt.s32.totalorder %s31, 1
          %s699 = scalar_select %p698, %s31, 1
          %s700 = scalar_lea.vmem %s14, %s699
        $region84: #{tpu_custom_call.1} parent=27 // pred_fallthru
          _
        // Predicated region
        $region85: #{tpu_custom_call.1} parent=27 // pred_check
          %p701 = pneg %p436
        $region86: #{tpu_custom_call.1} parent=27 // pred_check_branch
          %703 = sbr.rel (%p701) target = $region88
        $region87: #{tpu_custom_call.1} parent=27 // pred_region
          %p704 = scmp.lt.s32.totalorder %s31, 1
          %s705 = scalar_select %p704, %s31, 1
          %s706 = scalar_lea.vmem %s15, %s705
        $region88: #{tpu_custom_call.1} parent=27 // pred_fallthru
          _
        // Predicated region
        $region89: #{tpu_custom_call.1} parent=27 // pred_check
          %p707 = pneg %p462
        $region90: #{tpu_custom_call.1} parent=27 // pred_check_branch
          %709 = sbr.rel (%p707) target = $region92
        $region91: #{tpu_custom_call.1} parent=27 // pred_region
          %p710 = scmp.lt.s32.totalorder %s31, 1
          %s711 = scalar_select %p710, %s31, 1
          %s712 = scalar_lea.vmem %s16, %s711
        $region92: #{tpu_custom_call.1} parent=27 // pred_fallthru
          _
      $region28: #{tpu_custom_call.1} parent=5 // pred_fallthru
        _
      %p713 = scmp.le.s32.totalorder 1, %s31
      %p714 = scmp.lt.s32.totalorder %s31, 3
      %p715 = pnand %p713, %p714
      %p716 = pneg %p715
      // Predicated region
      $region93: #{tpu_custom_call.1} parent=5 // pred_check
        _
      $region94: #{tpu_custom_call.1} parent=5 // pred_check_branch
        %718 = sbr.rel (%p715) target = $region96
      $region95: #{tpu_custom_call.1} parent=5 // pred_region
        %s719 = ssub.s32 %s31, 1
        // Predicated region
        $region97: #{tpu_custom_call.1} parent=95 // pred_check
          %p720 = pneg %p52
        $region98: #{tpu_custom_call.1} parent=95 // pred_check_branch
          %722 = sbr.rel (%p720) target = $region100
        $region99: #{tpu_custom_call.1} parent=95 // pred_region
          %723 = dma.done [#allocation5], 512
        $region100: #{tpu_custom_call.1} parent=95 // pred_fallthru
          _
        %s724 = sand.u32 %s36, 1
        %s725 = scalar_lea.sflag [#allocation8], %s724
        %s726 = sand.u32 %s221, 1
        %s727 = smul.addr %s726, 32
        %s728 = scalar_lea.vmem [#allocation7], %s727
        // Predicated region
        $region101: #{tpu_custom_call.1} parent=95 // pred_check
          %p729 = pneg %p234
        $region102: #{tpu_custom_call.1} parent=95 // pred_check_branch
          %731 = sbr.rel (%p729) target = $region104
        $region103: #{tpu_custom_call.1} parent=95 // pred_region
          %732 = dma.done %s725, 512
        $region104: #{tpu_custom_call.1} parent=95 // pred_fallthru
          _
        %s733 = sand.u32 %s36, 1
        %s734 = scalar_lea.sflag [#allocation8], %s733
        %s735 = sand.u32 %s325, 1
        %s736 = smul.addr %s735, 32
        %s737 = scalar_lea.vmem [#allocation9], %s736
        // Predicated region
        $region105: #{tpu_custom_call.1} parent=95 // pred_check
          %p738 = pneg %p338
        $region106: #{tpu_custom_call.1} parent=95 // pred_check_branch
          %740 = sbr.rel (%p738) target = $region108
        $region107: #{tpu_custom_call.1} parent=95 // pred_region
          %741 = dma.done %s734, 512
        $region108: #{tpu_custom_call.1} parent=95 // pred_fallthru
          _
        // Predicated region
        $region109: #{tpu_custom_call.1} parent=95 // pred_check
          %p742 = pneg %p489
        $region110: #{tpu_custom_call.1} parent=95 // pred_check_branch
          %744 = sbr.rel (%p742) target = $region112
        $region111: #{tpu_custom_call.1} parent=95 // pred_region
          %745 = dma.done [#allocation11], 512
        $region112: #{tpu_custom_call.1} parent=95 // pred_fallthru
          _
        %p746 = pneg %p52
        %p747 = pneg %p49
        %p748 = scmp.lt.s32.totalorder %s36, 1
        %s749 = scalar_select %p748, %s36, 1
        %s750 = smul.addr %s749, 4
        %s751 = smul.addr %s750, 8
        %s752 = scalar_lea.vmem %s1, %s751
        %p753 = pneg %p78
        %p754 = pneg %p75
        %p755 = scmp.lt.s32.totalorder %s36, 1
        %s756 = scalar_select %p755, %s36, 1
        %s757 = smul.addr %s756, 4
        %s758 = smul.addr %s757, 8
        %s759 = scalar_lea.vmem %s2, %s758
        %p760 = pneg %p104
        %p761 = pneg %p101
        %p762 = scmp.lt.s32.totalorder %s36, 1
        %s763 = scalar_select %p762, %s36, 1
        %s764 = smul.addr %s763, 4
        %s765 = smul.addr %s764, 8
        %s766 = scalar_lea.vmem %s3, %s765
        %p767 = pneg %p130
        %p768 = pneg %p127
        %p769 = scmp.lt.s32.totalorder %s36, 1
        %s770 = scalar_select %p769, %s36, 1
        %s771 = scalar_lea.vmem %s4, %s770
        %p772 = pneg %p156
        %p773 = pneg %p153
        %p774 = scmp.lt.s32.totalorder %s36, 1
        %s775 = scalar_select %p774, %s36, 1
        %s776 = scalar_lea.vmem %s5, %s775
        %p777 = pneg %p182
        %p778 = pneg %p179
        %p779 = scmp.lt.s32.totalorder %s36, 1
        %s780 = scalar_select %p779, %s36, 1
        %s781 = scalar_lea.vmem %s6, %s780
        %p782 = pneg %p208
        %p783 = pneg %p205
        %s784 = sand.u32 %s36, 1
        %s785 = scalar_lea.sflag [#allocation8], %s784
        %s786 = sand.u32 %s221, 1
        %s787 = smul.addr %s786, 32
        %s788 = scalar_lea.vmem [#allocation7], %s787
        %p789 = pneg %p234
        %p790 = pneg %p231
        %p791 = scmp.lt.s32.totalorder %s36, 1
        %s792 = scalar_select %p791, %s36, 1
        %s793 = scalar_lea.vmem %s8, %s792
        %p794 = pneg %p260
        %p795 = pneg %p257
        %p796 = scmp.lt.s32.totalorder %s36, 1
        %s797 = scalar_select %p796, %s36, 1
        %s798 = scalar_lea.vmem %s9, %s797
        %p799 = pneg %p286
        %p800 = pneg %p283
        %p801 = scmp.lt.s32.totalorder %s36, 1
        %s802 = scalar_select %p801, %s36, 1
        %s803 = scalar_lea.vmem %s10, %s802
        %p804 = pneg %p312
        %p805 = pneg %p309
        %s806 = sand.u32 %s36, 1
        %s807 = scalar_lea.sflag [#allocation8], %s806
        %s808 = sand.u32 %s325, 1
        %s809 = smul.addr %s808, 32
        %s810 = scalar_lea.vmem [#allocation9], %s809
        %p811 = pneg %p338
        %p812 = pneg %p335
        %p813 = scmp.lt.s32.totalorder %s36, 1
        %s814 = scalar_select %p813, %s36, 1
        %s815 = scalar_lea.vmem %s12, %s814
        %p816 = pneg %p364
        %p817 = pneg %p361
        %p818 = scmp.lt.s32.totalorder %s36, 1
        %s819 = scalar_select %p818, %s36, 1
        %s820 = smul.addr %s819, 8
        %s821 = smul.addr %s820, 8
        %s822 = scalar_lea.vmem %s13, %s821
        %p823 = pneg %p390
        %p824 = pneg %p387
        %p825 = scmp.lt.s32.totalorder %s36, 1
        %s826 = scalar_select %p825, %s36, 1
        %s827 = scalar_lea.vmem %s14, %s826
        %p828 = pneg %p416
        %p829 = pneg %p413
        %p830 = scmp.lt.s32.totalorder %s36, 1
        %s831 = scalar_select %p830, %s36, 1
        %s832 = scalar_lea.vmem %s15, %s831
        %p833 = pneg %p442
        %p834 = pneg %p439
        %p835 = scmp.lt.s32.totalorder %s36, 1
        %s836 = scalar_select %p835, %s36, 1
        %s837 = scalar_lea.vmem %s16, %s836
        %p838 = pneg %p468
        %p839 = pneg %p465
        %p840 = pneg %p489
        %p841 = pneg %p486
        %p842 = pneg %p510
        %p843 = pneg %p507
        %p844 = pneg %p531
        %p845 = pneg %p528
        %p846 = scmp.lt.s32.totalorder %s36, 1
        %s847 = scalar_select %p846, %s36, 1
        %s848 = smul.addr %s847, 4
        %s849 = smul.addr %s848, 8
        %s850 = scalar_lea.vmem %s1, %s849
        %p851 = scmp.lt.s32.totalorder %s36, 1
        %s852 = scalar_select %p851, %s36, 1
        %s853 = smul.addr %s852, 4
        %s854 = smul.addr %s853, 8
        %s855 = scalar_lea.vmem %s2, %s854
        %p856 = scmp.lt.s32.totalorder %s36, 1
        %s857 = scalar_select %p856, %s36, 1
        %s858 = smul.addr %s857, 4
        %s859 = smul.addr %s858, 8
        %s860 = scalar_lea.vmem %s3, %s859
        %p861 = scmp.lt.s32.totalorder %s36, 1
        %s862 = scalar_select %p861, %s36, 1
        %s863 = scalar_lea.vmem %s4, %s862
        %p864 = scmp.lt.s32.totalorder %s36, 1
        %s865 = scalar_select %p864, %s36, 1
        %s866 = scalar_lea.vmem %s5, %s865
        %p867 = scmp.lt.s32.totalorder %s36, 1
        %s868 = scalar_select %p867, %s36, 1
        %s869 = scalar_lea.vmem %s6, %s868
        %p870 = scmp.lt.s32.totalorder %s36, 1
        %s871 = scalar_select %p870, %s36, 1
        %s872 = scalar_lea.vmem %s8, %s871
        %p873 = scmp.lt.s32.totalorder %s36, 1
        %s874 = scalar_select %p873, %s36, 1
        %s875 = scalar_lea.vmem %s9, %s874
        %p876 = scmp.lt.s32.totalorder %s36, 1
        %s877 = scalar_select %p876, %s36, 1
        %s878 = scalar_lea.vmem %s10, %s877
        %p879 = scmp.lt.s32.totalorder %s36, 1
        %s880 = scalar_select %p879, %s36, 1
        %s881 = scalar_lea.vmem %s12, %s880
        %p882 = scmp.lt.s32.totalorder %s36, 1
        %s883 = scalar_select %p882, %s36, 1
        %s884 = smul.addr %s883, 8
        %s885 = smul.addr %s884, 8
        %s886 = scalar_lea.vmem %s13, %s885
        %p887 = scmp.lt.s32.totalorder %s36, 1
        %s888 = scalar_select %p887, %s36, 1
        %s889 = scalar_lea.vmem %s14, %s888
        %p890 = scmp.lt.s32.totalorder %s36, 1
        %s891 = scalar_select %p890, %s36, 1
        %s892 = scalar_lea.vmem %s15, %s891
        %p893 = scmp.lt.s32.totalorder %s36, 1
        %s894 = scalar_select %p893, %s36, 1
        %s895 = scalar_lea.vmem %s16, %s894
        %p896 = scmp.eq.s32.totalorder %s36, 0
        // Predicated region
        $region113: #{tpu_custom_call.1} parent=95 // pred_check
          %p897 = pneg %p896
        $region114: #{tpu_custom_call.1} parent=95 // pred_check_branch
          %899 = sbr.rel (%p897) target = $region116
        $region115: #{tpu_custom_call.1} parent=95 // pred_region
          %v900 = vld [vmem:[#allocation4] sm:$0xff]
          %v901 = vld [vmem:[#allocation4 + $0x8] sm:$0xff]
          %v902 = vld [vmem:[#allocation4 + $0x10] sm:$0xff]
          %v903 = vld [vmem:[#allocation4 + $0x18] sm:$0xff]
          %vm904 = vcmask 261120
          %905 = vst.msk [vmem:[#allocation2] sm:$0xff] %vm904, %v900
          %906 = vst.msk [vmem:[#allocation2 + $0x8] sm:$0xff] %vm904, %v901
          %907 = vst.msk [vmem:[#allocation2 + $0x10] sm:$0xff] %vm904, %v902
          %908 = vst.msk [vmem:[#allocation2 + $0x18] sm:$0xff] %vm904, %v903
        $region116: #{tpu_custom_call.1} parent=95 // pred_fallthru
          _
        %v909 = vld [vmem:[#allocation2] sm:$0xff]
        %v910 = vld [vmem:[#allocation2 + $0x8] sm:$0xff]
        %v911 = vld [vmem:[#allocation2 + $0x10] sm:$0xff]
        %v912 = vld [vmem:[#allocation2 + $0x18] sm:$0xff]
        %v913 = vlaneseq
        %v914 = vshrl.u32 %v913, 7
        %v915 = vadd.s32 %v914, 8
        %v916 = vlaneseq
        %v917 = vand.u32 %v916, 127
        %vm918 = vcmp.ge.s32.totalorder %v914, %v917
        %vm919 = vcmp.ge.s32.totalorder %v915, %v917
        %vm920 = vcmp.lt.s32.totalorder %v917, 9
        %vm921 = vmand %vm918, %vm920
        %vm922 = vmand %vm919, %vm920
        %v923 = vsel %vm921, 0.0, -1e+30
        %v924 = vsel %vm922, 0.0, -1e+30
        %v925 = vld [vmem:[%s850] sm:$0xff]
        %v926 = vld [vmem:[%s850 + $0x8] sm:$0xff]
        %v927 = vld [vmem:[%s850 + $0x10] sm:$0xff]
        %v928 = vld [vmem:[%s850 + $0x18] sm:$0xff]
        %v929 = vld [vmem:[%s863] sm:$0x1]
        %v931 = vlaneseq
        %v932 = vshrl.u32 %v931, 7
        %v933 = vsub.s32 0, %v932
        %v934 = vrot.slane %v929, %v933
        %vm936 = vcmask 261120
        %v938 = vsel %vm936, %v909, 0
        %v941 = vsel %vm936, %v910, 0
        %v944 = vsel %vm936, %v911, 0
        %v947 = vsel %vm936, %v912, 0
        %949 = vmatprep.subr.mxu0 0.0
        %950 = vmatpush1.msra.mxu0 0.0
        %951 = vmatprep.subr.mxu0 0.0
        %952 = vmatpush1.msra.mxu0 0.0
        %953 = vmatprep.subr.mxu0 0.0
        %954 = vmatpush1.msra.mxu0 0.0
        %955 = vmatprep.subr.mxu0 0.0
        %956 = vmatpush1.msra.mxu0 0.0
        %957 = vmatprep.subr.mxu0 0.0
        %958 = vmatpush1.msra.mxu0 0.0
        %959 = vmatprep.subr.mxu0 0.0
        %960 = vmatpush1.msra.mxu0 0.0
        %961 = vmatprep.subr.mxu0 0.0
        %962 = vmatpush1.msra.mxu0 0.0
        %963 = vmatprep.subr.mxu0 0.0
        %964 = vmatpush1.msra.mxu0 0.0
        %965 = vmatprep.subr.mxu0 0.0
        %966 = vmatpush1.msra.mxu0 0.0
        %967 = vmatprep.subr.mxu0 0.0
        %968 = vmatpush1.msra.mxu0 0.0
        %969 = vmatprep.subr.mxu0 0.0
        %970 = vmatpush1.msra.mxu0 0.0
        %971 = vmatprep.subr.mxu0 0.0
        %972 = vmatpush1.msra.mxu0 0.0
        %973 = vmatprep.subr.mxu0 0.0
        %974 = vmatpush1.msra.mxu0 %v928
        %975 = vmatprep.subr.mxu0 0.0
        %976 = vmatpush1.msra.mxu0 %v927
        %977 = vmatprep.subr.mxu0 0.0
        %978 = vmatpush1.msra.mxu0 %v926
        %979 = vmatprep.subr.mxu0 0.0
        %980 = vmatpush1.msra.mxu0 %v925
        %981 = vmatprep.subr.mxu0 0.0
        %982 = vmatpush2.msra.mxu0 0.0
        %983 = vmatprep.subr.mxu0 0.0
        %984 = vmatpush2.msra.mxu0 0.0
        %985 = vmatprep.subr.mxu0 0.0
        %986 = vmatpush2.msra.mxu0 0.0
        %987 = vmatprep.subr.mxu0 0.0
        %988 = vmatpush2.msra.mxu0 0.0
        %989 = vmatprep.subr.mxu0 0.0
        %990 = vmatpush2.msra.mxu0 0.0
        %991 = vmatprep.subr.mxu0 0.0
        %992 = vmatpush2.msra.mxu0 0.0
        %993 = vmatprep.subr.mxu0 0.0
        %994 = vmatpush2.msra.mxu0 0.0
        %995 = vmatprep.subr.mxu0 0.0
        %996 = vmatpush2.msra.mxu0 0.0
        %997 = vmatprep.subr.mxu0 0.0
        %998 = vmatpush2.msra.mxu0 0.0
        %999 = vmatprep.subr.mxu0 0.0
        %1000 = vmatpush2.msra.mxu0 0.0
        %1001 = vmatprep.subr.mxu0 0.0
        %1002 = vmatpush2.msra.mxu0 0.0
        %1003 = vmatprep.subr.mxu0 0.0
        %1004 = vmatpush2.msra.mxu0 0.0
        %1005 = vmatprep.subr.mxu0 0.0
        %1006 = vmatpush2.msra.mxu0 0.0
        %1007 = vmatprep.subr.mxu0 0.0
        %1008 = vmatpush2.msra.mxu0 0.0
        %1009 = vmatprep.subr.mxu0 0.0
        %1010 = vmatpush2.msra.mxu0 0.0
        %1011 = vmatprep.subr.mxu0 0.0
        %1012 = vmatpush2.msra.mxu0 0.0
        %1013 = vmatprep.mubr.f32.mxu0 0.0
        %1014 = vmatmul.mubr.f32.gmra.mxu0 %v938
        %v1015 = vpop.f32.mrf.mxu0
        %v1016 = vadd.f32 %v934, %v1015
        %v1017 = vpop.f32.mrf.mxu0
        %1018 = vmatprep.mubr.f32.mxu0 0.0
        %1019 = vmatmul.mubr.f32.gmra.mxu0 %v941
        %v1020 = vpop.f32.mrf.mxu0
        %v1021 = vadd.f32 %v934, %v1020
        %v1022 = vpop.f32.mrf.mxu0
        %1023 = vmatprep.mubr.f32.mxu0 0.0
        %1024 = vmatmul.mubr.f32.gmra.mxu0 %v944
        %v1025 = vpop.f32.mrf.mxu0
        %v1026 = vadd.f32 %v934, %v1025
        %v1027 = vpop.f32.mrf.mxu0
        %1028 = vmatprep.mubr.f32.mxu0 0.0
        %1029 = vmatmul.mubr.f32.gmra.mxu0 %v947
        %v1030 = vpop.f32.mrf.mxu0
        %v1031 = vadd.f32 %v934, %v1030
        %v1032 = vpop.f32.mrf.mxu0
        %1033 = vdwg.mxu0
        %v1034 = vld [vmem:[%s855] sm:$0xff]
        %v1035 = vld [vmem:[%s855 + $0x8] sm:$0xff]
        %v1036 = vld [vmem:[%s855 + $0x10] sm:$0xff]
        %v1037 = vld [vmem:[%s855 + $0x18] sm:$0xff]
        %v1038 = vld [vmem:[%s866] sm:$0x1]
        %v1040 = vlaneseq
        %v1041 = vshrl.u32 %v1040, 7
        %v1042 = vsub.s32 0, %v1041
        %v1043 = vrot.slane %v1038, %v1042
        %1045 = vmatprep.subr.mxu0 0.0
        %1046 = vmatpush1.msra.mxu0 0.0
        %1047 = vmatprep.subr.mxu0 0.0
        %1048 = vmatpush1.msra.mxu0 0.0
        %1049 = vmatprep.subr.mxu0 0.0
        %1050 = vmatpush1.msra.mxu0 0.0
        %1051 = vmatprep.subr.mxu0 0.0
        %1052 = vmatpush1.msra.mxu0 0.0
        %1053 = vmatprep.subr.mxu0 0.0
        %1054 = vmatpush1.msra.mxu0 0.0
        %1055 = vmatprep.subr.mxu0 0.0
        %1056 = vmatpush1.msra.mxu0 0.0
        %1057 = vmatprep.subr.mxu0 0.0
        %1058 = vmatpush1.msra.mxu0 0.0
        %1059 = vmatprep.subr.mxu0 0.0
        %1060 = vmatpush1.msra.mxu0 0.0
        %1061 = vmatprep.subr.mxu0 0.0
        %1062 = vmatpush1.msra.mxu0 0.0
        %1063 = vmatprep.subr.mxu0 0.0
        %1064 = vmatpush1.msra.mxu0 0.0
        %1065 = vmatprep.subr.mxu0 0.0
        %1066 = vmatpush1.msra.mxu0 0.0
        %1067 = vmatprep.subr.mxu0 0.0
        %1068 = vmatpush1.msra.mxu0 0.0
        %1069 = vmatprep.subr.mxu0 0.0
        %1070 = vmatpush1.msra.mxu0 %v1037
        %1071 = vmatprep.subr.mxu0 0.0
        %1072 = vmatpush1.msra.mxu0 %v1036
        %1073 = vmatprep.subr.mxu0 0.0
        %1074 = vmatpush1.msra.mxu0 %v1035
        %1075 = vmatprep.subr.mxu0 0.0
        %1076 = vmatpush1.msra.mxu0 %v1034
        %1077 = vmatprep.subr.mxu0 0.0
        %1078 = vmatpush2.msra.mxu0 0.0
        %1079 = vmatprep.subr.mxu0 0.0
        %1080 = vmatpush2.msra.mxu0 0.0
        %1081 = vmatprep.subr.mxu0 0.0
        %1082 = vmatpush2.msra.mxu0 0.0
        %1083 = vmatprep.subr.mxu0 0.0
        %1084 = vmatpush2.msra.mxu0 0.0
        %1085 = vmatprep.subr.mxu0 0.0
        %1086 = vmatpush2.msra.mxu0 0.0
        %1087 = vmatprep.subr.mxu0 0.0
        %1088 = vmatpush2.msra.mxu0 0.0
        %1089 = vmatprep.subr.mxu0 0.0
        %1090 = vmatpush2.msra.mxu0 0.0
        %1091 = vmatprep.subr.mxu0 0.0
        %1092 = vmatpush2.msra.mxu0 0.0
        %1093 = vmatprep.subr.mxu0 0.0
        %1094 = vmatpush2.msra.mxu0 0.0
        %1095 = vmatprep.subr.mxu0 0.0
        %1096 = vmatpush2.msra.mxu0 0.0
        %1097 = vmatprep.subr.mxu0 0.0
        %1098 = vmatpush2.msra.mxu0 0.0
        %1099 = vmatprep.subr.mxu0 0.0
        %1100 = vmatpush2.msra.mxu0 0.0
        %1101 = vmatprep.subr.mxu0 0.0
        %1102 = vmatpush2.msra.mxu0 0.0
        %1103 = vmatprep.subr.mxu0 0.0
        %1104 = vmatpush2.msra.mxu0 0.0
        %1105 = vmatprep.subr.mxu0 0.0
        %1106 = vmatpush2.msra.mxu0 0.0
        %1107 = vmatprep.subr.mxu0 0.0
        %1108 = vmatpush2.msra.mxu0 0.0
        %1109 = vmatprep.mubr.f32.mxu0 0.0
        %1110 = vmatmul.mubr.f32.gmra.mxu0 %v938
        %v1111 = vpop.f32.mrf.mxu0
        %v1112 = vadd.f32 %v1043, %v1111
        %v1113 = vpop.f32.mrf.mxu0
        %1114 = vmatprep.mubr.f32.mxu0 0.0
        %1115 = vmatmul.mubr.f32.gmra.mxu0 %v941
        %v1116 = vpop.f32.mrf.mxu0
        %v1117 = vadd.f32 %v1043, %v1116
        %v1118 = vpop.f32.mrf.mxu0
        %1119 = vmatprep.mubr.f32.mxu0 0.0
        %1120 = vmatmul.mubr.f32.gmra.mxu0 %v944
        %v1121 = vpop.f32.mrf.mxu0
        %v1122 = vadd.f32 %v1043, %v1121
        %v1123 = vpop.f32.mrf.mxu0
        %1124 = vmatprep.mubr.f32.mxu0 0.0
        %1125 = vmatmul.mubr.f32.gmra.mxu0 %v947
        %v1126 = vpop.f32.mrf.mxu0
        %v1127 = vadd.f32 %v1043, %v1126
        %v1128 = vpop.f32.mrf.mxu0
        %1129 = vdwg.mxu0
        %v1130 = vld [vmem:[%s860] sm:$0xff]
        %v1131 = vld [vmem:[%s860 + $0x8] sm:$0xff]
        %v1132 = vld [vmem:[%s860 + $0x10] sm:$0xff]
        %v1133 = vld [vmem:[%s860 + $0x18] sm:$0xff]
        %v1134 = vld [vmem:[%s869] sm:$0x1]
        %v1136 = vlaneseq
        %v1137 = vshrl.u32 %v1136, 7
        %v1138 = vsub.s32 0, %v1137
        %v1139 = vrot.slane %v1134, %v1138
        %1141 = vmatprep.subr.mxu0 0.0
        %1142 = vmatpush1.msra.mxu0 0.0
        %1143 = vmatprep.subr.mxu0 0.0
        %1144 = vmatpush1.msra.mxu0 0.0
        %1145 = vmatprep.subr.mxu0 0.0
        %1146 = vmatpush1.msra.mxu0 0.0
        %1147 = vmatprep.subr.mxu0 0.0
        %1148 = vmatpush1.msra.mxu0 0.0
        %1149 = vmatprep.subr.mxu0 0.0
        %1150 = vmatpush1.msra.mxu0 0.0
        %1151 = vmatprep.subr.mxu0 0.0
        %1152 = vmatpush1.msra.mxu0 0.0
        %1153 = vmatprep.subr.mxu0 0.0
        %1154 = vmatpush1.msra.mxu0 0.0
        %1155 = vmatprep.subr.mxu0 0.0
        %1156 = vmatpush1.msra.mxu0 0.0
        %1157 = vmatprep.subr.mxu0 0.0
        %1158 = vmatpush1.msra.mxu0 0.0
        %1159 = vmatprep.subr.mxu0 0.0
        %1160 = vmatpush1.msra.mxu0 0.0
        %1161 = vmatprep.subr.mxu0 0.0
        %1162 = vmatpush1.msra.mxu0 0.0
        %1163 = vmatprep.subr.mxu0 0.0
        %1164 = vmatpush1.msra.mxu0 0.0
        %1165 = vmatprep.subr.mxu0 0.0
        %1166 = vmatpush1.msra.mxu0 %v1133
        %1167 = vmatprep.subr.mxu0 0.0
        %1168 = vmatpush1.msra.mxu0 %v1132
        %1169 = vmatprep.subr.mxu0 0.0
        %1170 = vmatpush1.msra.mxu0 %v1131
        %1171 = vmatprep.subr.mxu0 0.0
        %1172 = vmatpush1.msra.mxu0 %v1130
        %1173 = vmatprep.subr.mxu0 0.0
        %1174 = vmatpush2.msra.mxu0 0.0
        %1175 = vmatprep.subr.mxu0 0.0
        %1176 = vmatpush2.msra.mxu0 0.0
        %1177 = vmatprep.subr.mxu0 0.0
        %1178 = vmatpush2.msra.mxu0 0.0
        %1179 = vmatprep.subr.mxu0 0.0
        %1180 = vmatpush2.msra.mxu0 0.0
        %1181 = vmatprep.subr.mxu0 0.0
        %1182 = vmatpush2.msra.mxu0 0.0
        %1183 = vmatprep.subr.mxu0 0.0
        %1184 = vmatpush2.msra.mxu0 0.0
        %1185 = vmatprep.subr.mxu0 0.0
        %1186 = vmatpush2.msra.mxu0 0.0
        %1187 = vmatprep.subr.mxu0 0.0
        %1188 = vmatpush2.msra.mxu0 0.0
        %1189 = vmatprep.subr.mxu0 0.0
        %1190 = vmatpush2.msra.mxu0 0.0
        %1191 = vmatprep.subr.mxu0 0.0
        %1192 = vmatpush2.msra.mxu0 0.0
        %1193 = vmatprep.subr.mxu0 0.0
        %1194 = vmatpush2.msra.mxu0 0.0
        %1195 = vmatprep.subr.mxu0 0.0
        %1196 = vmatpush2.msra.mxu0 0.0
        %1197 = vmatprep.subr.mxu0 0.0
        %1198 = vmatpush2.msra.mxu0 0.0
        %1199 = vmatprep.subr.mxu0 0.0
        %1200 = vmatpush2.msra.mxu0 0.0
        %1201 = vmatprep.subr.mxu0 0.0
        %1202 = vmatpush2.msra.mxu0 0.0
        %1203 = vmatprep.subr.mxu0 0.0
        %1204 = vmatpush2.msra.mxu0 0.0
        %1205 = vmatprep.mubr.f32.mxu0 0.0
        %1206 = vmatmul.mubr.f32.gmra.mxu0 %v938
        %v1207 = vpop.f32.mrf.mxu0
        %v1208 = vadd.f32 %v1139, %v1207
        %v1209 = vpop.f32.mrf.mxu0
        %1210 = vmatprep.mubr.f32.mxu0 0.0
        %1211 = vmatmul.mubr.f32.gmra.mxu0 %v941
        %v1212 = vpop.f32.mrf.mxu0
        %v1213 = vadd.f32 %v1139, %v1212
        %v1214 = vpop.f32.mrf.mxu0
        %1215 = vmatprep.mubr.f32.mxu0 0.0
        %1216 = vmatmul.mubr.f32.gmra.mxu0 %v944
        %v1217 = vpop.f32.mrf.mxu0
        %v1218 = vadd.f32 %v1139, %v1217
        %v1219 = vpop.f32.mrf.mxu0
        %1220 = vmatprep.mubr.f32.mxu0 0.0
        %1221 = vmatmul.mubr.f32.gmra.mxu0 %v947
        %v1222 = vpop.f32.mrf.mxu0
        %v1223 = vadd.f32 %v1139, %v1222
        %v1224 = vpop.f32.mrf.mxu0
        %1225 = vdwg.mxu0
        %v1226 = vld [vmem:[%s728] sm:$0xff]
        %v1227 = vld [vmem:[%s728 + $0x8] sm:$0xff]
        %v1228 = vld [vmem:[%s728 + $0x10] sm:$0xff]
        %v1229 = vld [vmem:[%s728 + $0x18] sm:$0xff]
        %v1230 = vmul.f32 %v1016, 0.35355338
        %v1231 = vmul.f32 %v1021, 0.35355338
        %vm1232 = vcmask 64512
        %v1234 = vsel %vm1232, %v1230, 0
        %v1237 = vsel %vm1232, %v1231, 0
        %v1240 = vsel %vm1232, %v1112, 0
        %v1243 = vsel %vm1232, %v1117, 0
        %1245 = vmatprep.subr.mxu0 0.0
        %1246 = vmatpush1.xpose.msra.mxu0 0.0
        %1247 = vmatprep.subr.mxu0 0.0
        %1248 = vmatpush1.xpose.msra.mxu0 0.0
        %1249 = vmatprep.subr.mxu0 0.0
        %1250 = vmatpush1.xpose.msra.mxu0 0.0
        %1251 = vmatprep.subr.mxu0 0.0
        %1252 = vmatpush1.xpose.msra.mxu0 0.0
        %1253 = vmatprep.subr.mxu0 0.0
        %1254 = vmatpush1.xpose.msra.mxu0 0.0
        %1255 = vmatprep.subr.mxu0 0.0
        %1256 = vmatpush1.xpose.msra.mxu0 0.0
        %1257 = vmatprep.subr.mxu0 0.0
        %1258 = vmatpush1.xpose.msra.mxu0 0.0
        %1259 = vmatprep.subr.mxu0 0.0
        %1260 = vmatpush1.xpose.msra.mxu0 0.0
        %1261 = vmatprep.subr.mxu0 0.0
        %1262 = vmatpush1.xpose.msra.mxu0 0.0
        %1263 = vmatprep.subr.mxu0 0.0
        %1264 = vmatpush1.xpose.msra.mxu0 0.0
        %1265 = vmatprep.subr.mxu0 0.0
        %1266 = vmatpush1.xpose.msra.mxu0 0.0
        %1267 = vmatprep.subr.mxu0 0.0
        %1268 = vmatpush1.xpose.msra.mxu0 0.0
        %1269 = vmatprep.subr.mxu0 0.0
        %1270 = vmatpush1.xpose.msra.mxu0 0.0
        %1271 = vmatprep.subr.mxu0 0.0
        %1272 = vmatpush1.xpose.msra.mxu0 0.0
        %1273 = vmatprep.subr.mxu0 0.0
        %1274 = vmatpush1.xpose.msra.mxu0 %v1243
        %1275 = vmatprep.subr.mxu0 0.0
        %1276 = vmatpush1.xpose.msra.mxu0 %v1240
        %1277 = vmatprep.subr.mxu0 0.0
        %1278 = vmatpush2.xpose.msra.mxu0 0.0
        %1279 = vmatprep.subr.mxu0 0.0
        %1280 = vmatpush2.xpose.msra.mxu0 0.0
        %1281 = vmatprep.subr.mxu0 0.0
        %1282 = vmatpush2.xpose.msra.mxu0 0.0
        %1283 = vmatprep.subr.mxu0 0.0
        %1284 = vmatpush2.xpose.msra.mxu0 0.0
        %1285 = vmatprep.subr.mxu0 0.0
        %1286 = vmatpush2.xpose.msra.mxu0 0.0
        %1287 = vmatprep.subr.mxu0 0.0
        %1288 = vmatpush2.xpose.msra.mxu0 0.0
        %1289 = vmatprep.subr.mxu0 0.0
        %1290 = vmatpush2.xpose.msra.mxu0 0.0
        %1291 = vmatprep.subr.mxu0 0.0
        %1292 = vmatpush2.xpose.msra.mxu0 0.0
        %1293 = vmatprep.subr.mxu0 0.0
        %1294 = vmatpush2.xpose.msra.mxu0 0.0
        %1295 = vmatprep.subr.mxu0 0.0
        %1296 = vmatpush2.xpose.msra.mxu0 0.0
        %1297 = vmatprep.subr.mxu0 0.0
        %1298 = vmatpush2.xpose.msra.mxu0 0.0
        %1299 = vmatprep.subr.mxu0 0.0
        %1300 = vmatpush2.xpose.msra.mxu0 0.0
        %1301 = vmatprep.subr.mxu0 0.0
        %1302 = vmatpush2.xpose.msra.mxu0 0.0
        %1303 = vmatprep.subr.mxu0 0.0
        %1304 = vmatpush2.xpose.msra.mxu0 0.0
        %1305 = vmatprep.subr.mxu0 0.0
        %1306 = vmatpush2.xpose.msra.mxu0 0.0
        %1307 = vmatprep.subr.mxu0 0.0
        %1308 = vmatpush2.xpose.msra.mxu0 0.0
        %1309 = vmatprep.mubr.f32.mxu0 0.0
        %1310 = vmatmul.mubr.f32.gmra.mxu0 %v1234
        %v1311 = vpop.f32.mrf.mxu0
        %v1312 = vadd.f32 %v923, %v1311
        %v1313 = vpop.f32.mrf.mxu0
        %1314 = vmatprep.mubr.f32.mxu0 0.0
        %1315 = vmatmul.mubr.f32.gmra.mxu0 %v1237
        %v1316 = vpop.f32.mrf.mxu0
        %v1317 = vadd.f32 %v924, %v1316
        %v1318 = vpop.f32.mrf.mxu0
        %1319 = vdwg.mxu0
        %vm1320 = vcmask 130048
        %v1321 = vsel %vm1320, %v1312, -inf
        %1322 = vmax.xlane.f32.xlu0 %v1321
        %v1323 = vpop.xlane.xlu0 %1322
        %v1324 = vsel %vm1320, %v1317, -inf
        %1325 = vmax.xlane.f32.xlu0 %v1324
        %v1326 = vpop.xlane.xlu0 %1325
        %v1327 = vsub.f32 %v1312, %v1323
        %v1328 = vsub.f32 %v1317, %v1326
        %v1329 = vmul.f32 %v1327, 1.442695
        %v1330 = vpow.pop %v1329
        %v1331 = vmul.f32 %v1328, 1.442695
        %v1332 = vpow.pop %v1331
        %v1333 = vsel %vm1320, %v1330, 0.0
        %1334 = vadd.xlane.f32.xlu0 %v1333
        %v1335 = vpop.xlane.xlu0 %1334
        %v1336 = vsel %vm1320, %v1332, 0.0
        %1337 = vadd.xlane.f32.xlu0 %v1336
        %v1338 = vpop.xlane.xlu0 %1337
        %v1339 = vrcp.pop %v1335
        %v1340 = vrcp.pop %v1338
        %v1341 = vmul.f32 %v1330, %v1339
        %v1342 = vmul.f32 %v1332, %v1340
        %v1344 = vsel %vm1320, %v1341, 0
        %v1347 = vsel %vm1320, %v1342, 0
        %1349 = vmatprep.subr.mxu0 0.0
        %1350 = vmatpush1.msra.mxu0 0.0
        %1351 = vmatprep.subr.mxu0 0.0
        %1352 = vmatpush1.msra.mxu0 0.0
        %1353 = vmatprep.subr.mxu0 0.0
        %1354 = vmatpush1.msra.mxu0 0.0
        %1355 = vmatprep.subr.mxu0 0.0
        %1356 = vmatpush1.msra.mxu0 0.0
        %1357 = vmatprep.subr.mxu0 0.0
        %1358 = vmatpush1.msra.mxu0 0.0
        %1359 = vmatprep.subr.mxu0 0.0
        %1360 = vmatpush1.msra.mxu0 0.0
        %1361 = vmatprep.subr.mxu0 0.0
        %1362 = vmatpush1.msra.mxu0 0.0
        %1363 = vmatprep.subr.mxu0 0.0
        %1364 = vmatpush1.msra.mxu0 0.0
        %1365 = vmatprep.subr.mxu0 0.0
        %1366 = vmatpush1.msra.mxu0 0.0
        %1367 = vmatprep.subr.mxu0 0.0
        %1368 = vmatpush1.msra.mxu0 0.0
        %1369 = vmatprep.subr.mxu0 0.0
        %1370 = vmatpush1.msra.mxu0 0.0
        %1371 = vmatprep.subr.mxu0 0.0
        %1372 = vmatpush1.msra.mxu0 0.0
        %1373 = vmatprep.subr.mxu0 0.0
        %1374 = vmatpush1.msra.mxu0 0.0
        %1375 = vmatprep.subr.mxu0 0.0
        %1376 = vmatpush1.msra.mxu0 0.0
        %1377 = vmatprep.subr.mxu0 0.0
        %1378 = vmatpush1.msra.mxu0 %v1213
        %1379 = vmatprep.subr.mxu0 0.0
        %1380 = vmatpush1.msra.mxu0 %v1208
        %1381 = vmatprep.subr.mxu0 0.0
        %1382 = vmatpush2.msra.mxu0 0.0
        %1383 = vmatprep.subr.mxu0 0.0
        %1384 = vmatpush2.msra.mxu0 0.0
        %1385 = vmatprep.subr.mxu0 0.0
        %1386 = vmatpush2.msra.mxu0 0.0
        %1387 = vmatprep.subr.mxu0 0.0
        %1388 = vmatpush2.msra.mxu0 0.0
        %1389 = vmatprep.subr.mxu0 0.0
        %1390 = vmatpush2.msra.mxu0 0.0
        %1391 = vmatprep.subr.mxu0 0.0
        %1392 = vmatpush2.msra.mxu0 0.0
        %1393 = vmatprep.subr.mxu0 0.0
        %1394 = vmatpush2.msra.mxu0 0.0
        %1395 = vmatprep.subr.mxu0 0.0
        %1396 = vmatpush2.msra.mxu0 0.0
        %1397 = vmatprep.subr.mxu0 0.0
        %1398 = vmatpush2.msra.mxu0 0.0
        %1399 = vmatprep.subr.mxu0 0.0
        %1400 = vmatpush2.msra.mxu0 0.0
        %1401 = vmatprep.subr.mxu0 0.0
        %1402 = vmatpush2.msra.mxu0 0.0
        %1403 = vmatprep.subr.mxu0 0.0
        %1404 = vmatpush2.msra.mxu0 0.0
        %1405 = vmatprep.subr.mxu0 0.0
        %1406 = vmatpush2.msra.mxu0 0.0
        %1407 = vmatprep.subr.mxu0 0.0
        %1408 = vmatpush2.msra.mxu0 0.0
        %1409 = vmatprep.subr.mxu0 0.0
        %1410 = vmatpush2.msra.mxu0 0.0
        %1411 = vmatprep.subr.mxu0 0.0
        %1412 = vmatpush2.msra.mxu0 0.0
        %1413 = vmatprep.mubr.f32.mxu0 0.0
        %1414 = vmatmul.mubr.f32.gmra.mxu0 %v1344
        %v1415 = vpop.f32.mrf.mxu0
        %v1416 = vadd.f32 0.0, %v1415
        %v1417 = vpop.f32.mrf.mxu0
        %1418 = vmatprep.mubr.f32.mxu0 0.0
        %1419 = vmatmul.mubr.f32.gmra.mxu0 %v1347
        %v1420 = vpop.f32.mrf.mxu0
        %v1421 = vadd.f32 0.0, %v1420
        %v1422 = vpop.f32.mrf.mxu0
        %1423 = vdwg.mxu0
        %1424 = vrot.lane.b32.xlu0 %v1230, 120
        %v1425 = vpop.permute.xlu0 %1424
        %1426 = vrot.lane.b32.xlu0 %v1231, 120
        %v1427 = vpop.permute.xlu0 %1426
        %1428 = vrot.lane.b32.xlu0 %v1112, 120
        %v1429 = vpop.permute.xlu0 %1428
        %1430 = vrot.lane.b32.xlu0 %v1117, 120
        %v1431 = vpop.permute.xlu0 %1430
        %v1432 = vsel %vm1232, %v1425, 0
        %v1434 = vsel %vm1232, %v1427, 0
        %v1436 = vsel %vm1232, %v1429, 0
        %v1438 = vsel %vm1232, %v1431, 0
        %1440 = vmatprep.subr.mxu0 0.0
        %1441 = vmatpush1.xpose.msra.mxu0 0.0
        %1442 = vmatprep.subr.mxu0 0.0
        %1443 = vmatpush1.xpose.msra.mxu0 0.0
        %1444 = vmatprep.subr.mxu0 0.0
        %1445 = vmatpush1.xpose.msra.mxu0 0.0
        %1446 = vmatprep.subr.mxu0 0.0
        %1447 = vmatpush1.xpose.msra.mxu0 0.0
        %1448 = vmatprep.subr.mxu0 0.0
        %1449 = vmatpush1.xpose.msra.mxu0 0.0
        %1450 = vmatprep.subr.mxu0 0.0
        %1451 = vmatpush1.xpose.msra.mxu0 0.0
        %1452 = vmatprep.subr.mxu0 0.0
        %1453 = vmatpush1.xpose.msra.mxu0 0.0
        %1454 = vmatprep.subr.mxu0 0.0
        %1455 = vmatpush1.xpose.msra.mxu0 0.0
        %1456 = vmatprep.subr.mxu0 0.0
        %1457 = vmatpush1.xpose.msra.mxu0 0.0
        %1458 = vmatprep.subr.mxu0 0.0
        %1459 = vmatpush1.xpose.msra.mxu0 0.0
        %1460 = vmatprep.subr.mxu0 0.0
        %1461 = vmatpush1.xpose.msra.mxu0 0.0
        %1462 = vmatprep.subr.mxu0 0.0
        %1463 = vmatpush1.xpose.msra.mxu0 0.0
        %1464 = vmatprep.subr.mxu0 0.0
        %1465 = vmatpush1.xpose.msra.mxu0 0.0
        %1466 = vmatprep.subr.mxu0 0.0
        %1467 = vmatpush1.xpose.msra.mxu0 0.0
        %1468 = vmatprep.subr.mxu0 0.0
        %1469 = vmatpush1.xpose.msra.mxu0 %v1438
        %1470 = vmatprep.subr.mxu0 0.0
        %1471 = vmatpush1.xpose.msra.mxu0 %v1436
        %1472 = vmatprep.subr.mxu0 0.0
        %1473 = vmatpush2.xpose.msra.mxu0 0.0
        %1474 = vmatprep.subr.mxu0 0.0
        %1475 = vmatpush2.xpose.msra.mxu0 0.0
        %1476 = vmatprep.subr.mxu0 0.0
        %1477 = vmatpush2.xpose.msra.mxu0 0.0
        %1478 = vmatprep.subr.mxu0 0.0
        %1479 = vmatpush2.xpose.msra.mxu0 0.0
        %1480 = vmatprep.subr.mxu0 0.0
        %1481 = vmatpush2.xpose.msra.mxu0 0.0
        %1482 = vmatprep.subr.mxu0 0.0
        %1483 = vmatpush2.xpose.msra.mxu0 0.0
        %1484 = vmatprep.subr.mxu0 0.0
        %1485 = vmatpush2.xpose.msra.mxu0 0.0
        %1486 = vmatprep.subr.mxu0 0.0
        %1487 = vmatpush2.xpose.msra.mxu0 0.0
        %1488 = vmatprep.subr.mxu0 0.0
        %1489 = vmatpush2.xpose.msra.mxu0 0.0
        %1490 = vmatprep.subr.mxu0 0.0
        %1491 = vmatpush2.xpose.msra.mxu0 0.0
        %1492 = vmatprep.subr.mxu0 0.0
        %1493 = vmatpush2.xpose.msra.mxu0 0.0
        %1494 = vmatprep.subr.mxu0 0.0
        %1495 = vmatpush2.xpose.msra.mxu0 0.0
        %1496 = vmatprep.subr.mxu0 0.0
        %1497 = vmatpush2.xpose.msra.mxu0 0.0
        %1498 = vmatprep.subr.mxu0 0.0
        %1499 = vmatpush2.xpose.msra.mxu0 0.0
        %1500 = vmatprep.subr.mxu0 0.0
        %1501 = vmatpush2.xpose.msra.mxu0 0.0
        %1502 = vmatprep.subr.mxu0 0.0
        %1503 = vmatpush2.xpose.msra.mxu0 0.0
        %1504 = vmatprep.mubr.f32.mxu0 0.0
        %1505 = vmatmul.mubr.f32.gmra.mxu0 %v1432
        %v1506 = vpop.f32.mrf.mxu0
        %v1507 = vadd.f32 %v923, %v1506
        %v1508 = vpop.f32.mrf.mxu0
        %1509 = vmatprep.mubr.f32.mxu0 0.0
        %1510 = vmatmul.mubr.f32.gmra.mxu0 %v1434
        %v1511 = vpop.f32.mrf.mxu0
        %v1512 = vadd.f32 %v924, %v1511
        %v1513 = vpop.f32.mrf.mxu0
        %1514 = vdwg.mxu0
        %v1515 = vsel %vm1320, %v1507, -inf
        %1516 = vmax.xlane.f32.xlu0 %v1515
        %v1517 = vpop.xlane.xlu0 %1516
        %v1518 = vsel %vm1320, %v1512, -inf
        %1519 = vmax.xlane.f32.xlu0 %v1518
        %v1520 = vpop.xlane.xlu0 %1519
        %v1521 = vsub.f32 %v1507, %v1517
        %v1522 = vsub.f32 %v1512, %v1520
        %v1523 = vmul.f32 %v1521, 1.442695
        %v1524 = vpow.pop %v1523
        %v1525 = vmul.f32 %v1522, 1.442695
        %v1526 = vpow.pop %v1525
        %v1527 = vsel %vm1320, %v1524, 0.0
        %1528 = vadd.xlane.f32.xlu0 %v1527
        %v1529 = vpop.xlane.xlu0 %1528
        %v1530 = vsel %vm1320, %v1526, 0.0
        %1531 = vadd.xlane.f32.xlu0 %v1530
        %v1532 = vpop.xlane.xlu0 %1531
        %v1533 = vrcp.pop %v1529
        %v1534 = vrcp.pop %v1532
        %v1535 = vmul.f32 %v1524, %v1533
        %v1536 = vmul.f32 %v1526, %v1534
        %1539 = vrot.lane.b32.xlu0 %v1208, 120
        %v1540 = vpop.permute.xlu0 %1539
        %1541 = vrot.lane.b32.xlu0 %v1213, 120
        %v1542 = vpop.permute.xlu0 %1541
        %v1546 = vsel %vm1320, %v1535, 0
        %v1549 = vsel %vm1320, %v1536, 0
        %1551 = vmatprep.subr.mxu0 0.0
        %1552 = vmatpush1.msra.mxu0 0.0
        %1553 = vmatprep.subr.mxu0 0.0
        %1554 = vmatpush1.msra.mxu0 0.0
        %1555 = vmatprep.subr.mxu0 0.0
        %1556 = vmatpush1.msra.mxu0 0.0
        %1557 = vmatprep.subr.mxu0 0.0
        %1558 = vmatpush1.msra.mxu0 0.0
        %1559 = vmatprep.subr.mxu0 0.0
        %1560 = vmatpush1.msra.mxu0 0.0
        %1561 = vmatprep.subr.mxu0 0.0
        %1562 = vmatpush1.msra.mxu0 0.0
        %1563 = vmatprep.subr.mxu0 0.0
        %1564 = vmatpush1.msra.mxu0 0.0
        %1565 = vmatprep.subr.mxu0 0.0
        %1566 = vmatpush1.msra.mxu0 0.0
        %1567 = vmatprep.subr.mxu0 0.0
        %1568 = vmatpush1.msra.mxu0 0.0
        %1569 = vmatprep.subr.mxu0 0.0
        %1570 = vmatpush1.msra.mxu0 0.0
        %1571 = vmatprep.subr.mxu0 0.0
        %1572 = vmatpush1.msra.mxu0 0.0
        %1573 = vmatprep.subr.mxu0 0.0
        %1574 = vmatpush1.msra.mxu0 0.0
        %1575 = vmatprep.subr.mxu0 0.0
        %1576 = vmatpush1.msra.mxu0 0.0
        %1577 = vmatprep.subr.mxu0 0.0
        %1578 = vmatpush1.msra.mxu0 0.0
        %1579 = vmatprep.subr.mxu0 0.0
        %1580 = vmatpush1.msra.mxu0 %v1542
        %1581 = vmatprep.subr.mxu0 0.0
        %1582 = vmatpush1.msra.mxu0 %v1540
        %1583 = vmatprep.subr.mxu0 0.0
        %1584 = vmatpush2.msra.mxu0 0.0
        %1585 = vmatprep.subr.mxu0 0.0
        %1586 = vmatpush2.msra.mxu0 0.0
        %1587 = vmatprep.subr.mxu0 0.0
        %1588 = vmatpush2.msra.mxu0 0.0
        %1589 = vmatprep.subr.mxu0 0.0
        %1590 = vmatpush2.msra.mxu0 0.0
        %1591 = vmatprep.subr.mxu0 0.0
        %1592 = vmatpush2.msra.mxu0 0.0
        %1593 = vmatprep.subr.mxu0 0.0
        %1594 = vmatpush2.msra.mxu0 0.0
        %1595 = vmatprep.subr.mxu0 0.0
        %1596 = vmatpush2.msra.mxu0 0.0
        %1597 = vmatprep.subr.mxu0 0.0
        %1598 = vmatpush2.msra.mxu0 0.0
        %1599 = vmatprep.subr.mxu0 0.0
        %1600 = vmatpush2.msra.mxu0 0.0
        %1601 = vmatprep.subr.mxu0 0.0
        %1602 = vmatpush2.msra.mxu0 0.0
        %1603 = vmatprep.subr.mxu0 0.0
        %1604 = vmatpush2.msra.mxu0 0.0
        %1605 = vmatprep.subr.mxu0 0.0
        %1606 = vmatpush2.msra.mxu0 0.0
        %1607 = vmatprep.subr.mxu0 0.0
        %1608 = vmatpush2.msra.mxu0 0.0
        %1609 = vmatprep.subr.mxu0 0.0
        %1610 = vmatpush2.msra.mxu0 0.0
        %1611 = vmatprep.subr.mxu0 0.0
        %1612 = vmatpush2.msra.mxu0 0.0
        %1613 = vmatprep.subr.mxu0 0.0
        %1614 = vmatpush2.msra.mxu0 0.0
        %1615 = vmatprep.mubr.f32.mxu0 0.0
        %1616 = vmatmul.mubr.f32.gmra.mxu0 %v1546
        %v1617 = vpop.f32.mrf.mxu0
        %v1618 = vadd.f32 0.0, %v1617
        %v1619 = vpop.f32.mrf.mxu0
        %1620 = vmatprep.mubr.f32.mxu0 0.0
        %1621 = vmatmul.mubr.f32.gmra.mxu0 %v1549
        %v1622 = vpop.f32.mrf.mxu0
        %v1623 = vadd.f32 0.0, %v1622
        %v1624 = vpop.f32.mrf.mxu0
        %1625 = vdwg.mxu0
        %v1627 = vsel %vm1232, %v1618, 0
        %v1630 = vsel %vm1232, %v1623, 0
        %1632 = vmatprep.subr.mxu0 0.0
        %1633 = vmatpush1.msra.mxu0 0.0
        %1634 = vmatprep.subr.mxu0 0.0
        %1635 = vmatpush1.msra.mxu0 0.0
        %1636 = vmatprep.subr.mxu0 0.0
        %1637 = vmatpush1.msra.mxu0 0.0
        %1638 = vmatprep.subr.mxu0 0.0
        %1639 = vmatpush1.msra.mxu0 0.0
        %1640 = vmatprep.subr.mxu0 0.0
        %1641 = vmatpush1.msra.mxu0 0.0
        %1642 = vmatprep.subr.mxu0 0.0
        %1643 = vmatpush1.msra.mxu0 0.0
        %1644 = vmatprep.subr.mxu0 0.0
        %1645 = vmatpush1.msra.mxu0 0.0
        %1646 = vmatprep.subr.mxu0 0.0
        %1647 = vmatpush1.msra.mxu0 0.0
        %1648 = vmatprep.subr.mxu0 0.0
        %1649 = vmatpush1.msra.mxu0 0.0
        %1650 = vmatprep.subr.mxu0 0.0
        %1651 = vmatpush1.msra.mxu0 0.0
        %1652 = vmatprep.subr.mxu0 0.0
        %1653 = vmatpush1.msra.mxu0 0.0
        %1654 = vmatprep.subr.mxu0 0.0
        %1655 = vmatpush1.msra.mxu0 0.0
        %1656 = vmatprep.subr.mxu0 0.0
        %1657 = vmatpush1.msra.mxu0 0.0
        %1658 = vmatprep.subr.mxu0 0.0
        %1659 = vmatpush1.msra.mxu0 0.0
        %1660 = vmatprep.subr.mxu0 0.0
        %1661 = vmatpush1.msra.mxu0 0.0
        %1662 = vmatprep.subr.mxu0 0.0
        %1663 = vmatpush1.msra.mxu0 %v1227
        %1664 = vmatprep.subr.mxu0 0.0
        %1665 = vmatpush2.msra.mxu0 0.0
        %1666 = vmatprep.subr.mxu0 0.0
        %1667 = vmatpush2.msra.mxu0 0.0
        %1668 = vmatprep.subr.mxu0 0.0
        %1669 = vmatpush2.msra.mxu0 0.0
        %1670 = vmatprep.subr.mxu0 0.0
        %1671 = vmatpush2.msra.mxu0 0.0
        %1672 = vmatprep.subr.mxu0 0.0
        %1673 = vmatpush2.msra.mxu0 0.0
        %1674 = vmatprep.subr.mxu0 0.0
        %1675 = vmatpush2.msra.mxu0 0.0
        %1676 = vmatprep.subr.mxu0 0.0
        %1677 = vmatpush2.msra.mxu0 0.0
        %1678 = vmatprep.subr.mxu0 0.0
        %1679 = vmatpush2.msra.mxu0 0.0
        %1680 = vmatprep.subr.mxu0 0.0
        %1681 = vmatpush2.msra.mxu0 0.0
        %1682 = vmatprep.subr.mxu0 0.0
        %1683 = vmatpush2.msra.mxu0 0.0
        %1684 = vmatprep.subr.mxu0 0.0
        %1685 = vmatpush2.msra.mxu0 0.0
        %1686 = vmatprep.subr.mxu0 0.0
        %1687 = vmatpush2.msra.mxu0 0.0
        %1688 = vmatprep.subr.mxu0 0.0
        %1689 = vmatpush2.msra.mxu0 0.0
        %1690 = vmatprep.subr.mxu0 0.0
        %1691 = vmatpush2.msra.mxu0 0.0
        %1692 = vmatprep.subr.mxu0 0.0
        %1693 = vmatpush2.msra.mxu0 0.0
        %1694 = vmatprep.subr.mxu0 0.0
        %1695 = vmatpush2.msra.mxu0 0.0
        %1696 = vmatprep.mubr.f32.mxu0 0.0
        %1697 = vmatmul.mubr.f32.gmra.mxu0 %v1627
        %v1698 = vpop.f32.mrf.mxu0
        %v1699 = vadd.f32 0.0, %v1698
        %v1700 = vpop.f32.mrf.mxu0
        %1701 = vmatprep.mubr.f32.mxu0 0.0
        %1702 = vmatmul.mubr.f32.gmra.mxu0 %v1630
        %v1703 = vpop.f32.mrf.mxu0
        %v1704 = vadd.f32 0.0, %v1703
        %v1705 = vpop.f32.mrf.mxu0
        %1706 = vdwg.mxu0
        %v1708 = vsel %vm1232, %v1416, 0
        %v1711 = vsel %vm1232, %v1421, 0
        %1713 = vmatprep.subr.mxu0 0.0
        %1714 = vmatpush1.msra.mxu0 0.0
        %1715 = vmatprep.subr.mxu0 0.0
        %1716 = vmatpush1.msra.mxu0 0.0
        %1717 = vmatprep.subr.mxu0 0.0
        %1718 = vmatpush1.msra.mxu0 0.0
        %1719 = vmatprep.subr.mxu0 0.0
        %1720 = vmatpush1.msra.mxu0 0.0
        %1721 = vmatprep.subr.mxu0 0.0
        %1722 = vmatpush1.msra.mxu0 0.0
        %1723 = vmatprep.subr.mxu0 0.0
        %1724 = vmatpush1.msra.mxu0 0.0
        %1725 = vmatprep.subr.mxu0 0.0
        %1726 = vmatpush1.msra.mxu0 0.0
        %1727 = vmatprep.subr.mxu0 0.0
        %1728 = vmatpush1.msra.mxu0 0.0
        %1729 = vmatprep.subr.mxu0 0.0
        %1730 = vmatpush1.msra.mxu0 0.0
        %1731 = vmatprep.subr.mxu0 0.0
        %1732 = vmatpush1.msra.mxu0 0.0
        %1733 = vmatprep.subr.mxu0 0.0
        %1734 = vmatpush1.msra.mxu0 0.0
        %1735 = vmatprep.subr.mxu0 0.0
        %1736 = vmatpush1.msra.mxu0 0.0
        %1737 = vmatprep.subr.mxu0 0.0
        %1738 = vmatpush1.msra.mxu0 0.0
        %1739 = vmatprep.subr.mxu0 0.0
        %1740 = vmatpush1.msra.mxu0 0.0
        %1741 = vmatprep.subr.mxu0 0.0
        %1742 = vmatpush1.msra.mxu0 0.0
        %1743 = vmatprep.subr.mxu0 0.0
        %1744 = vmatpush1.msra.mxu0 %v1226
        %1745 = vmatprep.subr.mxu0 0.0
        %1746 = vmatpush2.msra.mxu0 0.0
        %1747 = vmatprep.subr.mxu0 0.0
        %1748 = vmatpush2.msra.mxu0 0.0
        %1749 = vmatprep.subr.mxu0 0.0
        %1750 = vmatpush2.msra.mxu0 0.0
        %1751 = vmatprep.subr.mxu0 0.0
        %1752 = vmatpush2.msra.mxu0 0.0
        %1753 = vmatprep.subr.mxu0 0.0
        %1754 = vmatpush2.msra.mxu0 0.0
        %1755 = vmatprep.subr.mxu0 0.0
        %1756 = vmatpush2.msra.mxu0 0.0
        %1757 = vmatprep.subr.mxu0 0.0
        %1758 = vmatpush2.msra.mxu0 0.0
        %1759 = vmatprep.subr.mxu0 0.0
        %1760 = vmatpush2.msra.mxu0 0.0
        %1761 = vmatprep.subr.mxu0 0.0
        %1762 = vmatpush2.msra.mxu0 0.0
        %1763 = vmatprep.subr.mxu0 0.0
        %1764 = vmatpush2.msra.mxu0 0.0
        %1765 = vmatprep.subr.mxu0 0.0
        %1766 = vmatpush2.msra.mxu0 0.0
        %1767 = vmatprep.subr.mxu0 0.0
        %1768 = vmatpush2.msra.mxu0 0.0
        %1769 = vmatprep.subr.mxu0 0.0
        %1770 = vmatpush2.msra.mxu0 0.0
        %1771 = vmatprep.subr.mxu0 0.0
        %1772 = vmatpush2.msra.mxu0 0.0
        %1773 = vmatprep.subr.mxu0 0.0
        %1774 = vmatpush2.msra.mxu0 0.0
        %1775 = vmatprep.subr.mxu0 0.0
        %1776 = vmatpush2.msra.mxu0 0.0
        %1777 = vmatprep.mubr.f32.mxu0 0.0
        %1778 = vmatmul.mubr.f32.gmra.mxu0 %v1708
        %v1779 = vpop.f32.mrf.mxu0
        %v1780 = vadd.f32 %v1699, %v1779
        %v1781 = vpop.f32.mrf.mxu0
        %1782 = vmatprep.mubr.f32.mxu0 0.0
        %1783 = vmatmul.mubr.f32.gmra.mxu0 %v1711
        %v1784 = vpop.f32.mrf.mxu0
        %v1785 = vadd.f32 %v1704, %v1784
        %v1786 = vpop.f32.mrf.mxu0
        %1787 = vdwg.mxu0
        %1788 = vrot.lane.b32.xlu0 %v1230, 112
        %v1789 = vpop.permute.xlu0 %1788
        %1790 = vrot.lane.b32.xlu0 %v1231, 112
        %v1791 = vpop.permute.xlu0 %1790
        %1792 = vrot.lane.b32.xlu0 %v1112, 112
        %v1793 = vpop.permute.xlu0 %1792
        %1794 = vrot.lane.b32.xlu0 %v1117, 112
        %v1795 = vpop.permute.xlu0 %1794
        %v1796 = vsel %vm1232, %v1789, 0
        %v1798 = vsel %vm1232, %v1791, 0
        %v1800 = vsel %vm1232, %v1793, 0
        %v1802 = vsel %vm1232, %v1795, 0
        %1804 = vmatprep.subr.mxu0 0.0
        %1805 = vmatpush1.xpose.msra.mxu0 0.0
        %1806 = vmatprep.subr.mxu0 0.0
        %1807 = vmatpush1.xpose.msra.mxu0 0.0
        %1808 = vmatprep.subr.mxu0 0.0
        %1809 = vmatpush1.xpose.msra.mxu0 0.0
        %1810 = vmatprep.subr.mxu0 0.0
        %1811 = vmatpush1.xpose.msra.mxu0 0.0
        %1812 = vmatprep.subr.mxu0 0.0
        %1813 = vmatpush1.xpose.msra.mxu0 0.0
        %1814 = vmatprep.subr.mxu0 0.0
        %1815 = vmatpush1.xpose.msra.mxu0 0.0
        %1816 = vmatprep.subr.mxu0 0.0
        %1817 = vmatpush1.xpose.msra.mxu0 0.0
        %1818 = vmatprep.subr.mxu0 0.0
        %1819 = vmatpush1.xpose.msra.mxu0 0.0
        %1820 = vmatprep.subr.mxu0 0.0
        %1821 = vmatpush1.xpose.msra.mxu0 0.0
        %1822 = vmatprep.subr.mxu0 0.0
        %1823 = vmatpush1.xpose.msra.mxu0 0.0
        %1824 = vmatprep.subr.mxu0 0.0
        %1825 = vmatpush1.xpose.msra.mxu0 0.0
        %1826 = vmatprep.subr.mxu0 0.0
        %1827 = vmatpush1.xpose.msra.mxu0 0.0
        %1828 = vmatprep.subr.mxu0 0.0
        %1829 = vmatpush1.xpose.msra.mxu0 0.0
        %1830 = vmatprep.subr.mxu0 0.0
        %1831 = vmatpush1.xpose.msra.mxu0 0.0
        %1832 = vmatprep.subr.mxu0 0.0
        %1833 = vmatpush1.xpose.msra.mxu0 %v1802
        %1834 = vmatprep.subr.mxu0 0.0
        %1835 = vmatpush1.xpose.msra.mxu0 %v1800
        %1836 = vmatprep.subr.mxu0 0.0
        %1837 = vmatpush2.xpose.msra.mxu0 0.0
        %1838 = vmatprep.subr.mxu0 0.0
        %1839 = vmatpush2.xpose.msra.mxu0 0.0
        %1840 = vmatprep.subr.mxu0 0.0
        %1841 = vmatpush2.xpose.msra.mxu0 0.0
        %1842 = vmatprep.subr.mxu0 0.0
        %1843 = vmatpush2.xpose.msra.mxu0 0.0
        %1844 = vmatprep.subr.mxu0 0.0
        %1845 = vmatpush2.xpose.msra.mxu0 0.0
        %1846 = vmatprep.subr.mxu0 0.0
        %1847 = vmatpush2.xpose.msra.mxu0 0.0
        %1848 = vmatprep.subr.mxu0 0.0
        %1849 = vmatpush2.xpose.msra.mxu0 0.0
        %1850 = vmatprep.subr.mxu0 0.0
        %1851 = vmatpush2.xpose.msra.mxu0 0.0
        %1852 = vmatprep.subr.mxu0 0.0
        %1853 = vmatpush2.xpose.msra.mxu0 0.0
        %1854 = vmatprep.subr.mxu0 0.0
        %1855 = vmatpush2.xpose.msra.mxu0 0.0
        %1856 = vmatprep.subr.mxu0 0.0
        %1857 = vmatpush2.xpose.msra.mxu0 0.0
        %1858 = vmatprep.subr.mxu0 0.0
        %1859 = vmatpush2.xpose.msra.mxu0 0.0
        %1860 = vmatprep.subr.mxu0 0.0
        %1861 = vmatpush2.xpose.msra.mxu0 0.0
        %1862 = vmatprep.subr.mxu0 0.0
        %1863 = vmatpush2.xpose.msra.mxu0 0.0
        %1864 = vmatprep.subr.mxu0 0.0
        %1865 = vmatpush2.xpose.msra.mxu0 0.0
        %1866 = vmatprep.subr.mxu0 0.0
        %1867 = vmatpush2.xpose.msra.mxu0 0.0
        %1868 = vmatprep.mubr.f32.mxu0 0.0
        %1869 = vmatmul.mubr.f32.gmra.mxu0 %v1796
        %v1870 = vpop.f32.mrf.mxu0
        %v1871 = vadd.f32 %v923, %v1870
        %v1872 = vpop.f32.mrf.mxu0
        %1873 = vmatprep.mubr.f32.mxu0 0.0
        %1874 = vmatmul.mubr.f32.gmra.mxu0 %v1798
        %v1875 = vpop.f32.mrf.mxu0
        %v1876 = vadd.f32 %v924, %v1875
        %v1877 = vpop.f32.mrf.mxu0
        %1878 = vdwg.mxu0
        %v1879 = vsel %vm1320, %v1871, -inf
        %1880 = vmax.xlane.f32.xlu0 %v1879
        %v1881 = vpop.xlane.xlu0 %1880
        %v1882 = vsel %vm1320, %v1876, -inf
        %1883 = vmax.xlane.f32.xlu0 %v1882
        %v1884 = vpop.xlane.xlu0 %1883
        %v1885 = vsub.f32 %v1871, %v1881
        %v1886 = vsub.f32 %v1876, %v1884
        %v1887 = vmul.f32 %v1885, 1.442695
        %v1888 = vpow.pop %v1887
        %v1889 = vmul.f32 %v1886, 1.442695
        %v1890 = vpow.pop %v1889
        %v1891 = vsel %vm1320, %v1888, 0.0
        %1892 = vadd.xlane.f32.xlu0 %v1891
        %v1893 = vpop.xlane.xlu0 %1892
        %v1894 = vsel %vm1320, %v1890, 0.0
        %1895 = vadd.xlane.f32.xlu0 %v1894
        %v1896 = vpop.xlane.xlu0 %1895
        %v1897 = vrcp.pop %v1893
        %v1898 = vrcp.pop %v1896
        %v1899 = vmul.f32 %v1888, %v1897
        %v1900 = vmul.f32 %v1890, %v1898
        %1901 = vrot.lane.b32.xlu0 %v1208, 112
        %v1902 = vpop.permute.xlu0 %1901
        %1903 = vrot.lane.b32.xlu0 %v1213, 112
        %v1904 = vpop.permute.xlu0 %1903
        %v1908 = vsel %vm1320, %v1899, 0
        %v1911 = vsel %vm1320, %v1900, 0
        %1913 = vmatprep.subr.mxu0 0.0
        %1914 = vmatpush1.msra.mxu0 0.0
        %1915 = vmatprep.subr.mxu0 0.0
        %1916 = vmatpush1.msra.mxu0 0.0
        %1917 = vmatprep.subr.mxu0 0.0
        %1918 = vmatpush1.msra.mxu0 0.0
        %1919 = vmatprep.subr.mxu0 0.0
        %1920 = vmatpush1.msra.mxu0 0.0
        %1921 = vmatprep.subr.mxu0 0.0
        %1922 = vmatpush1.msra.mxu0 0.0
        %1923 = vmatprep.subr.mxu0 0.0
        %1924 = vmatpush1.msra.mxu0 0.0
        %1925 = vmatprep.subr.mxu0 0.0
        %1926 = vmatpush1.msra.mxu0 0.0
        %1927 = vmatprep.subr.mxu0 0.0
        %1928 = vmatpush1.msra.mxu0 0.0
        %1929 = vmatprep.subr.mxu0 0.0
        %1930 = vmatpush1.msra.mxu0 0.0
        %1931 = vmatprep.subr.mxu0 0.0
        %1932 = vmatpush1.msra.mxu0 0.0
        %1933 = vmatprep.subr.mxu0 0.0
        %1934 = vmatpush1.msra.mxu0 0.0
        %1935 = vmatprep.subr.mxu0 0.0
        %1936 = vmatpush1.msra.mxu0 0.0
        %1937 = vmatprep.subr.mxu0 0.0
        %1938 = vmatpush1.msra.mxu0 0.0
        %1939 = vmatprep.subr.mxu0 0.0
        %1940 = vmatpush1.msra.mxu0 0.0
        %1941 = vmatprep.subr.mxu0 0.0
        %1942 = vmatpush1.msra.mxu0 %v1904
        %1943 = vmatprep.subr.mxu0 0.0
        %1944 = vmatpush1.msra.mxu0 %v1902
        %1945 = vmatprep.subr.mxu0 0.0
        %1946 = vmatpush2.msra.mxu0 0.0
        %1947 = vmatprep.subr.mxu0 0.0
        %1948 = vmatpush2.msra.mxu0 0.0
        %1949 = vmatprep.subr.mxu0 0.0
        %1950 = vmatpush2.msra.mxu0 0.0
        %1951 = vmatprep.subr.mxu0 0.0
        %1952 = vmatpush2.msra.mxu0 0.0
        %1953 = vmatprep.subr.mxu0 0.0
        %1954 = vmatpush2.msra.mxu0 0.0
        %1955 = vmatprep.subr.mxu0 0.0
        %1956 = vmatpush2.msra.mxu0 0.0
        %1957 = vmatprep.subr.mxu0 0.0
        %1958 = vmatpush2.msra.mxu0 0.0
        %1959 = vmatprep.subr.mxu0 0.0
        %1960 = vmatpush2.msra.mxu0 0.0
        %1961 = vmatprep.subr.mxu0 0.0
        %1962 = vmatpush2.msra.mxu0 0.0
        %1963 = vmatprep.subr.mxu0 0.0
        %1964 = vmatpush2.msra.mxu0 0.0
        %1965 = vmatprep.subr.mxu0 0.0
        %1966 = vmatpush2.msra.mxu0 0.0
        %1967 = vmatprep.subr.mxu0 0.0
        %1968 = vmatpush2.msra.mxu0 0.0
        %1969 = vmatprep.subr.mxu0 0.0
        %1970 = vmatpush2.msra.mxu0 0.0
        %1971 = vmatprep.subr.mxu0 0.0
        %1972 = vmatpush2.msra.mxu0 0.0
        %1973 = vmatprep.subr.mxu0 0.0
        %1974 = vmatpush2.msra.mxu0 0.0
        %1975 = vmatprep.subr.mxu0 0.0
        %1976 = vmatpush2.msra.mxu0 0.0
        %1977 = vmatprep.mubr.f32.mxu0 0.0
        %1978 = vmatmul.mubr.f32.gmra.mxu0 %v1908
        %v1979 = vpop.f32.mrf.mxu0
        %v1980 = vadd.f32 0.0, %v1979
        %v1981 = vpop.f32.mrf.mxu0
        %1982 = vmatprep.mubr.f32.mxu0 0.0
        %1983 = vmatmul.mubr.f32.gmra.mxu0 %v1911
        %v1984 = vpop.f32.mrf.mxu0
        %v1985 = vadd.f32 0.0, %v1984
        %v1986 = vpop.f32.mrf.mxu0
        %1987 = vdwg.mxu0
        %v1989 = vsel %vm1232, %v1980, 0
        %v1992 = vsel %vm1232, %v1985, 0
        %1994 = vmatprep.subr.mxu0 0.0
        %1995 = vmatpush1.msra.mxu0 0.0
        %1996 = vmatprep.subr.mxu0 0.0
        %1997 = vmatpush1.msra.mxu0 0.0
        %1998 = vmatprep.subr.mxu0 0.0
        %1999 = vmatpush1.msra.mxu0 0.0
        %2000 = vmatprep.subr.mxu0 0.0
        %2001 = vmatpush1.msra.mxu0 0.0
        %2002 = vmatprep.subr.mxu0 0.0
        %2003 = vmatpush1.msra.mxu0 0.0
        %2004 = vmatprep.subr.mxu0 0.0
        %2005 = vmatpush1.msra.mxu0 0.0
        %2006 = vmatprep.subr.mxu0 0.0
        %2007 = vmatpush1.msra.mxu0 0.0
        %2008 = vmatprep.subr.mxu0 0.0
        %2009 = vmatpush1.msra.mxu0 0.0
        %2010 = vmatprep.subr.mxu0 0.0
        %2011 = vmatpush1.msra.mxu0 0.0
        %2012 = vmatprep.subr.mxu0 0.0
        %2013 = vmatpush1.msra.mxu0 0.0
        %2014 = vmatprep.subr.mxu0 0.0
        %2015 = vmatpush1.msra.mxu0 0.0
        %2016 = vmatprep.subr.mxu0 0.0
        %2017 = vmatpush1.msra.mxu0 0.0
        %2018 = vmatprep.subr.mxu0 0.0
        %2019 = vmatpush1.msra.mxu0 0.0
        %2020 = vmatprep.subr.mxu0 0.0
        %2021 = vmatpush1.msra.mxu0 0.0
        %2022 = vmatprep.subr.mxu0 0.0
        %2023 = vmatpush1.msra.mxu0 0.0
        %2024 = vmatprep.subr.mxu0 0.0
        %2025 = vmatpush1.msra.mxu0 %v1228
        %2026 = vmatprep.subr.mxu0 0.0
        %2027 = vmatpush2.msra.mxu0 0.0
        %2028 = vmatprep.subr.mxu0 0.0
        %2029 = vmatpush2.msra.mxu0 0.0
        %2030 = vmatprep.subr.mxu0 0.0
        %2031 = vmatpush2.msra.mxu0 0.0
        %2032 = vmatprep.subr.mxu0 0.0
        %2033 = vmatpush2.msra.mxu0 0.0
        %2034 = vmatprep.subr.mxu0 0.0
        %2035 = vmatpush2.msra.mxu0 0.0
        %2036 = vmatprep.subr.mxu0 0.0
        %2037 = vmatpush2.msra.mxu0 0.0
        %2038 = vmatprep.subr.mxu0 0.0
        %2039 = vmatpush2.msra.mxu0 0.0
        %2040 = vmatprep.subr.mxu0 0.0
        %2041 = vmatpush2.msra.mxu0 0.0
        %2042 = vmatprep.subr.mxu0 0.0
        %2043 = vmatpush2.msra.mxu0 0.0
        %2044 = vmatprep.subr.mxu0 0.0
        %2045 = vmatpush2.msra.mxu0 0.0
        %2046 = vmatprep.subr.mxu0 0.0
        %2047 = vmatpush2.msra.mxu0 0.0
        %2048 = vmatprep.subr.mxu0 0.0
        %2049 = vmatpush2.msra.mxu0 0.0
        %2050 = vmatprep.subr.mxu0 0.0
        %2051 = vmatpush2.msra.mxu0 0.0
        %2052 = vmatprep.subr.mxu0 0.0
        %2053 = vmatpush2.msra.mxu0 0.0
        %2054 = vmatprep.subr.mxu0 0.0
        %2055 = vmatpush2.msra.mxu0 0.0
        %2056 = vmatprep.subr.mxu0 0.0
        %2057 = vmatpush2.msra.mxu0 0.0
        %2058 = vmatprep.mubr.f32.mxu0 0.0
        %2059 = vmatmul.mubr.f32.gmra.mxu0 %v1989
        %v2060 = vpop.f32.mrf.mxu0
        %v2061 = vadd.f32 0.0, %v2060
        %v2062 = vpop.f32.mrf.mxu0
        %2063 = vmatprep.mubr.f32.mxu0 0.0
        %2064 = vmatmul.mubr.f32.gmra.mxu0 %v1992
        %v2065 = vpop.f32.mrf.mxu0
        %v2066 = vadd.f32 0.0, %v2065
        %v2067 = vpop.f32.mrf.mxu0
        %2068 = vdwg.mxu0
        %v2069 = vadd.f32 %v1780, %v2061
        %v2070 = vadd.f32 %v1785, %v2066
        %2071 = vrot.lane.b32.xlu0 %v1230, 104
        %v2072 = vpop.permute.xlu0 %2071
        %2073 = vrot.lane.b32.xlu0 %v1231, 104
        %v2074 = vpop.permute.xlu0 %2073
        %2075 = vrot.lane.b32.xlu0 %v1112, 104
        %v2076 = vpop.permute.xlu0 %2075
        %2077 = vrot.lane.b32.xlu0 %v1117, 104
        %v2078 = vpop.permute.xlu0 %2077
        %v2079 = vsel %vm1232, %v2072, 0
        %v2081 = vsel %vm1232, %v2074, 0
        %v2083 = vsel %vm1232, %v2076, 0
        %v2085 = vsel %vm1232, %v2078, 0
        %2087 = vmatprep.subr.mxu0 0.0
        %2088 = vmatpush1.xpose.msra.mxu0 0.0
        %2089 = vmatprep.subr.mxu0 0.0
        %2090 = vmatpush1.xpose.msra.mxu0 0.0
        %2091 = vmatprep.subr.mxu0 0.0
        %2092 = vmatpush1.xpose.msra.mxu0 0.0
        %2093 = vmatprep.subr.mxu0 0.0
        %2094 = vmatpush1.xpose.msra.mxu0 0.0
        %2095 = vmatprep.subr.mxu0 0.0
        %2096 = vmatpush1.xpose.msra.mxu0 0.0
        %2097 = vmatprep.subr.mxu0 0.0
        %2098 = vmatpush1.xpose.msra.mxu0 0.0
        %2099 = vmatprep.subr.mxu0 0.0
        %2100 = vmatpush1.xpose.msra.mxu0 0.0
        %2101 = vmatprep.subr.mxu0 0.0
        %2102 = vmatpush1.xpose.msra.mxu0 0.0
        %2103 = vmatprep.subr.mxu0 0.0
        %2104 = vmatpush1.xpose.msra.mxu0 0.0
        %2105 = vmatprep.subr.mxu0 0.0
        %2106 = vmatpush1.xpose.msra.mxu0 0.0
        %2107 = vmatprep.subr.mxu0 0.0
        %2108 = vmatpush1.xpose.msra.mxu0 0.0
        %2109 = vmatprep.subr.mxu0 0.0
        %2110 = vmatpush1.xpose.msra.mxu0 0.0
        %2111 = vmatprep.subr.mxu0 0.0
        %2112 = vmatpush1.xpose.msra.mxu0 0.0
        %2113 = vmatprep.subr.mxu0 0.0
        %2114 = vmatpush1.xpose.msra.mxu0 0.0
        %2115 = vmatprep.subr.mxu0 0.0
        %2116 = vmatpush1.xpose.msra.mxu0 %v2085
        %2117 = vmatprep.subr.mxu0 0.0
        %2118 = vmatpush1.xpose.msra.mxu0 %v2083
        %2119 = vmatprep.subr.mxu0 0.0
        %2120 = vmatpush2.xpose.msra.mxu0 0.0
        %2121 = vmatprep.subr.mxu0 0.0
        %2122 = vmatpush2.xpose.msra.mxu0 0.0
        %2123 = vmatprep.subr.mxu0 0.0
        %2124 = vmatpush2.xpose.msra.mxu0 0.0
        %2125 = vmatprep.subr.mxu0 0.0
        %2126 = vmatpush2.xpose.msra.mxu0 0.0
        %2127 = vmatprep.subr.mxu0 0.0
        %2128 = vmatpush2.xpose.msra.mxu0 0.0
        %2129 = vmatprep.subr.mxu0 0.0
        %2130 = vmatpush2.xpose.msra.mxu0 0.0
        %2131 = vmatprep.subr.mxu0 0.0
        %2132 = vmatpush2.xpose.msra.mxu0 0.0
        %2133 = vmatprep.subr.mxu0 0.0
        %2134 = vmatpush2.xpose.msra.mxu0 0.0
        %2135 = vmatprep.subr.mxu0 0.0
        %2136 = vmatpush2.xpose.msra.mxu0 0.0
        %2137 = vmatprep.subr.mxu0 0.0
        %2138 = vmatpush2.xpose.msra.mxu0 0.0
        %2139 = vmatprep.subr.mxu0 0.0
        %2140 = vmatpush2.xpose.msra.mxu0 0.0
        %2141 = vmatprep.subr.mxu0 0.0
        %2142 = vmatpush2.xpose.msra.mxu0 0.0
        %2143 = vmatprep.subr.mxu0 0.0
        %2144 = vmatpush2.xpose.msra.mxu0 0.0
        %2145 = vmatprep.subr.mxu0 0.0
        %2146 = vmatpush2.xpose.msra.mxu0 0.0
        %2147 = vmatprep.subr.mxu0 0.0
        %2148 = vmatpush2.xpose.msra.mxu0 0.0
        %2149 = vmatprep.subr.mxu0 0.0
        %2150 = vmatpush2.xpose.msra.mxu0 0.0
        %2151 = vmatprep.mubr.f32.mxu0 0.0
        %2152 = vmatmul.mubr.f32.gmra.mxu0 %v2079
        %v2153 = vpop.f32.mrf.mxu0
        %v2154 = vadd.f32 %v923, %v2153
        %v2155 = vpop.f32.mrf.mxu0
        %2156 = vmatprep.mubr.f32.mxu0 0.0
        %2157 = vmatmul.mubr.f32.gmra.mxu0 %v2081
        %v2158 = vpop.f32.mrf.mxu0
        %v2159 = vadd.f32 %v924, %v2158
        %v2160 = vpop.f32.mrf.mxu0
        %2161 = vdwg.mxu0
        %v2162 = vsel %vm1320, %v2154, -inf
        %2163 = vmax.xlane.f32.xlu0 %v2162
        %v2164 = vpop.xlane.xlu0 %2163
        %v2165 = vsel %vm1320, %v2159, -inf
        %2166 = vmax.xlane.f32.xlu0 %v2165
        %v2167 = vpop.xlane.xlu0 %2166
        %v2168 = vsub.f32 %v2154, %v2164
        %v2169 = vsub.f32 %v2159, %v2167
        %v2170 = vmul.f32 %v2168, 1.442695
        %v2171 = vpow.pop %v2170
        %v2172 = vmul.f32 %v2169, 1.442695
        %v2173 = vpow.pop %v2172
        %v2174 = vsel %vm1320, %v2171, 0.0
        %2175 = vadd.xlane.f32.xlu0 %v2174
        %v2176 = vpop.xlane.xlu0 %2175
        %v2177 = vsel %vm1320, %v2173, 0.0
        %2178 = vadd.xlane.f32.xlu0 %v2177
        %v2179 = vpop.xlane.xlu0 %2178
        %v2180 = vrcp.pop %v2176
        %v2181 = vrcp.pop %v2179
        %v2182 = vmul.f32 %v2171, %v2180
        %v2183 = vmul.f32 %v2173, %v2181
        %2184 = vrot.lane.b32.xlu0 %v1208, 104
        %v2185 = vpop.permute.xlu0 %2184
        %2186 = vrot.lane.b32.xlu0 %v1213, 104
        %v2187 = vpop.permute.xlu0 %2186
        %v2191 = vsel %vm1320, %v2182, 0
        %v2194 = vsel %vm1320, %v2183, 0
        %2196 = vmatprep.subr.mxu0 0.0
        %2197 = vmatpush1.msra.mxu0 0.0
        %2198 = vmatprep.subr.mxu0 0.0
        %2199 = vmatpush1.msra.mxu0 0.0
        %2200 = vmatprep.subr.mxu0 0.0
        %2201 = vmatpush1.msra.mxu0 0.0
        %2202 = vmatprep.subr.mxu0 0.0
        %2203 = vmatpush1.msra.mxu0 0.0
        %2204 = vmatprep.subr.mxu0 0.0
        %2205 = vmatpush1.msra.mxu0 0.0
        %2206 = vmatprep.subr.mxu0 0.0
        %2207 = vmatpush1.msra.mxu0 0.0
        %2208 = vmatprep.subr.mxu0 0.0
        %2209 = vmatpush1.msra.mxu0 0.0
        %2210 = vmatprep.subr.mxu0 0.0
        %2211 = vmatpush1.msra.mxu0 0.0
        %2212 = vmatprep.subr.mxu0 0.0
        %2213 = vmatpush1.msra.mxu0 0.0
        %2214 = vmatprep.subr.mxu0 0.0
        %2215 = vmatpush1.msra.mxu0 0.0
        %2216 = vmatprep.subr.mxu0 0.0
        %2217 = vmatpush1.msra.mxu0 0.0
        %2218 = vmatprep.subr.mxu0 0.0
        %2219 = vmatpush1.msra.mxu0 0.0
        %2220 = vmatprep.subr.mxu0 0.0
        %2221 = vmatpush1.msra.mxu0 0.0
        %2222 = vmatprep.subr.mxu0 0.0
        %2223 = vmatpush1.msra.mxu0 0.0
        %2224 = vmatprep.subr.mxu0 0.0
        %2225 = vmatpush1.msra.mxu0 %v2187
        %2226 = vmatprep.subr.mxu0 0.0
        %2227 = vmatpush1.msra.mxu0 %v2185
        %2228 = vmatprep.subr.mxu0 0.0
        %2229 = vmatpush2.msra.mxu0 0.0
        %2230 = vmatprep.subr.mxu0 0.0
        %2231 = vmatpush2.msra.mxu0 0.0
        %2232 = vmatprep.subr.mxu0 0.0
        %2233 = vmatpush2.msra.mxu0 0.0
        %2234 = vmatprep.subr.mxu0 0.0
        %2235 = vmatpush2.msra.mxu0 0.0
        %2236 = vmatprep.subr.mxu0 0.0
        %2237 = vmatpush2.msra.mxu0 0.0
        %2238 = vmatprep.subr.mxu0 0.0
        %2239 = vmatpush2.msra.mxu0 0.0
        %2240 = vmatprep.subr.mxu0 0.0
        %2241 = vmatpush2.msra.mxu0 0.0
        %2242 = vmatprep.subr.mxu0 0.0
        %2243 = vmatpush2.msra.mxu0 0.0
        %2244 = vmatprep.subr.mxu0 0.0
        %2245 = vmatpush2.msra.mxu0 0.0
        %2246 = vmatprep.subr.mxu0 0.0
        %2247 = vmatpush2.msra.mxu0 0.0
        %2248 = vmatprep.subr.mxu0 0.0
        %2249 = vmatpush2.msra.mxu0 0.0
        %2250 = vmatprep.subr.mxu0 0.0
        %2251 = vmatpush2.msra.mxu0 0.0
        %2252 = vmatprep.subr.mxu0 0.0
        %2253 = vmatpush2.msra.mxu0 0.0
        %2254 = vmatprep.subr.mxu0 0.0
        %2255 = vmatpush2.msra.mxu0 0.0
        %2256 = vmatprep.subr.mxu0 0.0
        %2257 = vmatpush2.msra.mxu0 0.0
        %2258 = vmatprep.subr.mxu0 0.0
        %2259 = vmatpush2.msra.mxu0 0.0
        %2260 = vmatprep.mubr.f32.mxu0 0.0
        %2261 = vmatmul.mubr.f32.gmra.mxu0 %v2191
        %v2262 = vpop.f32.mrf.mxu0
        %v2263 = vadd.f32 0.0, %v2262
        %v2264 = vpop.f32.mrf.mxu0
        %2265 = vmatprep.mubr.f32.mxu0 0.0
        %2266 = vmatmul.mubr.f32.gmra.mxu0 %v2194
        %v2267 = vpop.f32.mrf.mxu0
        %v2268 = vadd.f32 0.0, %v2267
        %v2269 = vpop.f32.mrf.mxu0
        %2270 = vdwg.mxu0
        %v2272 = vsel %vm1232, %v2263, 0
        %v2275 = vsel %vm1232, %v2268, 0
        %2277 = vmatprep.subr.mxu0 0.0
        %2278 = vmatpush1.msra.mxu0 0.0
        %2279 = vmatprep.subr.mxu0 0.0
        %2280 = vmatpush1.msra.mxu0 0.0
        %2281 = vmatprep.subr.mxu0 0.0
        %2282 = vmatpush1.msra.mxu0 0.0
        %2283 = vmatprep.subr.mxu0 0.0
        %2284 = vmatpush1.msra.mxu0 0.0
        %2285 = vmatprep.subr.mxu0 0.0
        %2286 = vmatpush1.msra.mxu0 0.0
        %2287 = vmatprep.subr.mxu0 0.0
        %2288 = vmatpush1.msra.mxu0 0.0
        %2289 = vmatprep.subr.mxu0 0.0
        %2290 = vmatpush1.msra.mxu0 0.0
        %2291 = vmatprep.subr.mxu0 0.0
        %2292 = vmatpush1.msra.mxu0 0.0
        %2293 = vmatprep.subr.mxu0 0.0
        %2294 = vmatpush1.msra.mxu0 0.0
        %2295 = vmatprep.subr.mxu0 0.0
        %2296 = vmatpush1.msra.mxu0 0.0
        %2297 = vmatprep.subr.mxu0 0.0
        %2298 = vmatpush1.msra.mxu0 0.0
        %2299 = vmatprep.subr.mxu0 0.0
        %2300 = vmatpush1.msra.mxu0 0.0
        %2301 = vmatprep.subr.mxu0 0.0
        %2302 = vmatpush1.msra.mxu0 0.0
        %2303 = vmatprep.subr.mxu0 0.0
        %2304 = vmatpush1.msra.mxu0 0.0
        %2305 = vmatprep.subr.mxu0 0.0
        %2306 = vmatpush1.msra.mxu0 0.0
        %2307 = vmatprep.subr.mxu0 0.0
        %2308 = vmatpush1.msra.mxu0 %v1229
        %2309 = vmatprep.subr.mxu0 0.0
        %2310 = vmatpush2.msra.mxu0 0.0
        %2311 = vmatprep.subr.mxu0 0.0
        %2312 = vmatpush2.msra.mxu0 0.0
        %2313 = vmatprep.subr.mxu0 0.0
        %2314 = vmatpush2.msra.mxu0 0.0
        %2315 = vmatprep.subr.mxu0 0.0
        %2316 = vmatpush2.msra.mxu0 0.0
        %2317 = vmatprep.subr.mxu0 0.0
        %2318 = vmatpush2.msra.mxu0 0.0
        %2319 = vmatprep.subr.mxu0 0.0
        %2320 = vmatpush2.msra.mxu0 0.0
        %2321 = vmatprep.subr.mxu0 0.0
        %2322 = vmatpush2.msra.mxu0 0.0
        %2323 = vmatprep.subr.mxu0 0.0
        %2324 = vmatpush2.msra.mxu0 0.0
        %2325 = vmatprep.subr.mxu0 0.0
        %2326 = vmatpush2.msra.mxu0 0.0
        %2327 = vmatprep.subr.mxu0 0.0
        %2328 = vmatpush2.msra.mxu0 0.0
        %2329 = vmatprep.subr.mxu0 0.0
        %2330 = vmatpush2.msra.mxu0 0.0
        %2331 = vmatprep.subr.mxu0 0.0
        %2332 = vmatpush2.msra.mxu0 0.0
        %2333 = vmatprep.subr.mxu0 0.0
        %2334 = vmatpush2.msra.mxu0 0.0
        %2335 = vmatprep.subr.mxu0 0.0
        %2336 = vmatpush2.msra.mxu0 0.0
        %2337 = vmatprep.subr.mxu0 0.0
        %2338 = vmatpush2.msra.mxu0 0.0
        %2339 = vmatprep.subr.mxu0 0.0
        %2340 = vmatpush2.msra.mxu0 0.0
        %2341 = vmatprep.mubr.f32.mxu0 0.0
        %2342 = vmatmul.mubr.f32.gmra.mxu0 %v2272
        %v2343 = vpop.f32.mrf.mxu0
        %v2344 = vadd.f32 0.0, %v2343
        %v2345 = vpop.f32.mrf.mxu0
        %2346 = vmatprep.mubr.f32.mxu0 0.0
        %2347 = vmatmul.mubr.f32.gmra.mxu0 %v2275
        %v2348 = vpop.f32.mrf.mxu0
        %v2349 = vadd.f32 0.0, %v2348
        %v2350 = vpop.f32.mrf.mxu0
        %2351 = vdwg.mxu0
        %v2352 = vadd.f32 %v2069, %v2344
        %v2353 = vadd.f32 %v2070, %v2349
        %2354 = vst.msk [vmem:[#allocation3] sm:$0xff] %vm936, %v2352
        %2355 = vst.msk [vmem:[#allocation3 + $0x8] sm:$0xff] %vm936, %v2353
        %v2356 = vmul.f32 %v1026, 0.35355338
        %v2357 = vmul.f32 %v1031, 0.35355338
        %v2359 = vsel %vm1232, %v2356, 0
        %v2362 = vsel %vm1232, %v2357, 0
        %v2365 = vsel %vm1232, %v1122, 0
        %v2368 = vsel %vm1232, %v1127, 0
        %2370 = vmatprep.subr.mxu0 0.0
        %2371 = vmatpush1.xpose.msra.mxu0 0.0
        %2372 = vmatprep.subr.mxu0 0.0
        %2373 = vmatpush1.xpose.msra.mxu0 0.0
        %2374 = vmatprep.subr.mxu0 0.0
        %2375 = vmatpush1.xpose.msra.mxu0 0.0
        %2376 = vmatprep.subr.mxu0 0.0
        %2377 = vmatpush1.xpose.msra.mxu0 0.0
        %2378 = vmatprep.subr.mxu0 0.0
        %2379 = vmatpush1.xpose.msra.mxu0 0.0
        %2380 = vmatprep.subr.mxu0 0.0
        %2381 = vmatpush1.xpose.msra.mxu0 0.0
        %2382 = vmatprep.subr.mxu0 0.0
        %2383 = vmatpush1.xpose.msra.mxu0 0.0
        %2384 = vmatprep.subr.mxu0 0.0
        %2385 = vmatpush1.xpose.msra.mxu0 0.0
        %2386 = vmatprep.subr.mxu0 0.0
        %2387 = vmatpush1.xpose.msra.mxu0 0.0
        %2388 = vmatprep.subr.mxu0 0.0
        %2389 = vmatpush1.xpose.msra.mxu0 0.0
        %2390 = vmatprep.subr.mxu0 0.0
        %2391 = vmatpush1.xpose.msra.mxu0 0.0
        %2392 = vmatprep.subr.mxu0 0.0
        %2393 = vmatpush1.xpose.msra.mxu0 0.0
        %2394 = vmatprep.subr.mxu0 0.0
        %2395 = vmatpush1.xpose.msra.mxu0 0.0
        %2396 = vmatprep.subr.mxu0 0.0
        %2397 = vmatpush1.xpose.msra.mxu0 0.0
        %2398 = vmatprep.subr.mxu0 0.0
        %2399 = vmatpush1.xpose.msra.mxu0 %v2368
        %2400 = vmatprep.subr.mxu0 0.0
        %2401 = vmatpush1.xpose.msra.mxu0 %v2365
        %2402 = vmatprep.subr.mxu0 0.0
        %2403 = vmatpush2.xpose.msra.mxu0 0.0
        %2404 = vmatprep.subr.mxu0 0.0
        %2405 = vmatpush2.xpose.msra.mxu0 0.0
        %2406 = vmatprep.subr.mxu0 0.0
        %2407 = vmatpush2.xpose.msra.mxu0 0.0
        %2408 = vmatprep.subr.mxu0 0.0
        %2409 = vmatpush2.xpose.msra.mxu0 0.0
        %2410 = vmatprep.subr.mxu0 0.0
        %2411 = vmatpush2.xpose.msra.mxu0 0.0
        %2412 = vmatprep.subr.mxu0 0.0
        %2413 = vmatpush2.xpose.msra.mxu0 0.0
        %2414 = vmatprep.subr.mxu0 0.0
        %2415 = vmatpush2.xpose.msra.mxu0 0.0
        %2416 = vmatprep.subr.mxu0 0.0
        %2417 = vmatpush2.xpose.msra.mxu0 0.0
        %2418 = vmatprep.subr.mxu0 0.0
        %2419 = vmatpush2.xpose.msra.mxu0 0.0
        %2420 = vmatprep.subr.mxu0 0.0
        %2421 = vmatpush2.xpose.msra.mxu0 0.0
        %2422 = vmatprep.subr.mxu0 0.0
        %2423 = vmatpush2.xpose.msra.mxu0 0.0
        %2424 = vmatprep.subr.mxu0 0.0
        %2425 = vmatpush2.xpose.msra.mxu0 0.0
        %2426 = vmatprep.subr.mxu0 0.0
        %2427 = vmatpush2.xpose.msra.mxu0 0.0
        %2428 = vmatprep.subr.mxu0 0.0
        %2429 = vmatpush2.xpose.msra.mxu0 0.0
        %2430 = vmatprep.subr.mxu0 0.0
        %2431 = vmatpush2.xpose.msra.mxu0 0.0
        %2432 = vmatprep.subr.mxu0 0.0
        %2433 = vmatpush2.xpose.msra.mxu0 0.0
        %2434 = vmatprep.mubr.f32.mxu0 0.0
        %2435 = vmatmul.mubr.f32.gmra.mxu0 %v2359
        %v2436 = vpop.f32.mrf.mxu0
        %v2437 = vadd.f32 %v923, %v2436
        %v2438 = vpop.f32.mrf.mxu0
        %2439 = vmatprep.mubr.f32.mxu0 0.0
        %2440 = vmatmul.mubr.f32.gmra.mxu0 %v2362
        %v2441 = vpop.f32.mrf.mxu0
        %v2442 = vadd.f32 %v924, %v2441
        %v2443 = vpop.f32.mrf.mxu0
        %2444 = vdwg.mxu0
        %v2445 = vsel %vm1320, %v2437, -inf
        %2446 = vmax.xlane.f32.xlu0 %v2445
        %v2447 = vpop.xlane.xlu0 %2446
        %v2448 = vsel %vm1320, %v2442, -inf
        %2449 = vmax.xlane.f32.xlu0 %v2448
        %v2450 = vpop.xlane.xlu0 %2449
        %v2451 = vsub.f32 %v2437, %v2447
        %v2452 = vsub.f32 %v2442, %v2450
        %v2453 = vmul.f32 %v2451, 1.442695
        %v2454 = vpow.pop %v2453
        %v2455 = vmul.f32 %v2452, 1.442695
        %v2456 = vpow.pop %v2455
        %v2457 = vsel %vm1320, %v2454, 0.0
        %2458 = vadd.xlane.f32.xlu0 %v2457
        %v2459 = vpop.xlane.xlu0 %2458
        %v2460 = vsel %vm1320, %v2456, 0.0
        %2461 = vadd.xlane.f32.xlu0 %v2460
        %v2462 = vpop.xlane.xlu0 %2461
        %v2463 = vrcp.pop %v2459
        %v2464 = vrcp.pop %v2462
        %v2465 = vmul.f32 %v2454, %v2463
        %v2466 = vmul.f32 %v2456, %v2464
        %v2468 = vsel %vm1320, %v2465, 0
        %v2471 = vsel %vm1320, %v2466, 0
        %2473 = vmatprep.subr.mxu0 0.0
        %2474 = vmatpush1.msra.mxu0 0.0
        %2475 = vmatprep.subr.mxu0 0.0
        %2476 = vmatpush1.msra.mxu0 0.0
        %2477 = vmatprep.subr.mxu0 0.0
        %2478 = vmatpush1.msra.mxu0 0.0
        %2479 = vmatprep.subr.mxu0 0.0
        %2480 = vmatpush1.msra.mxu0 0.0
        %2481 = vmatprep.subr.mxu0 0.0
        %2482 = vmatpush1.msra.mxu0 0.0
        %2483 = vmatprep.subr.mxu0 0.0
        %2484 = vmatpush1.msra.mxu0 0.0
        %2485 = vmatprep.subr.mxu0 0.0
        %2486 = vmatpush1.msra.mxu0 0.0
        %2487 = vmatprep.subr.mxu0 0.0
        %2488 = vmatpush1.msra.mxu0 0.0
        %2489 = vmatprep.subr.mxu0 0.0
        %2490 = vmatpush1.msra.mxu0 0.0
        %2491 = vmatprep.subr.mxu0 0.0
        %2492 = vmatpush1.msra.mxu0 0.0
        %2493 = vmatprep.subr.mxu0 0.0
        %2494 = vmatpush1.msra.mxu0 0.0
        %2495 = vmatprep.subr.mxu0 0.0
        %2496 = vmatpush1.msra.mxu0 0.0
        %2497 = vmatprep.subr.mxu0 0.0
        %2498 = vmatpush1.msra.mxu0 0.0
        %2499 = vmatprep.subr.mxu0 0.0
        %2500 = vmatpush1.msra.mxu0 0.0
        %2501 = vmatprep.subr.mxu0 0.0
        %2502 = vmatpush1.msra.mxu0 %v1223
        %2503 = vmatprep.subr.mxu0 0.0
        %2504 = vmatpush1.msra.mxu0 %v1218
        %2505 = vmatprep.subr.mxu0 0.0
        %2506 = vmatpush2.msra.mxu0 0.0
        %2507 = vmatprep.subr.mxu0 0.0
        %2508 = vmatpush2.msra.mxu0 0.0
        %2509 = vmatprep.subr.mxu0 0.0
        %2510 = vmatpush2.msra.mxu0 0.0
        %2511 = vmatprep.subr.mxu0 0.0
        %2512 = vmatpush2.msra.mxu0 0.0
        %2513 = vmatprep.subr.mxu0 0.0
        %2514 = vmatpush2.msra.mxu0 0.0
        %2515 = vmatprep.subr.mxu0 0.0
        %2516 = vmatpush2.msra.mxu0 0.0
        %2517 = vmatprep.subr.mxu0 0.0
        %2518 = vmatpush2.msra.mxu0 0.0
        %2519 = vmatprep.subr.mxu0 0.0
        %2520 = vmatpush2.msra.mxu0 0.0
        %2521 = vmatprep.subr.mxu0 0.0
        %2522 = vmatpush2.msra.mxu0 0.0
        %2523 = vmatprep.subr.mxu0 0.0
        %2524 = vmatpush2.msra.mxu0 0.0
        %2525 = vmatprep.subr.mxu0 0.0
        %2526 = vmatpush2.msra.mxu0 0.0
        %2527 = vmatprep.subr.mxu0 0.0
        %2528 = vmatpush2.msra.mxu0 0.0
        %2529 = vmatprep.subr.mxu0 0.0
        %2530 = vmatpush2.msra.mxu0 0.0
        %2531 = vmatprep.subr.mxu0 0.0
        %2532 = vmatpush2.msra.mxu0 0.0
        %2533 = vmatprep.subr.mxu0 0.0
        %2534 = vmatpush2.msra.mxu0 0.0
        %2535 = vmatprep.subr.mxu0 0.0
        %2536 = vmatpush2.msra.mxu0 0.0
        %2537 = vmatprep.mubr.f32.mxu0 0.0
        %2538 = vmatmul.mubr.f32.gmra.mxu0 %v2468
        %v2539 = vpop.f32.mrf.mxu0
        %v2540 = vadd.f32 0.0, %v2539
        %v2541 = vpop.f32.mrf.mxu0
        %2542 = vmatprep.mubr.f32.mxu0 0.0
        %2543 = vmatmul.mubr.f32.gmra.mxu0 %v2471
        %v2544 = vpop.f32.mrf.mxu0
        %v2545 = vadd.f32 0.0, %v2544
        %v2546 = vpop.f32.mrf.mxu0
        %2547 = vdwg.mxu0
        %2548 = vrot.lane.b32.xlu0 %v2356, 120
        %v2549 = vpop.permute.xlu0 %2548
        %2550 = vrot.lane.b32.xlu0 %v2357, 120
        %v2551 = vpop.permute.xlu0 %2550
        %2552 = vrot.lane.b32.xlu0 %v1122, 120
        %v2553 = vpop.permute.xlu0 %2552
        %2554 = vrot.lane.b32.xlu0 %v1127, 120
        %v2555 = vpop.permute.xlu0 %2554
        %v2556 = vsel %vm1232, %v2549, 0
        %v2558 = vsel %vm1232, %v2551, 0
        %v2560 = vsel %vm1232, %v2553, 0
        %v2562 = vsel %vm1232, %v2555, 0
        %2564 = vmatprep.subr.mxu0 0.0
        %2565 = vmatpush1.xpose.msra.mxu0 0.0
        %2566 = vmatprep.subr.mxu0 0.0
        %2567 = vmatpush1.xpose.msra.mxu0 0.0
        %2568 = vmatprep.subr.mxu0 0.0
        %2569 = vmatpush1.xpose.msra.mxu0 0.0
        %2570 = vmatprep.subr.mxu0 0.0
        %2571 = vmatpush1.xpose.msra.mxu0 0.0
        %2572 = vmatprep.subr.mxu0 0.0
        %2573 = vmatpush1.xpose.msra.mxu0 0.0
        %2574 = vmatprep.subr.mxu0 0.0
        %2575 = vmatpush1.xpose.msra.mxu0 0.0
        %2576 = vmatprep.subr.mxu0 0.0
        %2577 = vmatpush1.xpose.msra.mxu0 0.0
        %2578 = vmatprep.subr.mxu0 0.0
        %2579 = vmatpush1.xpose.msra.mxu0 0.0
        %2580 = vmatprep.subr.mxu0 0.0
        %2581 = vmatpush1.xpose.msra.mxu0 0.0
        %2582 = vmatprep.subr.mxu0 0.0
        %2583 = vmatpush1.xpose.msra.mxu0 0.0
        %2584 = vmatprep.subr.mxu0 0.0
        %2585 = vmatpush1.xpose.msra.mxu0 0.0
        %2586 = vmatprep.subr.mxu0 0.0
        %2587 = vmatpush1.xpose.msra.mxu0 0.0
        %2588 = vmatprep.subr.mxu0 0.0
        %2589 = vmatpush1.xpose.msra.mxu0 0.0
        %2590 = vmatprep.subr.mxu0 0.0
        %2591 = vmatpush1.xpose.msra.mxu0 0.0
        %2592 = vmatprep.subr.mxu0 0.0
        %2593 = vmatpush1.xpose.msra.mxu0 %v2562
        %2594 = vmatprep.subr.mxu0 0.0
        %2595 = vmatpush1.xpose.msra.mxu0 %v2560
        %2596 = vmatprep.subr.mxu0 0.0
        %2597 = vmatpush2.xpose.msra.mxu0 0.0
        %2598 = vmatprep.subr.mxu0 0.0
        %2599 = vmatpush2.xpose.msra.mxu0 0.0
        %2600 = vmatprep.subr.mxu0 0.0
        %2601 = vmatpush2.xpose.msra.mxu0 0.0
        %2602 = vmatprep.subr.mxu0 0.0
        %2603 = vmatpush2.xpose.msra.mxu0 0.0
        %2604 = vmatprep.subr.mxu0 0.0
        %2605 = vmatpush2.xpose.msra.mxu0 0.0
        %2606 = vmatprep.subr.mxu0 0.0
        %2607 = vmatpush2.xpose.msra.mxu0 0.0
        %2608 = vmatprep.subr.mxu0 0.0
        %2609 = vmatpush2.xpose.msra.mxu0 0.0
        %2610 = vmatprep.subr.mxu0 0.0
        %2611 = vmatpush2.xpose.msra.mxu0 0.0
        %2612 = vmatprep.subr.mxu0 0.0
        %2613 = vmatpush2.xpose.msra.mxu0 0.0
        %2614 = vmatprep.subr.mxu0 0.0
        %2615 = vmatpush2.xpose.msra.mxu0 0.0
        %2616 = vmatprep.subr.mxu0 0.0
        %2617 = vmatpush2.xpose.msra.mxu0 0.0
        %2618 = vmatprep.subr.mxu0 0.0
        %2619 = vmatpush2.xpose.msra.mxu0 0.0
        %2620 = vmatprep.subr.mxu0 0.0
        %2621 = vmatpush2.xpose.msra.mxu0 0.0
        %2622 = vmatprep.subr.mxu0 0.0
        %2623 = vmatpush2.xpose.msra.mxu0 0.0
        %2624 = vmatprep.subr.mxu0 0.0
        %2625 = vmatpush2.xpose.msra.mxu0 0.0
        %2626 = vmatprep.subr.mxu0 0.0
        %2627 = vmatpush2.xpose.msra.mxu0 0.0
        %2628 = vmatprep.mubr.f32.mxu0 0.0
        %2629 = vmatmul.mubr.f32.gmra.mxu0 %v2556
        %v2630 = vpop.f32.mrf.mxu0
        %v2631 = vadd.f32 %v923, %v2630
        %v2632 = vpop.f32.mrf.mxu0
        %2633 = vmatprep.mubr.f32.mxu0 0.0
        %2634 = vmatmul.mubr.f32.gmra.mxu0 %v2558
        %v2635 = vpop.f32.mrf.mxu0
        %v2636 = vadd.f32 %v924, %v2635
        %v2637 = vpop.f32.mrf.mxu0
        %2638 = vdwg.mxu0
        %v2639 = vsel %vm1320, %v2631, -inf
        %2640 = vmax.xlane.f32.xlu0 %v2639
        %v2641 = vpop.xlane.xlu0 %2640
        %v2642 = vsel %vm1320, %v2636, -inf
        %2643 = vmax.xlane.f32.xlu0 %v2642
        %v2644 = vpop.xlane.xlu0 %2643
        %v2645 = vsub.f32 %v2631, %v2641
        %v2646 = vsub.f32 %v2636, %v2644
        %v2647 = vmul.f32 %v2645, 1.442695
        %v2648 = vpow.pop %v2647
        %v2649 = vmul.f32 %v2646, 1.442695
        %v2650 = vpow.pop %v2649
        %v2651 = vsel %vm1320, %v2648, 0.0
        %2652 = vadd.xlane.f32.xlu0 %v2651
        %v2653 = vpop.xlane.xlu0 %2652
        %v2654 = vsel %vm1320, %v2650, 0.0
        %2655 = vadd.xlane.f32.xlu0 %v2654
        %v2656 = vpop.xlane.xlu0 %2655
        %v2657 = vrcp.pop %v2653
        %v2658 = vrcp.pop %v2656
        %v2659 = vmul.f32 %v2648, %v2657
        %v2660 = vmul.f32 %v2650, %v2658
        %2663 = vrot.lane.b32.xlu0 %v1218, 120
        %v2664 = vpop.permute.xlu0 %2663
        %2665 = vrot.lane.b32.xlu0 %v1223, 120
        %v2666 = vpop.permute.xlu0 %2665
        %v2670 = vsel %vm1320, %v2659, 0
        %v2673 = vsel %vm1320, %v2660, 0
        %2675 = vmatprep.subr.mxu0 0.0
        %2676 = vmatpush1.msra.mxu0 0.0
        %2677 = vmatprep.subr.mxu0 0.0
        %2678 = vmatpush1.msra.mxu0 0.0
        %2679 = vmatprep.subr.mxu0 0.0
        %2680 = vmatpush1.msra.mxu0 0.0
        %2681 = vmatprep.subr.mxu0 0.0
        %2682 = vmatpush1.msra.mxu0 0.0
        %2683 = vmatprep.subr.mxu0 0.0
        %2684 = vmatpush1.msra.mxu0 0.0
        %2685 = vmatprep.subr.mxu0 0.0
        %2686 = vmatpush1.msra.mxu0 0.0
        %2687 = vmatprep.subr.mxu0 0.0
        %2688 = vmatpush1.msra.mxu0 0.0
        %2689 = vmatprep.subr.mxu0 0.0
        %2690 = vmatpush1.msra.mxu0 0.0
        %2691 = vmatprep.subr.mxu0 0.0
        %2692 = vmatpush1.msra.mxu0 0.0
        %2693 = vmatprep.subr.mxu0 0.0
        %2694 = vmatpush1.msra.mxu0 0.0
        %2695 = vmatprep.subr.mxu0 0.0
        %2696 = vmatpush1.msra.mxu0 0.0
        %2697 = vmatprep.subr.mxu0 0.0
        %2698 = vmatpush1.msra.mxu0 0.0
        %2699 = vmatprep.subr.mxu0 0.0
        %2700 = vmatpush1.msra.mxu0 0.0
        %2701 = vmatprep.subr.mxu0 0.0
        %2702 = vmatpush1.msra.mxu0 0.0
        %2703 = vmatprep.subr.mxu0 0.0
        %2704 = vmatpush1.msra.mxu0 %v2666
        %2705 = vmatprep.subr.mxu0 0.0
        %2706 = vmatpush1.msra.mxu0 %v2664
        %2707 = vmatprep.subr.mxu0 0.0
        %2708 = vmatpush2.msra.mxu0 0.0
        %2709 = vmatprep.subr.mxu0 0.0
        %2710 = vmatpush2.msra.mxu0 0.0
        %2711 = vmatprep.subr.mxu0 0.0
        %2712 = vmatpush2.msra.mxu0 0.0
        %2713 = vmatprep.subr.mxu0 0.0
        %2714 = vmatpush2.msra.mxu0 0.0
        %2715 = vmatprep.subr.mxu0 0.0
        %2716 = vmatpush2.msra.mxu0 0.0
        %2717 = vmatprep.subr.mxu0 0.0
        %2718 = vmatpush2.msra.mxu0 0.0
        %2719 = vmatprep.subr.mxu0 0.0
        %2720 = vmatpush2.msra.mxu0 0.0
        %2721 = vmatprep.subr.mxu0 0.0
        %2722 = vmatpush2.msra.mxu0 0.0
        %2723 = vmatprep.subr.mxu0 0.0
        %2724 = vmatpush2.msra.mxu0 0.0
        %2725 = vmatprep.subr.mxu0 0.0
        %2726 = vmatpush2.msra.mxu0 0.0
        %2727 = vmatprep.subr.mxu0 0.0
        %2728 = vmatpush2.msra.mxu0 0.0
        %2729 = vmatprep.subr.mxu0 0.0
        %2730 = vmatpush2.msra.mxu0 0.0
        %2731 = vmatprep.subr.mxu0 0.0
        %2732 = vmatpush2.msra.mxu0 0.0
        %2733 = vmatprep.subr.mxu0 0.0
        %2734 = vmatpush2.msra.mxu0 0.0
        %2735 = vmatprep.subr.mxu0 0.0
        %2736 = vmatpush2.msra.mxu0 0.0
        %2737 = vmatprep.subr.mxu0 0.0
        %2738 = vmatpush2.msra.mxu0 0.0
        %2739 = vmatprep.mubr.f32.mxu0 0.0
        %2740 = vmatmul.mubr.f32.gmra.mxu0 %v2670
        %v2741 = vpop.f32.mrf.mxu0
        %v2742 = vadd.f32 0.0, %v2741
        %v2743 = vpop.f32.mrf.mxu0
        %2744 = vmatprep.mubr.f32.mxu0 0.0
        %2745 = vmatmul.mubr.f32.gmra.mxu0 %v2673
        %v2746 = vpop.f32.mrf.mxu0
        %v2747 = vadd.f32 0.0, %v2746
        %v2748 = vpop.f32.mrf.mxu0
        %2749 = vdwg.mxu0
        %v2751 = vsel %vm1232, %v2742, 0
        %v2754 = vsel %vm1232, %v2747, 0
        %2756 = vmatprep.subr.mxu0 0.0
        %2757 = vmatpush1.msra.mxu0 0.0
        %2758 = vmatprep.subr.mxu0 0.0
        %2759 = vmatpush1.msra.mxu0 0.0
        %2760 = vmatprep.subr.mxu0 0.0
        %2761 = vmatpush1.msra.mxu0 0.0
        %2762 = vmatprep.subr.mxu0 0.0
        %2763 = vmatpush1.msra.mxu0 0.0
        %2764 = vmatprep.subr.mxu0 0.0
        %2765 = vmatpush1.msra.mxu0 0.0
        %2766 = vmatprep.subr.mxu0 0.0
        %2767 = vmatpush1.msra.mxu0 0.0
        %2768 = vmatprep.subr.mxu0 0.0
        %2769 = vmatpush1.msra.mxu0 0.0
        %2770 = vmatprep.subr.mxu0 0.0
        %2771 = vmatpush1.msra.mxu0 0.0
        %2772 = vmatprep.subr.mxu0 0.0
        %2773 = vmatpush1.msra.mxu0 0.0
        %2774 = vmatprep.subr.mxu0 0.0
        %2775 = vmatpush1.msra.mxu0 0.0
        %2776 = vmatprep.subr.mxu0 0.0
        %2777 = vmatpush1.msra.mxu0 0.0
        %2778 = vmatprep.subr.mxu0 0.0
        %2779 = vmatpush1.msra.mxu0 0.0
        %2780 = vmatprep.subr.mxu0 0.0
        %2781 = vmatpush1.msra.mxu0 0.0
        %2782 = vmatprep.subr.mxu0 0.0
        %2783 = vmatpush1.msra.mxu0 0.0
        %2784 = vmatprep.subr.mxu0 0.0
        %2785 = vmatpush1.msra.mxu0 0.0
        %2786 = vmatprep.subr.mxu0 0.0
        %2787 = vmatpush1.msra.mxu0 %v1227
        %2788 = vmatprep.subr.mxu0 0.0
        %2789 = vmatpush2.msra.mxu0 0.0
        %2790 = vmatprep.subr.mxu0 0.0
        %2791 = vmatpush2.msra.mxu0 0.0
        %2792 = vmatprep.subr.mxu0 0.0
        %2793 = vmatpush2.msra.mxu0 0.0
        %2794 = vmatprep.subr.mxu0 0.0
        %2795 = vmatpush2.msra.mxu0 0.0
        %2796 = vmatprep.subr.mxu0 0.0
        %2797 = vmatpush2.msra.mxu0 0.0
        %2798 = vmatprep.subr.mxu0 0.0
        %2799 = vmatpush2.msra.mxu0 0.0
        %2800 = vmatprep.subr.mxu0 0.0
        %2801 = vmatpush2.msra.mxu0 0.0
        %2802 = vmatprep.subr.mxu0 0.0
        %2803 = vmatpush2.msra.mxu0 0.0
        %2804 = vmatprep.subr.mxu0 0.0
        %2805 = vmatpush2.msra.mxu0 0.0
        %2806 = vmatprep.subr.mxu0 0.0
        %2807 = vmatpush2.msra.mxu0 0.0
        %2808 = vmatprep.subr.mxu0 0.0
        %2809 = vmatpush2.msra.mxu0 0.0
        %2810 = vmatprep.subr.mxu0 0.0
        %2811 = vmatpush2.msra.mxu0 0.0
        %2812 = vmatprep.subr.mxu0 0.0
        %2813 = vmatpush2.msra.mxu0 0.0
        %2814 = vmatprep.subr.mxu0 0.0
        %2815 = vmatpush2.msra.mxu0 0.0
        %2816 = vmatprep.subr.mxu0 0.0
        %2817 = vmatpush2.msra.mxu0 0.0
        %2818 = vmatprep.subr.mxu0 0.0
        %2819 = vmatpush2.msra.mxu0 0.0
        %2820 = vmatprep.mubr.f32.mxu0 0.0
        %2821 = vmatmul.mubr.f32.gmra.mxu0 %v2751
        %v2822 = vpop.f32.mrf.mxu0
        %v2823 = vadd.f32 0.0, %v2822
        %v2824 = vpop.f32.mrf.mxu0
        %2825 = vmatprep.mubr.f32.mxu0 0.0
        %2826 = vmatmul.mubr.f32.gmra.mxu0 %v2754
        %v2827 = vpop.f32.mrf.mxu0
        %v2828 = vadd.f32 0.0, %v2827
        %v2829 = vpop.f32.mrf.mxu0
        %2830 = vdwg.mxu0
        %v2832 = vsel %vm1232, %v2540, 0
        %v2835 = vsel %vm1232, %v2545, 0
        %2837 = vmatprep.subr.mxu0 0.0
        %2838 = vmatpush1.msra.mxu0 0.0
        %2839 = vmatprep.subr.mxu0 0.0
        %2840 = vmatpush1.msra.mxu0 0.0
        %2841 = vmatprep.subr.mxu0 0.0
        %2842 = vmatpush1.msra.mxu0 0.0
        %2843 = vmatprep.subr.mxu0 0.0
        %2844 = vmatpush1.msra.mxu0 0.0
        %2845 = vmatprep.subr.mxu0 0.0
        %2846 = vmatpush1.msra.mxu0 0.0
        %2847 = vmatprep.subr.mxu0 0.0
        %2848 = vmatpush1.msra.mxu0 0.0
        %2849 = vmatprep.subr.mxu0 0.0
        %2850 = vmatpush1.msra.mxu0 0.0
        %2851 = vmatprep.subr.mxu0 0.0
        %2852 = vmatpush1.msra.mxu0 0.0
        %2853 = vmatprep.subr.mxu0 0.0
        %2854 = vmatpush1.msra.mxu0 0.0
        %2855 = vmatprep.subr.mxu0 0.0
        %2856 = vmatpush1.msra.mxu0 0.0
        %2857 = vmatprep.subr.mxu0 0.0
        %2858 = vmatpush1.msra.mxu0 0.0
        %2859 = vmatprep.subr.mxu0 0.0
        %2860 = vmatpush1.msra.mxu0 0.0
        %2861 = vmatprep.subr.mxu0 0.0
        %2862 = vmatpush1.msra.mxu0 0.0
        %2863 = vmatprep.subr.mxu0 0.0
        %2864 = vmatpush1.msra.mxu0 0.0
        %2865 = vmatprep.subr.mxu0 0.0
        %2866 = vmatpush1.msra.mxu0 0.0
        %2867 = vmatprep.subr.mxu0 0.0
        %2868 = vmatpush1.msra.mxu0 %v1226
        %2869 = vmatprep.subr.mxu0 0.0
        %2870 = vmatpush2.msra.mxu0 0.0
        %2871 = vmatprep.subr.mxu0 0.0
        %2872 = vmatpush2.msra.mxu0 0.0
        %2873 = vmatprep.subr.mxu0 0.0
        %2874 = vmatpush2.msra.mxu0 0.0
        %2875 = vmatprep.subr.mxu0 0.0
        %2876 = vmatpush2.msra.mxu0 0.0
        %2877 = vmatprep.subr.mxu0 0.0
        %2878 = vmatpush2.msra.mxu0 0.0
        %2879 = vmatprep.subr.mxu0 0.0
        %2880 = vmatpush2.msra.mxu0 0.0
        %2881 = vmatprep.subr.mxu0 0.0
        %2882 = vmatpush2.msra.mxu0 0.0
        %2883 = vmatprep.subr.mxu0 0.0
        %2884 = vmatpush2.msra.mxu0 0.0
        %2885 = vmatprep.subr.mxu0 0.0
        %2886 = vmatpush2.msra.mxu0 0.0
        %2887 = vmatprep.subr.mxu0 0.0
        %2888 = vmatpush2.msra.mxu0 0.0
        %2889 = vmatprep.subr.mxu0 0.0
        %2890 = vmatpush2.msra.mxu0 0.0
        %2891 = vmatprep.subr.mxu0 0.0
        %2892 = vmatpush2.msra.mxu0 0.0
        %2893 = vmatprep.subr.mxu0 0.0
        %2894 = vmatpush2.msra.mxu0 0.0
        %2895 = vmatprep.subr.mxu0 0.0
        %2896 = vmatpush2.msra.mxu0 0.0
        %2897 = vmatprep.subr.mxu0 0.0
        %2898 = vmatpush2.msra.mxu0 0.0
        %2899 = vmatprep.subr.mxu0 0.0
        %2900 = vmatpush2.msra.mxu0 0.0
        %2901 = vmatprep.mubr.f32.mxu0 0.0
        %2902 = vmatmul.mubr.f32.gmra.mxu0 %v2832
        %v2903 = vpop.f32.mrf.mxu0
        %v2904 = vadd.f32 %v2823, %v2903
        %v2905 = vpop.f32.mrf.mxu0
        %2906 = vmatprep.mubr.f32.mxu0 0.0
        %2907 = vmatmul.mubr.f32.gmra.mxu0 %v2835
        %v2908 = vpop.f32.mrf.mxu0
        %v2909 = vadd.f32 %v2828, %v2908
        %v2910 = vpop.f32.mrf.mxu0
        %2911 = vdwg.mxu0
        %2912 = vrot.lane.b32.xlu0 %v2356, 112
        %v2913 = vpop.permute.xlu0 %2912
        %2914 = vrot.lane.b32.xlu0 %v2357, 112
        %v2915 = vpop.permute.xlu0 %2914
        %2916 = vrot.lane.b32.xlu0 %v1122, 112
        %v2917 = vpop.permute.xlu0 %2916
        %2918 = vrot.lane.b32.xlu0 %v1127, 112
        %v2919 = vpop.permute.xlu0 %2918
        %v2920 = vsel %vm1232, %v2913, 0
        %v2922 = vsel %vm1232, %v2915, 0
        %v2924 = vsel %vm1232, %v2917, 0
        %v2926 = vsel %vm1232, %v2919, 0
        %2928 = vmatprep.subr.mxu0 0.0
        %2929 = vmatpush1.xpose.msra.mxu0 0.0
        %2930 = vmatprep.subr.mxu0 0.0
        %2931 = vmatpush1.xpose.msra.mxu0 0.0
        %2932 = vmatprep.subr.mxu0 0.0
        %2933 = vmatpush1.xpose.msra.mxu0 0.0
        %2934 = vmatprep.subr.mxu0 0.0
        %2935 = vmatpush1.xpose.msra.mxu0 0.0
        %2936 = vmatprep.subr.mxu0 0.0
        %2937 = vmatpush1.xpose.msra.mxu0 0.0
        %2938 = vmatprep.subr.mxu0 0.0
        %2939 = vmatpush1.xpose.msra.mxu0 0.0
        %2940 = vmatprep.subr.mxu0 0.0
        %2941 = vmatpush1.xpose.msra.mxu0 0.0
        %2942 = vmatprep.subr.mxu0 0.0
        %2943 = vmatpush1.xpose.msra.mxu0 0.0
        %2944 = vmatprep.subr.mxu0 0.0
        %2945 = vmatpush1.xpose.msra.mxu0 0.0
        %2946 = vmatprep.subr.mxu0 0.0
        %2947 = vmatpush1.xpose.msra.mxu0 0.0
        %2948 = vmatprep.subr.mxu0 0.0
        %2949 = vmatpush1.xpose.msra.mxu0 0.0
        %2950 = vmatprep.subr.mxu0 0.0
        %2951 = vmatpush1.xpose.msra.mxu0 0.0
        %2952 = vmatprep.subr.mxu0 0.0
        %2953 = vmatpush1.xpose.msra.mxu0 0.0
        %2954 = vmatprep.subr.mxu0 0.0
        %2955 = vmatpush1.xpose.msra.mxu0 0.0
        %2956 = vmatprep.subr.mxu0 0.0
        %2957 = vmatpush1.xpose.msra.mxu0 %v2926
        %2958 = vmatprep.subr.mxu0 0.0
        %2959 = vmatpush1.xpose.msra.mxu0 %v2924
        %2960 = vmatprep.subr.mxu0 0.0
        %2961 = vmatpush2.xpose.msra.mxu0 0.0
        %2962 = vmatprep.subr.mxu0 0.0
        %2963 = vmatpush2.xpose.msra.mxu0 0.0
        %2964 = vmatprep.subr.mxu0 0.0
        %2965 = vmatpush2.xpose.msra.mxu0 0.0
        %2966 = vmatprep.subr.mxu0 0.0
        %2967 = vmatpush2.xpose.msra.mxu0 0.0
        %2968 = vmatprep.subr.mxu0 0.0
        %2969 = vmatpush2.xpose.msra.mxu0 0.0
        %2970 = vmatprep.subr.mxu0 0.0
        %2971 = vmatpush2.xpose.msra.mxu0 0.0
        %2972 = vmatprep.subr.mxu0 0.0
        %2973 = vmatpush2.xpose.msra.mxu0 0.0
        %2974 = vmatprep.subr.mxu0 0.0
        %2975 = vmatpush2.xpose.msra.mxu0 0.0
        %2976 = vmatprep.subr.mxu0 0.0
        %2977 = vmatpush2.xpose.msra.mxu0 0.0
        %2978 = vmatprep.subr.mxu0 0.0
        %2979 = vmatpush2.xpose.msra.mxu0 0.0
        %2980 = vmatprep.subr.mxu0 0.0
        %2981 = vmatpush2.xpose.msra.mxu0 0.0
        %2982 = vmatprep.subr.mxu0 0.0
        %2983 = vmatpush2.xpose.msra.mxu0 0.0
        %2984 = vmatprep.subr.mxu0 0.0
        %2985 = vmatpush2.xpose.msra.mxu0 0.0
        %2986 = vmatprep.subr.mxu0 0.0
        %2987 = vmatpush2.xpose.msra.mxu0 0.0
        %2988 = vmatprep.subr.mxu0 0.0
        %2989 = vmatpush2.xpose.msra.mxu0 0.0
        %2990 = vmatprep.subr.mxu0 0.0
        %2991 = vmatpush2.xpose.msra.mxu0 0.0
        %2992 = vmatprep.mubr.f32.mxu0 0.0
        %2993 = vmatmul.mubr.f32.gmra.mxu0 %v2920
        %v2994 = vpop.f32.mrf.mxu0
        %v2995 = vadd.f32 %v923, %v2994
        %v2996 = vpop.f32.mrf.mxu0
        %2997 = vmatprep.mubr.f32.mxu0 0.0
        %2998 = vmatmul.mubr.f32.gmra.mxu0 %v2922
        %v2999 = vpop.f32.mrf.mxu0
        %v3000 = vadd.f32 %v924, %v2999
        %v3001 = vpop.f32.mrf.mxu0
        %3002 = vdwg.mxu0
        %v3003 = vsel %vm1320, %v2995, -inf
        %3004 = vmax.xlane.f32.xlu0 %v3003
        %v3005 = vpop.xlane.xlu0 %3004
        %v3006 = vsel %vm1320, %v3000, -inf
        %3007 = vmax.xlane.f32.xlu0 %v3006
        %v3008 = vpop.xlane.xlu0 %3007
        %v3009 = vsub.f32 %v2995, %v3005
        %v3010 = vsub.f32 %v3000, %v3008
        %v3011 = vmul.f32 %v3009, 1.442695
        %v3012 = vpow.pop %v3011
        %v3013 = vmul.f32 %v3010, 1.442695
        %v3014 = vpow.pop %v3013
        %v3015 = vsel %vm1320, %v3012, 0.0
        %3016 = vadd.xlane.f32.xlu0 %v3015
        %v3017 = vpop.xlane.xlu0 %3016
        %v3018 = vsel %vm1320, %v3014, 0.0
        %3019 = vadd.xlane.f32.xlu0 %v3018
        %v3020 = vpop.xlane.xlu0 %3019
        %v3021 = vrcp.pop %v3017
        %v3022 = vrcp.pop %v3020
        %v3023 = vmul.f32 %v3012, %v3021
        %v3024 = vmul.f32 %v3014, %v3022
        %3025 = vrot.lane.b32.xlu0 %v1218, 112
        %v3026 = vpop.permute.xlu0 %3025
        %3027 = vrot.lane.b32.xlu0 %v1223, 112
        %v3028 = vpop.permute.xlu0 %3027
        %v3032 = vsel %vm1320, %v3023, 0
        %v3035 = vsel %vm1320, %v3024, 0
        %3037 = vmatprep.subr.mxu0 0.0
        %3038 = vmatpush1.msra.mxu0 0.0
        %3039 = vmatprep.subr.mxu0 0.0
        %3040 = vmatpush1.msra.mxu0 0.0
        %3041 = vmatprep.subr.mxu0 0.0
        %3042 = vmatpush1.msra.mxu0 0.0
        %3043 = vmatprep.subr.mxu0 0.0
        %3044 = vmatpush1.msra.mxu0 0.0
        %3045 = vmatprep.subr.mxu0 0.0
        %3046 = vmatpush1.msra.mxu0 0.0
        %3047 = vmatprep.subr.mxu0 0.0
        %3048 = vmatpush1.msra.mxu0 0.0
        %3049 = vmatprep.subr.mxu0 0.0
        %3050 = vmatpush1.msra.mxu0 0.0
        %3051 = vmatprep.subr.mxu0 0.0
        %3052 = vmatpush1.msra.mxu0 0.0
        %3053 = vmatprep.subr.mxu0 0.0
        %3054 = vmatpush1.msra.mxu0 0.0
        %3055 = vmatprep.subr.mxu0 0.0
        %3056 = vmatpush1.msra.mxu0 0.0
        %3057 = vmatprep.subr.mxu0 0.0
        %3058 = vmatpush1.msra.mxu0 0.0
        %3059 = vmatprep.subr.mxu0 0.0
        %3060 = vmatpush1.msra.mxu0 0.0
        %3061 = vmatprep.subr.mxu0 0.0
        %3062 = vmatpush1.msra.mxu0 0.0
        %3063 = vmatprep.subr.mxu0 0.0
        %3064 = vmatpush1.msra.mxu0 0.0
        %3065 = vmatprep.subr.mxu0 0.0
        %3066 = vmatpush1.msra.mxu0 %v3028
        %3067 = vmatprep.subr.mxu0 0.0
        %3068 = vmatpush1.msra.mxu0 %v3026
        %3069 = vmatprep.subr.mxu0 0.0
        %3070 = vmatpush2.msra.mxu0 0.0
        %3071 = vmatprep.subr.mxu0 0.0
        %3072 = vmatpush2.msra.mxu0 0.0
        %3073 = vmatprep.subr.mxu0 0.0
        %3074 = vmatpush2.msra.mxu0 0.0
        %3075 = vmatprep.subr.mxu0 0.0
        %3076 = vmatpush2.msra.mxu0 0.0
        %3077 = vmatprep.subr.mxu0 0.0
        %3078 = vmatpush2.msra.mxu0 0.0
        %3079 = vmatprep.subr.mxu0 0.0
        %3080 = vmatpush2.msra.mxu0 0.0
        %3081 = vmatprep.subr.mxu0 0.0
        %3082 = vmatpush2.msra.mxu0 0.0
        %3083 = vmatprep.subr.mxu0 0.0
        %3084 = vmatpush2.msra.mxu0 0.0
        %3085 = vmatprep.subr.mxu0 0.0
        %3086 = vmatpush2.msra.mxu0 0.0
        %3087 = vmatprep.subr.mxu0 0.0
        %3088 = vmatpush2.msra.mxu0 0.0
        %3089 = vmatprep.subr.mxu0 0.0
        %3090 = vmatpush2.msra.mxu0 0.0
        %3091 = vmatprep.subr.mxu0 0.0
        %3092 = vmatpush2.msra.mxu0 0.0
        %3093 = vmatprep.subr.mxu0 0.0
        %3094 = vmatpush2.msra.mxu0 0.0
        %3095 = vmatprep.subr.mxu0 0.0
        %3096 = vmatpush2.msra.mxu0 0.0
        %3097 = vmatprep.subr.mxu0 0.0
        %3098 = vmatpush2.msra.mxu0 0.0
        %3099 = vmatprep.subr.mxu0 0.0
        %3100 = vmatpush2.msra.mxu0 0.0
        %3101 = vmatprep.mubr.f32.mxu0 0.0
        %3102 = vmatmul.mubr.f32.gmra.mxu0 %v3032
        %v3103 = vpop.f32.mrf.mxu0
        %v3104 = vadd.f32 0.0, %v3103
        %v3105 = vpop.f32.mrf.mxu0
        %3106 = vmatprep.mubr.f32.mxu0 0.0
        %3107 = vmatmul.mubr.f32.gmra.mxu0 %v3035
        %v3108 = vpop.f32.mrf.mxu0
        %v3109 = vadd.f32 0.0, %v3108
        %v3110 = vpop.f32.mrf.mxu0
        %3111 = vdwg.mxu0
        %v3113 = vsel %vm1232, %v3104, 0
        %v3116 = vsel %vm1232, %v3109, 0
        %3118 = vmatprep.subr.mxu0 0.0
        %3119 = vmatpush1.msra.mxu0 0.0
        %3120 = vmatprep.subr.mxu0 0.0
        %3121 = vmatpush1.msra.mxu0 0.0
        %3122 = vmatprep.subr.mxu0 0.0
        %3123 = vmatpush1.msra.mxu0 0.0
        %3124 = vmatprep.subr.mxu0 0.0
        %3125 = vmatpush1.msra.mxu0 0.0
        %3126 = vmatprep.subr.mxu0 0.0
        %3127 = vmatpush1.msra.mxu0 0.0
        %3128 = vmatprep.subr.mxu0 0.0
        %3129 = vmatpush1.msra.mxu0 0.0
        %3130 = vmatprep.subr.mxu0 0.0
        %3131 = vmatpush1.msra.mxu0 0.0
        %3132 = vmatprep.subr.mxu0 0.0
        %3133 = vmatpush1.msra.mxu0 0.0
        %3134 = vmatprep.subr.mxu0 0.0
        %3135 = vmatpush1.msra.mxu0 0.0
        %3136 = vmatprep.subr.mxu0 0.0
        %3137 = vmatpush1.msra.mxu0 0.0
        %3138 = vmatprep.subr.mxu0 0.0
        %3139 = vmatpush1.msra.mxu0 0.0
        %3140 = vmatprep.subr.mxu0 0.0
        %3141 = vmatpush1.msra.mxu0 0.0
        %3142 = vmatprep.subr.mxu0 0.0
        %3143 = vmatpush1.msra.mxu0 0.0
        %3144 = vmatprep.subr.mxu0 0.0
        %3145 = vmatpush1.msra.mxu0 0.0
        %3146 = vmatprep.subr.mxu0 0.0
        %3147 = vmatpush1.msra.mxu0 0.0
        %3148 = vmatprep.subr.mxu0 0.0
        %3149 = vmatpush1.msra.mxu0 %v1228
        %3150 = vmatprep.subr.mxu0 0.0
        %3151 = vmatpush2.msra.mxu0 0.0
        %3152 = vmatprep.subr.mxu0 0.0
        %3153 = vmatpush2.msra.mxu0 0.0
        %3154 = vmatprep.subr.mxu0 0.0
        %3155 = vmatpush2.msra.mxu0 0.0
        %3156 = vmatprep.subr.mxu0 0.0
        %3157 = vmatpush2.msra.mxu0 0.0
        %3158 = vmatprep.subr.mxu0 0.0
        %3159 = vmatpush2.msra.mxu0 0.0
        %3160 = vmatprep.subr.mxu0 0.0
        %3161 = vmatpush2.msra.mxu0 0.0
        %3162 = vmatprep.subr.mxu0 0.0
        %3163 = vmatpush2.msra.mxu0 0.0
        %3164 = vmatprep.subr.mxu0 0.0
        %3165 = vmatpush2.msra.mxu0 0.0
        %3166 = vmatprep.subr.mxu0 0.0
        %3167 = vmatpush2.msra.mxu0 0.0
        %3168 = vmatprep.subr.mxu0 0.0
        %3169 = vmatpush2.msra.mxu0 0.0
        %3170 = vmatprep.subr.mxu0 0.0
        %3171 = vmatpush2.msra.mxu0 0.0
        %3172 = vmatprep.subr.mxu0 0.0
        %3173 = vmatpush2.msra.mxu0 0.0
        %3174 = vmatprep.subr.mxu0 0.0
        %3175 = vmatpush2.msra.mxu0 0.0
        %3176 = vmatprep.subr.mxu0 0.0
        %3177 = vmatpush2.msra.mxu0 0.0
        %3178 = vmatprep.subr.mxu0 0.0
        %3179 = vmatpush2.msra.mxu0 0.0
        %3180 = vmatprep.subr.mxu0 0.0
        %3181 = vmatpush2.msra.mxu0 0.0
        %3182 = vmatprep.mubr.f32.mxu0 0.0
        %3183 = vmatmul.mubr.f32.gmra.mxu0 %v3113
        %v3184 = vpop.f32.mrf.mxu0
        %v3185 = vadd.f32 0.0, %v3184
        %v3186 = vpop.f32.mrf.mxu0
        %3187 = vmatprep.mubr.f32.mxu0 0.0
        %3188 = vmatmul.mubr.f32.gmra.mxu0 %v3116
        %v3189 = vpop.f32.mrf.mxu0
        %v3190 = vadd.f32 0.0, %v3189
        %v3191 = vpop.f32.mrf.mxu0
        %3192 = vdwg.mxu0
        %v3193 = vadd.f32 %v2904, %v3185
        %v3194 = vadd.f32 %v2909, %v3190
        %3195 = vrot.lane.b32.xlu0 %v2356, 104
        %v3196 = vpop.permute.xlu0 %3195
        %3197 = vrot.lane.b32.xlu0 %v2357, 104
        %v3198 = vpop.permute.xlu0 %3197
        %3199 = vrot.lane.b32.xlu0 %v1122, 104
        %v3200 = vpop.permute.xlu0 %3199
        %3201 = vrot.lane.b32.xlu0 %v1127, 104
        %v3202 = vpop.permute.xlu0 %3201
        %v3203 = vsel %vm1232, %v3196, 0
        %v3205 = vsel %vm1232, %v3198, 0
        %v3207 = vsel %vm1232, %v3200, 0
        %v3209 = vsel %vm1232, %v3202, 0
        %3211 = vmatprep.subr.mxu0 0.0
        %3212 = vmatpush1.xpose.msra.mxu0 0.0
        %3213 = vmatprep.subr.mxu0 0.0
        %3214 = vmatpush1.xpose.msra.mxu0 0.0
        %3215 = vmatprep.subr.mxu0 0.0
        %3216 = vmatpush1.xpose.msra.mxu0 0.0
        %3217 = vmatprep.subr.mxu0 0.0
        %3218 = vmatpush1.xpose.msra.mxu0 0.0
        %3219 = vmatprep.subr.mxu0 0.0
        %3220 = vmatpush1.xpose.msra.mxu0 0.0
        %3221 = vmatprep.subr.mxu0 0.0
        %3222 = vmatpush1.xpose.msra.mxu0 0.0
        %3223 = vmatprep.subr.mxu0 0.0
        %3224 = vmatpush1.xpose.msra.mxu0 0.0
        %3225 = vmatprep.subr.mxu0 0.0
        %3226 = vmatpush1.xpose.msra.mxu0 0.0
        %3227 = vmatprep.subr.mxu0 0.0
        %3228 = vmatpush1.xpose.msra.mxu0 0.0
        %3229 = vmatprep.subr.mxu0 0.0
        %3230 = vmatpush1.xpose.msra.mxu0 0.0
        %3231 = vmatprep.subr.mxu0 0.0
        %3232 = vmatpush1.xpose.msra.mxu0 0.0
        %3233 = vmatprep.subr.mxu0 0.0
        %3234 = vmatpush1.xpose.msra.mxu0 0.0
        %3235 = vmatprep.subr.mxu0 0.0
        %3236 = vmatpush1.xpose.msra.mxu0 0.0
        %3237 = vmatprep.subr.mxu0 0.0
        %3238 = vmatpush1.xpose.msra.mxu0 0.0
        %3239 = vmatprep.subr.mxu0 0.0
        %3240 = vmatpush1.xpose.msra.mxu0 %v3209
        %3241 = vmatprep.subr.mxu0 0.0
        %3242 = vmatpush1.xpose.msra.mxu0 %v3207
        %3243 = vmatprep.subr.mxu0 0.0
        %3244 = vmatpush2.xpose.msra.mxu0 0.0
        %3245 = vmatprep.subr.mxu0 0.0
        %3246 = vmatpush2.xpose.msra.mxu0 0.0
        %3247 = vmatprep.subr.mxu0 0.0
        %3248 = vmatpush2.xpose.msra.mxu0 0.0
        %3249 = vmatprep.subr.mxu0 0.0
        %3250 = vmatpush2.xpose.msra.mxu0 0.0
        %3251 = vmatprep.subr.mxu0 0.0
        %3252 = vmatpush2.xpose.msra.mxu0 0.0
        %3253 = vmatprep.subr.mxu0 0.0
        %3254 = vmatpush2.xpose.msra.mxu0 0.0
        %3255 = vmatprep.subr.mxu0 0.0
        %3256 = vmatpush2.xpose.msra.mxu0 0.0
        %3257 = vmatprep.subr.mxu0 0.0
        %3258 = vmatpush2.xpose.msra.mxu0 0.0
        %3259 = vmatprep.subr.mxu0 0.0
        %3260 = vmatpush2.xpose.msra.mxu0 0.0
        %3261 = vmatprep.subr.mxu0 0.0
        %3262 = vmatpush2.xpose.msra.mxu0 0.0
        %3263 = vmatprep.subr.mxu0 0.0
        %3264 = vmatpush2.xpose.msra.mxu0 0.0
        %3265 = vmatprep.subr.mxu0 0.0
        %3266 = vmatpush2.xpose.msra.mxu0 0.0
        %3267 = vmatprep.subr.mxu0 0.0
        %3268 = vmatpush2.xpose.msra.mxu0 0.0
        %3269 = vmatprep.subr.mxu0 0.0
        %3270 = vmatpush2.xpose.msra.mxu0 0.0
        %3271 = vmatprep.subr.mxu0 0.0
        %3272 = vmatpush2.xpose.msra.mxu0 0.0
        %3273 = vmatprep.subr.mxu0 0.0
        %3274 = vmatpush2.xpose.msra.mxu0 0.0
        %3275 = vmatprep.mubr.f32.mxu0 0.0
        %3276 = vmatmul.mubr.f32.gmra.mxu0 %v3203
        %v3277 = vpop.f32.mrf.mxu0
        %v3278 = vadd.f32 %v923, %v3277
        %v3279 = vpop.f32.mrf.mxu0
        %3280 = vmatprep.mubr.f32.mxu0 0.0
        %3281 = vmatmul.mubr.f32.gmra.mxu0 %v3205
        %v3282 = vpop.f32.mrf.mxu0
        %v3283 = vadd.f32 %v924, %v3282
        %v3284 = vpop.f32.mrf.mxu0
        %3285 = vdwg.mxu0
        %v3286 = vsel %vm1320, %v3278, -inf
        %3287 = vmax.xlane.f32.xlu0 %v3286
        %v3288 = vpop.xlane.xlu0 %3287
        %v3289 = vsel %vm1320, %v3283, -inf
        %3290 = vmax.xlane.f32.xlu0 %v3289
        %v3291 = vpop.xlane.xlu0 %3290
        %v3292 = vsub.f32 %v3278, %v3288
        %v3293 = vsub.f32 %v3283, %v3291
        %v3294 = vmul.f32 %v3292, 1.442695
        %v3295 = vpow.pop %v3294
        %v3296 = vmul.f32 %v3293, 1.442695
        %v3297 = vpow.pop %v3296
        %v3298 = vsel %vm1320, %v3295, 0.0
        %3299 = vadd.xlane.f32.xlu0 %v3298
        %v3300 = vpop.xlane.xlu0 %3299
        %v3301 = vsel %vm1320, %v3297, 0.0
        %3302 = vadd.xlane.f32.xlu0 %v3301
        %v3303 = vpop.xlane.xlu0 %3302
        %v3304 = vrcp.pop %v3300
        %v3305 = vrcp.pop %v3303
        %v3306 = vmul.f32 %v3295, %v3304
        %v3307 = vmul.f32 %v3297, %v3305
        %3308 = vrot.lane.b32.xlu0 %v1218, 104
        %v3309 = vpop.permute.xlu0 %3308
        %3310 = vrot.lane.b32.xlu0 %v1223, 104
        %v3311 = vpop.permute.xlu0 %3310
        %v3315 = vsel %vm1320, %v3306, 0
        %v3318 = vsel %vm1320, %v3307, 0
        %3320 = vmatprep.subr.mxu0 0.0
        %3321 = vmatpush1.msra.mxu0 0.0
        %3322 = vmatprep.subr.mxu0 0.0
        %3323 = vmatpush1.msra.mxu0 0.0
        %3324 = vmatprep.subr.mxu0 0.0
        %3325 = vmatpush1.msra.mxu0 0.0
        %3326 = vmatprep.subr.mxu0 0.0
        %3327 = vmatpush1.msra.mxu0 0.0
        %3328 = vmatprep.subr.mxu0 0.0
        %3329 = vmatpush1.msra.mxu0 0.0
        %3330 = vmatprep.subr.mxu0 0.0
        %3331 = vmatpush1.msra.mxu0 0.0
        %3332 = vmatprep.subr.mxu0 0.0
        %3333 = vmatpush1.msra.mxu0 0.0
        %3334 = vmatprep.subr.mxu0 0.0
        %3335 = vmatpush1.msra.mxu0 0.0
        %3336 = vmatprep.subr.mxu0 0.0
        %3337 = vmatpush1.msra.mxu0 0.0
        %3338 = vmatprep.subr.mxu0 0.0
        %3339 = vmatpush1.msra.mxu0 0.0
        %3340 = vmatprep.subr.mxu0 0.0
        %3341 = vmatpush1.msra.mxu0 0.0
        %3342 = vmatprep.subr.mxu0 0.0
        %3343 = vmatpush1.msra.mxu0 0.0
        %3344 = vmatprep.subr.mxu0 0.0
        %3345 = vmatpush1.msra.mxu0 0.0
        %3346 = vmatprep.subr.mxu0 0.0
        %3347 = vmatpush1.msra.mxu0 0.0
        %3348 = vmatprep.subr.mxu0 0.0
        %3349 = vmatpush1.msra.mxu0 %v3311
        %3350 = vmatprep.subr.mxu0 0.0
        %3351 = vmatpush1.msra.mxu0 %v3309
        %3352 = vmatprep.subr.mxu0 0.0
        %3353 = vmatpush2.msra.mxu0 0.0
        %3354 = vmatprep.subr.mxu0 0.0
        %3355 = vmatpush2.msra.mxu0 0.0
        %3356 = vmatprep.subr.mxu0 0.0
        %3357 = vmatpush2.msra.mxu0 0.0
        %3358 = vmatprep.subr.mxu0 0.0
        %3359 = vmatpush2.msra.mxu0 0.0
        %3360 = vmatprep.subr.mxu0 0.0
        %3361 = vmatpush2.msra.mxu0 0.0
        %3362 = vmatprep.subr.mxu0 0.0
        %3363 = vmatpush2.msra.mxu0 0.0
        %3364 = vmatprep.subr.mxu0 0.0
        %3365 = vmatpush2.msra.mxu0 0.0
        %3366 = vmatprep.subr.mxu0 0.0
        %3367 = vmatpush2.msra.mxu0 0.0
        %3368 = vmatprep.subr.mxu0 0.0
        %3369 = vmatpush2.msra.mxu0 0.0
        %3370 = vmatprep.subr.mxu0 0.0
        %3371 = vmatpush2.msra.mxu0 0.0
        %3372 = vmatprep.subr.mxu0 0.0
        %3373 = vmatpush2.msra.mxu0 0.0
        %3374 = vmatprep.subr.mxu0 0.0
        %3375 = vmatpush2.msra.mxu0 0.0
        %3376 = vmatprep.subr.mxu0 0.0
        %3377 = vmatpush2.msra.mxu0 0.0
        %3378 = vmatprep.subr.mxu0 0.0
        %3379 = vmatpush2.msra.mxu0 0.0
        %3380 = vmatprep.subr.mxu0 0.0
        %3381 = vmatpush2.msra.mxu0 0.0
        %3382 = vmatprep.subr.mxu0 0.0
        %3383 = vmatpush2.msra.mxu0 0.0
        %3384 = vmatprep.mubr.f32.mxu0 0.0
        %3385 = vmatmul.mubr.f32.gmra.mxu0 %v3315
        %v3386 = vpop.f32.mrf.mxu0
        %v3387 = vadd.f32 0.0, %v3386
        %v3388 = vpop.f32.mrf.mxu0
        %3389 = vmatprep.mubr.f32.mxu0 0.0
        %3390 = vmatmul.mubr.f32.gmra.mxu0 %v3318
        %v3391 = vpop.f32.mrf.mxu0
        %v3392 = vadd.f32 0.0, %v3391
        %v3393 = vpop.f32.mrf.mxu0
        %3394 = vdwg.mxu0
        %v3396 = vsel %vm1232, %v3387, 0
        %v3399 = vsel %vm1232, %v3392, 0
        %3401 = vmatprep.subr.mxu0 0.0
        %3402 = vmatpush1.msra.mxu0 0.0
        %3403 = vmatprep.subr.mxu0 0.0
        %3404 = vmatpush1.msra.mxu0 0.0
        %3405 = vmatprep.subr.mxu0 0.0
        %3406 = vmatpush1.msra.mxu0 0.0
        %3407 = vmatprep.subr.mxu0 0.0
        %3408 = vmatpush1.msra.mxu0 0.0
        %3409 = vmatprep.subr.mxu0 0.0
        %3410 = vmatpush1.msra.mxu0 0.0
        %3411 = vmatprep.subr.mxu0 0.0
        %3412 = vmatpush1.msra.mxu0 0.0
        %3413 = vmatprep.subr.mxu0 0.0
        %3414 = vmatpush1.msra.mxu0 0.0
        %3415 = vmatprep.subr.mxu0 0.0
        %3416 = vmatpush1.msra.mxu0 0.0
        %3417 = vmatprep.subr.mxu0 0.0
        %3418 = vmatpush1.msra.mxu0 0.0
        %3419 = vmatprep.subr.mxu0 0.0
        %3420 = vmatpush1.msra.mxu0 0.0
        %3421 = vmatprep.subr.mxu0 0.0
        %3422 = vmatpush1.msra.mxu0 0.0
        %3423 = vmatprep.subr.mxu0 0.0
        %3424 = vmatpush1.msra.mxu0 0.0
        %3425 = vmatprep.subr.mxu0 0.0
        %3426 = vmatpush1.msra.mxu0 0.0
        %3427 = vmatprep.subr.mxu0 0.0
        %3428 = vmatpush1.msra.mxu0 0.0
        %3429 = vmatprep.subr.mxu0 0.0
        %3430 = vmatpush1.msra.mxu0 0.0
        %3431 = vmatprep.subr.mxu0 0.0
        %3432 = vmatpush1.msra.mxu0 %v1229
        %3433 = vmatprep.subr.mxu0 0.0
        %3434 = vmatpush2.msra.mxu0 0.0
        %3435 = vmatprep.subr.mxu0 0.0
        %3436 = vmatpush2.msra.mxu0 0.0
        %3437 = vmatprep.subr.mxu0 0.0
        %3438 = vmatpush2.msra.mxu0 0.0
        %3439 = vmatprep.subr.mxu0 0.0
        %3440 = vmatpush2.msra.mxu0 0.0
        %3441 = vmatprep.subr.mxu0 0.0
        %3442 = vmatpush2.msra.mxu0 0.0
        %3443 = vmatprep.subr.mxu0 0.0
        %3444 = vmatpush2.msra.mxu0 0.0
        %3445 = vmatprep.subr.mxu0 0.0
        %3446 = vmatpush2.msra.mxu0 0.0
        %3447 = vmatprep.subr.mxu0 0.0
        %3448 = vmatpush2.msra.mxu0 0.0
        %3449 = vmatprep.subr.mxu0 0.0
        %3450 = vmatpush2.msra.mxu0 0.0
        %3451 = vmatprep.subr.mxu0 0.0
        %3452 = vmatpush2.msra.mxu0 0.0
        %3453 = vmatprep.subr.mxu0 0.0
        %3454 = vmatpush2.msra.mxu0 0.0
        %3455 = vmatprep.subr.mxu0 0.0
        %3456 = vmatpush2.msra.mxu0 0.0
        %3457 = vmatprep.subr.mxu0 0.0
        %3458 = vmatpush2.msra.mxu0 0.0
        %3459 = vmatprep.subr.mxu0 0.0
        %3460 = vmatpush2.msra.mxu0 0.0
        %3461 = vmatprep.subr.mxu0 0.0
        %3462 = vmatpush2.msra.mxu0 0.0
        %3463 = vmatprep.subr.mxu0 0.0
        %3464 = vmatpush2.msra.mxu0 0.0
        %3465 = vmatprep.mubr.f32.mxu0 0.0
        %3466 = vmatmul.mubr.f32.gmra.mxu0 %v3396
        %v3467 = vpop.f32.mrf.mxu0
        %v3468 = vadd.f32 0.0, %v3467
        %v3469 = vpop.f32.mrf.mxu0
        %3470 = vmatprep.mubr.f32.mxu0 0.0
        %3471 = vmatmul.mubr.f32.gmra.mxu0 %v3399
        %v3472 = vpop.f32.mrf.mxu0
        %v3473 = vadd.f32 0.0, %v3472
        %v3474 = vpop.f32.mrf.mxu0
        %3475 = vdwg.mxu0
        %v3476 = vadd.f32 %v3193, %v3468
        %v3477 = vadd.f32 %v3194, %v3473
        %3478 = vst.msk [vmem:[#allocation3 + $0x10] sm:$0xff] %vm936, %v3476
        %3479 = vst.msk [vmem:[#allocation3 + $0x18] sm:$0xff] %vm936, %v3477
        %v3480 = vld [vmem:[#allocation3] sm:$0xff]
        %v3481 = vld [vmem:[#allocation3 + $0x8] sm:$0xff]
        %v3482 = vld [vmem:[#allocation3 + $0x10] sm:$0xff]
        %v3483 = vld [vmem:[#allocation3 + $0x18] sm:$0xff]
        %v3484 = vld [vmem:[%s872] sm:$0x1]
        %v3486 = vlaneseq
        %v3487 = vshrl.u32 %v3486, 7
        %v3488 = vsub.s32 0, %v3487
        %v3489 = vrot.slane %v3484, %v3488
        %v3491 = vadd.f32 %v3480, %v3489
        %v3492 = vadd.f32 %v3481, %v3489
        %v3493 = vadd.f32 %v3482, %v3489
        %v3494 = vadd.f32 %v3483, %v3489
        %v3495 = vadd.f32 %v909, %v3491
        %v3496 = vadd.f32 %v910, %v3492
        %v3497 = vadd.f32 %v911, %v3493
        %v3498 = vadd.f32 %v912, %v3494
        %v3499 = vsel %vm936, %v3495, 0.0
        %3500 = vadd.xlane.f32.xlu0 %v3499
        %v3501 = vpop.xlane.xlu0 %3500
        %v3502 = vsel %vm936, %v3496, 0.0
        %3503 = vadd.xlane.f32.xlu0 %v3502
        %v3504 = vpop.xlane.xlu0 %3503
        %v3505 = vsel %vm936, %v3497, 0.0
        %3506 = vadd.xlane.f32.xlu0 %v3505
        %v3507 = vpop.xlane.xlu0 %3506
        %v3508 = vsel %vm936, %v3498, 0.0
        %3509 = vadd.xlane.f32.xlu0 %v3508
        %v3510 = vpop.xlane.xlu0 %3509
        %v3511 = vrcp.pop 32.0
        %v3512 = vmul.f32 %v3501, %v3511
        %v3513 = vmul.f32 %v3504, %v3511
        %v3514 = vmul.f32 %v3507, %v3511
        %v3515 = vmul.f32 %v3510, %v3511
        %v3516 = vsub.f32 %v3495, %v3512
        %v3517 = vsub.f32 %v3496, %v3513
        %v3518 = vsub.f32 %v3497, %v3514
        %v3519 = vsub.f32 %v3498, %v3515
        %v3520 = vmul.f32 %v3516, %v3516
        %v3521 = vmul.f32 %v3517, %v3517
        %v3522 = vmul.f32 %v3518, %v3518
        %v3523 = vmul.f32 %v3519, %v3519
        %v3524 = vsel %vm936, %v3520, 0.0
        %3525 = vadd.xlane.f32.xlu0 %v3524
        %v3526 = vpop.xlane.xlu0 %3525
        %v3527 = vsel %vm936, %v3521, 0.0
        %3528 = vadd.xlane.f32.xlu0 %v3527
        %v3529 = vpop.xlane.xlu0 %3528
        %v3530 = vsel %vm936, %v3522, 0.0
        %3531 = vadd.xlane.f32.xlu0 %v3530
        %v3532 = vpop.xlane.xlu0 %3531
        %v3533 = vsel %vm936, %v3523, 0.0
        %3534 = vadd.xlane.f32.xlu0 %v3533
        %v3535 = vpop.xlane.xlu0 %3534
        %v3536 = vmul.f32 %v3526, %v3511
        %v3537 = vmul.f32 %v3529, %v3511
        %v3538 = vmul.f32 %v3532, %v3511
        %v3539 = vmul.f32 %v3535, %v3511
        %v3540 = vadd.f32 %v3536, 1e-05
        %v3541 = vadd.f32 %v3537, 1e-05
        %v3542 = vadd.f32 %v3538, 1e-05
        %v3543 = vadd.f32 %v3539, 1e-05
        %v3544 = vrsqrt.pop %v3540
        %v3545 = vrsqrt.pop %v3541
        %v3546 = vrsqrt.pop %v3542
        %v3547 = vrsqrt.pop %v3543
        %v3548 = vmul.f32 %v3516, %v3544
        %v3549 = vmul.f32 %v3517, %v3545
        %v3550 = vmul.f32 %v3518, %v3546
        %v3551 = vmul.f32 %v3519, %v3547
        %v3552 = vld [vmem:[%s875] sm:$0x1]
        %v3554 = vlaneseq
        %v3555 = vshrl.u32 %v3554, 7
        %v3556 = vsub.s32 0, %v3555
        %v3557 = vrot.slane %v3552, %v3556
        %v3559 = vmul.f32 %v3548, %v3557
        %v3560 = vmul.f32 %v3549, %v3557
        %v3561 = vmul.f32 %v3550, %v3557
        %v3562 = vmul.f32 %v3551, %v3557
        %v3563 = vld [vmem:[%s878] sm:$0x1]
        %v3565 = vlaneseq
        %v3566 = vshrl.u32 %v3565, 7
        %v3567 = vsub.s32 0, %v3566
        %v3568 = vrot.slane %v3563, %v3567
        %v3570 = vadd.f32 %v3559, %v3568
        %v3571 = vadd.f32 %v3560, %v3568
        %v3572 = vadd.f32 %v3561, %v3568
        %v3573 = vadd.f32 %v3562, %v3568
        %v3574 = vld [vmem:[%s737] sm:$0xff]
        %v3575 = vld [vmem:[%s737 + $0x8] sm:$0xff]
        %v3576 = vld [vmem:[%s737 + $0x10] sm:$0xff]
        %v3577 = vld [vmem:[%s737 + $0x18] sm:$0xff]
        %v3578 = vld [vmem:[%s881] sm:$0x1]
        %v3580 = vlaneseq
        %v3581 = vshrl.u32 %v3580, 7
        %v3582 = vsub.s32 0, %v3581
        %v3583 = vrot.slane %v3578, %v3582
        %v3586 = vsel %vm936, %v3570, 0
        %v3589 = vsel %vm936, %v3571, 0
        %v3592 = vsel %vm936, %v3572, 0
        %v3595 = vsel %vm936, %v3573, 0
        %3597 = vmatprep.subr.mxu0 0.0
        %3598 = vmatpush1.msra.mxu0 0.0
        %3599 = vmatprep.subr.mxu0 0.0
        %3600 = vmatpush1.msra.mxu0 0.0
        %3601 = vmatprep.subr.mxu0 0.0
        %3602 = vmatpush1.msra.mxu0 0.0
        %3603 = vmatprep.subr.mxu0 0.0
        %3604 = vmatpush1.msra.mxu0 0.0
        %3605 = vmatprep.subr.mxu0 0.0
        %3606 = vmatpush1.msra.mxu0 0.0
        %3607 = vmatprep.subr.mxu0 0.0
        %3608 = vmatpush1.msra.mxu0 0.0
        %3609 = vmatprep.subr.mxu0 0.0
        %3610 = vmatpush1.msra.mxu0 0.0
        %3611 = vmatprep.subr.mxu0 0.0
        %3612 = vmatpush1.msra.mxu0 0.0
        %3613 = vmatprep.subr.mxu0 0.0
        %3614 = vmatpush1.msra.mxu0 0.0
        %3615 = vmatprep.subr.mxu0 0.0
        %3616 = vmatpush1.msra.mxu0 0.0
        %3617 = vmatprep.subr.mxu0 0.0
        %3618 = vmatpush1.msra.mxu0 0.0
        %3619 = vmatprep.subr.mxu0 0.0
        %3620 = vmatpush1.msra.mxu0 0.0
        %3621 = vmatprep.subr.mxu0 0.0
        %3622 = vmatpush1.msra.mxu0 %v3577
        %3623 = vmatprep.subr.mxu0 0.0
        %3624 = vmatpush1.msra.mxu0 %v3576
        %3625 = vmatprep.subr.mxu0 0.0
        %3626 = vmatpush1.msra.mxu0 %v3575
        %3627 = vmatprep.subr.mxu0 0.0
        %3628 = vmatpush1.msra.mxu0 %v3574
        %3629 = vmatprep.subr.mxu0 0.0
        %3630 = vmatpush2.msra.mxu0 0.0
        %3631 = vmatprep.subr.mxu0 0.0
        %3632 = vmatpush2.msra.mxu0 0.0
        %3633 = vmatprep.subr.mxu0 0.0
        %3634 = vmatpush2.msra.mxu0 0.0
        %3635 = vmatprep.subr.mxu0 0.0
        %3636 = vmatpush2.msra.mxu0 0.0
        %3637 = vmatprep.subr.mxu0 0.0
        %3638 = vmatpush2.msra.mxu0 0.0
        %3639 = vmatprep.subr.mxu0 0.0
        %3640 = vmatpush2.msra.mxu0 0.0
        %3641 = vmatprep.subr.mxu0 0.0
        %3642 = vmatpush2.msra.mxu0 0.0
        %3643 = vmatprep.subr.mxu0 0.0
        %3644 = vmatpush2.msra.mxu0 0.0
        %3645 = vmatprep.subr.mxu0 0.0
        %3646 = vmatpush2.msra.mxu0 0.0
        %3647 = vmatprep.subr.mxu0 0.0
        %3648 = vmatpush2.msra.mxu0 0.0
        %3649 = vmatprep.subr.mxu0 0.0
        %3650 = vmatpush2.msra.mxu0 0.0
        %3651 = vmatprep.subr.mxu0 0.0
        %3652 = vmatpush2.msra.mxu0 0.0
        %3653 = vmatprep.subr.mxu0 0.0
        %3654 = vmatpush2.msra.mxu0 0.0
        %3655 = vmatprep.subr.mxu0 0.0
        %3656 = vmatpush2.msra.mxu0 0.0
        %3657 = vmatprep.subr.mxu0 0.0
        %3658 = vmatpush2.msra.mxu0 0.0
        %3659 = vmatprep.subr.mxu0 0.0
        %3660 = vmatpush2.msra.mxu0 0.0
        %3661 = vmatprep.mubr.f32.mxu0 0.0
        %3662 = vmatmul.mubr.f32.gmra.mxu0 %v3586
        %v3663 = vpop.f32.mrf.mxu0
        %v3664 = vadd.f32 %v3583, %v3663
        %v3665 = vpop.f32.mrf.mxu0
        %3666 = vmatprep.mubr.f32.mxu0 0.0
        %3667 = vmatmul.mubr.f32.gmra.mxu0 %v3589
        %v3668 = vpop.f32.mrf.mxu0
        %v3669 = vadd.f32 %v3583, %v3668
        %v3670 = vpop.f32.mrf.mxu0
        %3671 = vmatprep.mubr.f32.mxu0 0.0
        %3672 = vmatmul.mubr.f32.gmra.mxu0 %v3592
        %v3673 = vpop.f32.mrf.mxu0
        %v3674 = vadd.f32 %v3583, %v3673
        %v3675 = vpop.f32.mrf.mxu0
        %3676 = vmatprep.mubr.f32.mxu0 0.0
        %3677 = vmatmul.mubr.f32.gmra.mxu0 %v3595
        %v3678 = vpop.f32.mrf.mxu0
        %v3679 = vadd.f32 %v3583, %v3678
        %v3680 = vpop.f32.mrf.mxu0
        %3681 = vdwg.mxu0
        %v3682 = vmax.f32 %v3664, 0.0
        %v3683 = vmax.f32 %v3669, 0.0
        %v3684 = vmax.f32 %v3674, 0.0
        %v3685 = vmax.f32 %v3679, 0.0
        %v3686 = vld [vmem:[%s886] sm:$0xff]
        %v3687 = vld [vmem:[%s886 + $0x8] sm:$0xff]
        %v3688 = vld [vmem:[%s886 + $0x10] sm:$0xff]
        %v3689 = vld [vmem:[%s886 + $0x18] sm:$0xff]
        %v3690 = vld [vmem:[%s886 + $0x20] sm:$0xff]
        %v3691 = vld [vmem:[%s886 + $0x28] sm:$0xff]
        %v3692 = vld [vmem:[%s886 + $0x30] sm:$0xff]
        %v3693 = vld [vmem:[%s886 + $0x38] sm:$0xff]
        %v3694 = vld [vmem:[%s889] sm:$0x1]
        %v3696 = vlaneseq
        %v3697 = vshrl.u32 %v3696, 7
        %v3698 = vsub.s32 0, %v3697
        %v3699 = vrot.slane %v3694, %v3698
        %vm3701 = vcmask 523264
        %v3703 = vsel %vm3701, %v3682, 0
        %v3706 = vsel %vm3701, %v3683, 0
        %v3709 = vsel %vm3701, %v3684, 0
        %v3712 = vsel %vm3701, %v3685, 0
        %3714 = vmatprep.subr.mxu0 0.0
        %3715 = vmatpush1.msra.mxu0 0.0
        %3716 = vmatprep.subr.mxu0 0.0
        %3717 = vmatpush1.msra.mxu0 0.0
        %3718 = vmatprep.subr.mxu0 0.0
        %3719 = vmatpush1.msra.mxu0 0.0
        %3720 = vmatprep.subr.mxu0 0.0
        %3721 = vmatpush1.msra.mxu0 0.0
        %3722 = vmatprep.subr.mxu0 0.0
        %3723 = vmatpush1.msra.mxu0 0.0
        %3724 = vmatprep.subr.mxu0 0.0
        %3725 = vmatpush1.msra.mxu0 0.0
        %3726 = vmatprep.subr.mxu0 0.0
        %3727 = vmatpush1.msra.mxu0 0.0
        %3728 = vmatprep.subr.mxu0 0.0
        %3729 = vmatpush1.msra.mxu0 0.0
        %3730 = vmatprep.subr.mxu0 0.0
        %3731 = vmatpush1.msra.mxu0 %v3693
        %3732 = vmatprep.subr.mxu0 0.0
        %3733 = vmatpush1.msra.mxu0 %v3692
        %3734 = vmatprep.subr.mxu0 0.0
        %3735 = vmatpush1.msra.mxu0 %v3691
        %3736 = vmatprep.subr.mxu0 0.0
        %3737 = vmatpush1.msra.mxu0 %v3690
        %3738 = vmatprep.subr.mxu0 0.0
        %3739 = vmatpush1.msra.mxu0 %v3689
        %3740 = vmatprep.subr.mxu0 0.0
        %3741 = vmatpush1.msra.mxu0 %v3688
        %3742 = vmatprep.subr.mxu0 0.0
        %3743 = vmatpush1.msra.mxu0 %v3687
        %3744 = vmatprep.subr.mxu0 0.0
        %3745 = vmatpush1.msra.mxu0 %v3686
        %3746 = vmatprep.subr.mxu0 0.0
        %3747 = vmatpush2.msra.mxu0 0.0
        %3748 = vmatprep.subr.mxu0 0.0
        %3749 = vmatpush2.msra.mxu0 0.0
        %3750 = vmatprep.subr.mxu0 0.0
        %3751 = vmatpush2.msra.mxu0 0.0
        %3752 = vmatprep.subr.mxu0 0.0
        %3753 = vmatpush2.msra.mxu0 0.0
        %3754 = vmatprep.subr.mxu0 0.0
        %3755 = vmatpush2.msra.mxu0 0.0
        %3756 = vmatprep.subr.mxu0 0.0
        %3757 = vmatpush2.msra.mxu0 0.0
        %3758 = vmatprep.subr.mxu0 0.0
        %3759 = vmatpush2.msra.mxu0 0.0
        %3760 = vmatprep.subr.mxu0 0.0
        %3761 = vmatpush2.msra.mxu0 0.0
        %3762 = vmatprep.subr.mxu0 0.0
        %3763 = vmatpush2.msra.mxu0 0.0
        %3764 = vmatprep.subr.mxu0 0.0
        %3765 = vmatpush2.msra.mxu0 0.0
        %3766 = vmatprep.subr.mxu0 0.0
        %3767 = vmatpush2.msra.mxu0 0.0
        %3768 = vmatprep.subr.mxu0 0.0
        %3769 = vmatpush2.msra.mxu0 0.0
        %3770 = vmatprep.subr.mxu0 0.0
        %3771 = vmatpush2.msra.mxu0 0.0
        %3772 = vmatprep.subr.mxu0 0.0
        %3773 = vmatpush2.msra.mxu0 0.0
        %3774 = vmatprep.subr.mxu0 0.0
        %3775 = vmatpush2.msra.mxu0 0.0
        %3776 = vmatprep.subr.mxu0 0.0
        %3777 = vmatpush2.msra.mxu0 0.0
        %3778 = vmatprep.mubr.f32.mxu0 0.0
        %3779 = vmatmul.mubr.f32.gmra.mxu0 %v3703
        %v3780 = vpop.f32.mrf.mxu0
        %v3781 = vadd.f32 %v3699, %v3780
        %v3782 = vpop.f32.mrf.mxu0
        %3783 = vmatprep.mubr.f32.mxu0 0.0
        %3784 = vmatmul.mubr.f32.gmra.mxu0 %v3706
        %v3785 = vpop.f32.mrf.mxu0
        %v3786 = vadd.f32 %v3699, %v3785
        %v3787 = vpop.f32.mrf.mxu0
        %3788 = vmatprep.mubr.f32.mxu0 0.0
        %3789 = vmatmul.mubr.f32.gmra.mxu0 %v3709
        %v3790 = vpop.f32.mrf.mxu0
        %v3791 = vadd.f32 %v3699, %v3790
        %v3792 = vpop.f32.mrf.mxu0
        %3793 = vmatprep.mubr.f32.mxu0 0.0
        %3794 = vmatmul.mubr.f32.gmra.mxu0 %v3712
        %v3795 = vpop.f32.mrf.mxu0
        %v3796 = vadd.f32 %v3699, %v3795
        %v3797 = vpop.f32.mrf.mxu0
        %3798 = vdwg.mxu0
        %v3799 = vadd.f32 %v3570, %v3781
        %v3800 = vadd.f32 %v3571, %v3786
        %v3801 = vadd.f32 %v3572, %v3791
        %v3802 = vadd.f32 %v3573, %v3796
        %v3803 = vsel %vm936, %v3799, 0.0
        %3804 = vadd.xlane.f32.xlu0 %v3803
        %v3805 = vpop.xlane.xlu0 %3804
        %v3806 = vsel %vm936, %v3800, 0.0
        %3807 = vadd.xlane.f32.xlu0 %v3806
        %v3808 = vpop.xlane.xlu0 %3807
        %v3809 = vsel %vm936, %v3801, 0.0
        %3810 = vadd.xlane.f32.xlu0 %v3809
        %v3811 = vpop.xlane.xlu0 %3810
        %v3812 = vsel %vm936, %v3802, 0.0
        %3813 = vadd.xlane.f32.xlu0 %v3812
        %v3814 = vpop.xlane.xlu0 %3813
        %v3815 = vmul.f32 %v3805, %v3511
        %v3816 = vmul.f32 %v3808, %v3511
        %v3817 = vmul.f32 %v3811, %v3511
        %v3818 = vmul.f32 %v3814, %v3511
        %v3819 = vsub.f32 %v3799, %v3815
        %v3820 = vsub.f32 %v3800, %v3816
        %v3821 = vsub.f32 %v3801, %v3817
        %v3822 = vsub.f32 %v3802, %v3818
        %v3823 = vmul.f32 %v3819, %v3819
        %v3824 = vmul.f32 %v3820, %v3820
        %v3825 = vmul.f32 %v3821, %v3821
        %v3826 = vmul.f32 %v3822, %v3822
        %v3827 = vsel %vm936, %v3823, 0.0
        %3828 = vadd.xlane.f32.xlu0 %v3827
        %v3829 = vpop.xlane.xlu0 %3828
        %v3830 = vsel %vm936, %v3824, 0.0
        %3831 = vadd.xlane.f32.xlu0 %v3830
        %v3832 = vpop.xlane.xlu0 %3831
        %v3833 = vsel %vm936, %v3825, 0.0
        %3834 = vadd.xlane.f32.xlu0 %v3833
        %v3835 = vpop.xlane.xlu0 %3834
        %v3836 = vsel %vm936, %v3826, 0.0
        %3837 = vadd.xlane.f32.xlu0 %v3836
        %v3838 = vpop.xlane.xlu0 %3837
        %v3839 = vmul.f32 %v3829, %v3511
        %v3840 = vmul.f32 %v3832, %v3511
        %v3841 = vmul.f32 %v3835, %v3511
        %v3842 = vmul.f32 %v3838, %v3511
        %v3843 = vadd.f32 %v3839, 1e-05
        %v3844 = vadd.f32 %v3840, 1e-05
        %v3845 = vadd.f32 %v3841, 1e-05
        %v3846 = vadd.f32 %v3842, 1e-05
        %v3847 = vrsqrt.pop %v3843
        %v3848 = vrsqrt.pop %v3844
        %v3849 = vrsqrt.pop %v3845
        %v3850 = vrsqrt.pop %v3846
        %v3851 = vmul.f32 %v3819, %v3847
        %v3852 = vmul.f32 %v3820, %v3848
        %v3853 = vmul.f32 %v3821, %v3849
        %v3854 = vmul.f32 %v3822, %v3850
        %v3855 = vld [vmem:[%s892] sm:$0x1]
        %v3857 = vlaneseq
        %v3858 = vshrl.u32 %v3857, 7
        %v3859 = vsub.s32 0, %v3858
        %v3860 = vrot.slane %v3855, %v3859
        %v3862 = vmul.f32 %v3851, %v3860
        %v3863 = vmul.f32 %v3852, %v3860
        %v3864 = vmul.f32 %v3853, %v3860
        %v3865 = vmul.f32 %v3854, %v3860
        %v3866 = vld [vmem:[%s895] sm:$0x1]
        %v3868 = vlaneseq
        %v3869 = vshrl.u32 %v3868, 7
        %v3870 = vsub.s32 0, %v3869
        %v3871 = vrot.slane %v3866, %v3870
        %v3873 = vadd.f32 %v3862, %v3871
        %v3874 = vadd.f32 %v3863, %v3871
        %v3875 = vadd.f32 %v3864, %v3871
        %v3876 = vadd.f32 %v3865, %v3871
        %3877 = vst.msk [vmem:[#allocation2] sm:$0xff] %vm936, %v3873
        %3878 = vst.msk [vmem:[#allocation2 + $0x8] sm:$0xff] %vm936, %v3874
        %3879 = vst.msk [vmem:[#allocation2 + $0x10] sm:$0xff] %vm936, %v3875
        %3880 = vst.msk [vmem:[#allocation2 + $0x18] sm:$0xff] %vm936, %v3876
        %p3881 = scmp.eq.s32.totalorder %s36, 1
        // Predicated region
        $region117: #{tpu_custom_call.1} parent=95 // pred_check
          %p3882 = pneg %p3881
        $region118: #{tpu_custom_call.1} parent=95 // pred_check_branch
          %3884 = sbr.rel (%p3882) target = $region120
        $region119: #{tpu_custom_call.1} parent=95 // pred_region
          %v3885 = vld [vmem:[#allocation10] sm:$0xff]
          %v3886 = vld [vmem:[#allocation10 + $0x8] sm:$0xff]
          %v3887 = vld [vmem:[#allocation10 + $0x10] sm:$0xff]
          %v3888 = vld [vmem:[#allocation10 + $0x18] sm:$0xff]
          %v3889 = vld [vmem:[%s18] sm:$0x1]
          %v3891 = vlaneseq
          %v3892 = vshrl.u32 %v3891, 7
          %v3893 = vsub.s32 0, %v3892
          %v3894 = vrot.slane %v3889, %v3893
          %v3897 = vsel %vm936, %v3873, 0
          %v3900 = vsel %vm936, %v3874, 0
          %v3903 = vsel %vm936, %v3875, 0
          %v3906 = vsel %vm936, %v3876, 0
          %3908 = vmatprep.subr.mxu0 0.0
          %3909 = vmatpush1.msra.mxu0 0.0
          %3910 = vmatprep.subr.mxu0 0.0
          %3911 = vmatpush1.msra.mxu0 0.0
          %3912 = vmatprep.subr.mxu0 0.0
          %3913 = vmatpush1.msra.mxu0 0.0
          %3914 = vmatprep.subr.mxu0 0.0
          %3915 = vmatpush1.msra.mxu0 0.0
          %3916 = vmatprep.subr.mxu0 0.0
          %3917 = vmatpush1.msra.mxu0 0.0
          %3918 = vmatprep.subr.mxu0 0.0
          %3919 = vmatpush1.msra.mxu0 0.0
          %3920 = vmatprep.subr.mxu0 0.0
          %3921 = vmatpush1.msra.mxu0 0.0
          %3922 = vmatprep.subr.mxu0 0.0
          %3923 = vmatpush1.msra.mxu0 0.0
          %3924 = vmatprep.subr.mxu0 0.0
          %3925 = vmatpush1.msra.mxu0 0.0
          %3926 = vmatprep.subr.mxu0 0.0
          %3927 = vmatpush1.msra.mxu0 0.0
          %3928 = vmatprep.subr.mxu0 0.0
          %3929 = vmatpush1.msra.mxu0 0.0
          %3930 = vmatprep.subr.mxu0 0.0
          %3931 = vmatpush1.msra.mxu0 0.0
          %3932 = vmatprep.subr.mxu0 0.0
          %3933 = vmatpush1.msra.mxu0 %v3888
          %3934 = vmatprep.subr.mxu0 0.0
          %3935 = vmatpush1.msra.mxu0 %v3887
          %3936 = vmatprep.subr.mxu0 0.0
          %3937 = vmatpush1.msra.mxu0 %v3886
          %3938 = vmatprep.subr.mxu0 0.0
          %3939 = vmatpush1.msra.mxu0 %v3885
          %3940 = vmatprep.subr.mxu0 0.0
          %3941 = vmatpush2.msra.mxu0 0.0
          %3942 = vmatprep.subr.mxu0 0.0
          %3943 = vmatpush2.msra.mxu0 0.0
          %3944 = vmatprep.subr.mxu0 0.0
          %3945 = vmatpush2.msra.mxu0 0.0
          %3946 = vmatprep.subr.mxu0 0.0
          %3947 = vmatpush2.msra.mxu0 0.0
          %3948 = vmatprep.subr.mxu0 0.0
          %3949 = vmatpush2.msra.mxu0 0.0
          %3950 = vmatprep.subr.mxu0 0.0
          %3951 = vmatpush2.msra.mxu0 0.0
          %3952 = vmatprep.subr.mxu0 0.0
          %3953 = vmatpush2.msra.mxu0 0.0
          %3954 = vmatprep.subr.mxu0 0.0
          %3955 = vmatpush2.msra.mxu0 0.0
          %3956 = vmatprep.subr.mxu0 0.0
          %3957 = vmatpush2.msra.mxu0 0.0
          %3958 = vmatprep.subr.mxu0 0.0
          %3959 = vmatpush2.msra.mxu0 0.0
          %3960 = vmatprep.subr.mxu0 0.0
          %3961 = vmatpush2.msra.mxu0 0.0
          %3962 = vmatprep.subr.mxu0 0.0
          %3963 = vmatpush2.msra.mxu0 0.0
          %3964 = vmatprep.subr.mxu0 0.0
          %3965 = vmatpush2.msra.mxu0 0.0
          %3966 = vmatprep.subr.mxu0 0.0
          %3967 = vmatpush2.msra.mxu0 0.0
          %3968 = vmatprep.subr.mxu0 0.0
          %3969 = vmatpush2.msra.mxu0 0.0
          %3970 = vmatprep.subr.mxu0 0.0
          %3971 = vmatpush2.msra.mxu0 0.0
          %3972 = vmatprep.mubr.f32.mxu0 0.0
          %3973 = vmatmul.mubr.f32.gmra.mxu0 %v3897
          %v3974 = vpop.f32.mrf.mxu0
          %v3975 = vadd.f32 %v3894, %v3974
          %v3976 = vpop.f32.mrf.mxu0
          %3977 = vmatprep.mubr.f32.mxu0 0.0
          %3978 = vmatmul.mubr.f32.gmra.mxu0 %v3900
          %v3979 = vpop.f32.mrf.mxu0
          %v3980 = vadd.f32 %v3894, %v3979
          %v3981 = vpop.f32.mrf.mxu0
          %3982 = vmatprep.mubr.f32.mxu0 0.0
          %3983 = vmatmul.mubr.f32.gmra.mxu0 %v3903
          %v3984 = vpop.f32.mrf.mxu0
          %v3985 = vadd.f32 %v3894, %v3984
          %v3986 = vpop.f32.mrf.mxu0
          %3987 = vmatprep.mubr.f32.mxu0 0.0
          %3988 = vmatmul.mubr.f32.gmra.mxu0 %v3906
          %v3989 = vpop.f32.mrf.mxu0
          %v3990 = vadd.f32 %v3894, %v3989
          %v3991 = vpop.f32.mrf.mxu0
          %3992 = vdwg.mxu0
          %3993 = vst [vmem:[#allocation12] sm:$0xff] %v3975
          %3994 = vst [vmem:[#allocation12 + $0x8] sm:$0xff] %v3980
          %3995 = vst [vmem:[#allocation12 + $0x10] sm:$0xff] %v3985
          %3996 = vst [vmem:[#allocation12 + $0x18] sm:$0xff] %v3990
        $region120: #{tpu_custom_call.1} parent=95 // pred_fallthru
          _
        // Predicated region
        $region121: #{tpu_custom_call.1} parent=95 // pred_check
          %p3997 = pneg %p528
        $region122: #{tpu_custom_call.1} parent=95 // pred_check_branch
          %3999 = sbr.rel (%p3997) target = $region124
        $region123: #{tpu_custom_call.1} parent=95 // pred_region
          %s4001 = ssub.s32 512, 512
          %4002 = vsyncadd [#allocation6], %s4001
          %s4003 = sshll.u32 [#allocation12], 4
          %s4004 = int_to_ptr.vmem [resolvable:$true] %s4003
          %4009 = dma.vmem_to_hbm [thread:$0]  %s4004, 512, %s19, [#allocation6], 128, 128, 8
        $region124: #{tpu_custom_call.1} parent=95 // pred_fallthru
          _
        // Predicated region
        $region125: #{tpu_custom_call.1} parent=95 // pred_check
          %p4010 = pneg %p528
        $region126: #{tpu_custom_call.1} parent=95 // pred_check_branch
          %4012 = sbr.rel (%p4010) target = $region128
        $region127: #{tpu_custom_call.1} parent=95 // pred_region
          %4013 = dma.done [#allocation6], 512
        $region128: #{tpu_custom_call.1} parent=95 // pred_fallthru
          _
      $region96: #{tpu_custom_call.1} parent=5 // pred_fallthru
        _
      %p4014 = scmp.le.s32.totalorder 2, %s31
      // Predicated region
      $region129: #{tpu_custom_call.1} parent=5 // pred_check
        %p4015 = pneg %p4014
      $region130: #{tpu_custom_call.1} parent=5 // pred_check_branch
        %4017 = sbr.rel (%p4015) target = $region132
      $region131: #{tpu_custom_call.1} parent=5 // pred_region
        %s4018 = ssub.s32 %s31, 2
      $region132: #{tpu_custom_call.1} parent=5 // pred_fallthru
        _
    $region6: #{tpu_custom_call.1} parent=1 // loop_footer
      %s35 = sadd.s32 1, %s31
    $region7: #{tpu_custom_call.1} parent=1 // loop_footer_branch
      %30 = sbr.rel target = $region3
    $region8: #{tpu_custom_call.1} parent=1 // loop_exit
      _
    %4019 = vsyncpa [#allocation5], 1
    %s4020 = scalar_lea.sflag [#allocation5], 1
    %4021 = vsyncpa %s4020, 1
    %4022 = vsyncpa [#allocation8], 1
    %s4023 = scalar_lea.sflag [#allocation8], 1
    %4024 = vsyncpa %s4023, 1
    %4025 = vsyncpa [#allocation11], 1
    %4026 = vsyncpa [#allocation6], 1
    %s4027 = scalar_lea.sflag [#allocation6], 1
    %4028 = vsyncpa %s4027, 1

</llo_original>
